<compile_context>
chip_gen: v7x
topology: tpu7x:2x2x1
jax: 0.10.0
libtpu: 0.0.40
codegen_flags: <defaults>
</compile_context>

<pallas_src>
import functools

import jax
import jax.numpy as jnp
from jax.experimental import pallas as pl
from jax.experimental.pallas import tpu as pltpu

# Module-level constants from the reference file.
Z_DIM = 100
H_DIM = 900
EEG_DIM = 768    # module-level eeg_dim
X_DIM = 768      # module-level X_dim
LEAKY_SLOPE = 0.01  # nn.LeakyReLU default

Z_PAD = 128      # Z_DIM padded to MXU/lane granularity
H_PAD = 1024     # H_DIM padded up to a multiple of 128 (lane-dense)
TB_MAX = 512     # max batch-tile rows (fits v5e 16 MiB scoped VMEM)


def _round_up(x, m):
    return (x + m - 1) // m * m


def _cdiv(a, b):
    return (a + b - 1) // b


def _choose_batch_tile(B):
    """Batch-tile heuristic.

    * tiny batches (<=16): one tile, rounded to sublane granularity — the call
      is weight-DMA bound anyway, tiling cannot help.
    * otherwise: aim for >=2 tiles (>=4 once B >= 256) so v7x's second
      TensorCore is fed and DMAs pipeline, balance the tile to the batch so
      padding waste is bounded, and cap at TB_MAX.
    """
    if B <= 16:
        return _round_up(max(B, 8), 8)
    min_tiles = 4 if B >= 256 else 2
    n_tiles = max(_cdiv(B, TB_MAX), min_tiles)
    return min(_round_up(_cdiv(B, n_tiles), 8), TB_MAX)


def _netg_kernel(z_ref, c_ref, w1z_ref, w1c_ref, b1_ref, w2_ref, b2_ref, out_ref):
    # z_ref:   (TB, Z_PAD)        f32
    # c_ref:   (TB, EEG_DIM)      f32
    # w1z_ref: (Z_PAD, H_PAD)     bf16   (resident across the grid)
    # w1c_ref: (EEG_DIM, H_PAD)   bf16   (resident)
    # b1_ref:  (1, H_PAD)         f32    (resident)
    # w2_ref:  (H_PAD, X_DIM)     bf16   (resident)
    # b2_ref:  (1, X_DIM)         f32    (resident)
    # out_ref: (TB, X_DIM)        f32 or bf16
    z = z_ref[...].astype(jnp.bfloat16)
    c = c_ref[...].astype(jnp.bfloat16)

    # First Linear: two dots into one f32 accumulator (split concat).
    h = jnp.dot(z, w1z_ref[...], preferred_element_type=jnp.float32)
    h = h + jnp.dot(c, w1c_ref[...], preferred_element_type=jnp.float32)
    h = h + b1_ref[...]

    # LeakyReLU (negative_slope = 0.01): max(h, 0.01*h), f32 on the VPU.
    h = jnp.maximum(h, LEAKY_SLOPE * h)

    # Second Linear + Tanh.
    o = jnp.dot(h.astype(jnp.bfloat16), w2_ref[...],
                preferred_element_type=jnp.float32)
    o = o + b2_ref[...]
    out_ref[...] = jnp.tanh(o).astype(out_ref.dtype)


@functools.partial(jax.jit, static_argnames=("out_dtype",))
def netg_forward(z, c, kernel_params, out_dtype=jnp.float32):
    """Pallas implementation of _netG.forward. Returns (output, real_eeg)."""
    w1z, w1c, b1, w2, b2 = kernel_params
    B = z.shape[0]

    TB = _choose_batch_tile(B)
    B_pad = _round_up(B, TB)
    num_tiles = B_pad // TB

    # Zero-pad z columns 100 -> 128 (contraction-aligned; exact since matching
    # W1z rows are zero) and both activations up to the padded batch.
    z_in = jnp.pad(z, ((0, B_pad - B), (0, Z_PAD - Z_DIM)))
    c_in = jnp.pad(c, ((0, B_pad - B), (0, 0))) if B_pad != B else c

    # Resident operands never change across the grid -> single buffer.
    resident = dict(pipeline_mode=pl.Buffered(1))

    # Advisory cost estimate for the XLA scheduler.
    flops = 2 * B_pad * (Z_PAD * H_PAD + EEG_DIM * H_PAD + H_PAD * X_DIM)
    transcendentals = B_pad * X_DIM
    bytes_accessed = (
        (Z_PAD * H_PAD + EEG_DIM * H_PAD + H_PAD * X_DIM) * 2   # bf16 weights
        + (H_PAD + X_DIM) * 4                                    # f32 biases
        + B_pad * (Z_PAD + EEG_DIM) * 4                          # f32 inputs
        + B_pad * X_DIM * jnp.dtype(out_dtype).itemsize          # output
    )

    out = pl.pallas_call(
        _netg_kernel,
        out_shape=jax.ShapeDtypeStruct((B_pad, X_DIM), out_dtype),
        grid_spec=pltpu.PrefetchScalarGridSpec(
            num_scalar_prefetch=0,
            grid=(num_tiles,),
            in_specs=[
                pl.BlockSpec((TB, Z_PAD), lambda i: (i, 0)),               # z tile
                pl.BlockSpec((TB, EEG_DIM), lambda i: (i, 0)),             # c tile
                pl.BlockSpec((Z_PAD, H_PAD), lambda i: (0, 0), **resident),    # W1z
                pl.BlockSpec((EEG_DIM, H_PAD), lambda i: (0, 0), **resident),  # W1c
                pl.BlockSpec((1, H_PAD), lambda i: (0, 0), **resident),        # b1
                pl.BlockSpec((H_PAD, X_DIM), lambda i: (0, 0), **resident),    # W2
                pl.BlockSpec((1, X_DIM), lambda i: (0, 0), **resident),        # b2
            ],
            out_specs=pl.BlockSpec((TB, X_DIM), lambda i: (i, 0)),
        ),
        compiler_params=pltpu.CompilerParams(
            dimension_semantics=("parallel",),
            vmem_limit_bytes=32 * 1024 * 1024,
        ),
        cost_estimate=pl.CostEstimate(
            flops=int(flops),
            transcendentals=int(transcendentals),
            bytes_accessed=int(bytes_accessed),
        ),
    )(z_in, c_in, w1z, w1c, b1, w2, b2)

    if B_pad != B:
        out = out[:B]
    return out, c


def init_params(key):
    """Deterministic synthetic weights matching nn.Linear shapes (f32, unpadded).

    PyTorch stores Linear weight as (out, in); we keep the transposed
    (in, out) layout so the math is x @ W.
    """
    k1, k2, k3, k4 = jax.random.split(key, 4)
    in1 = Z_DIM + EEG_DIM
    s1 = 1.0 / jnp.sqrt(in1)
    s2 = 1.0 / jnp.sqrt(H_DIM)
    w1 = jax.random.uniform(k1, (in1, H_DIM), jnp.float32, -s1, s1)
    b1 = jax.random.uniform(k2, (1, H_DIM), jnp.float32, -s1, s1)
    w2 = jax.random.uniform(k3, (H_DIM, X_DIM), jnp.float32, -s2, s2)
    b2 = jax.random.uniform(k4, (1, X_DIM), jnp.float32, -s2, s2)
    return w1, b1, w2, b2


def prepare_kernel_params(params):
    """Split W1 into (z, c) halves, pad Z_DIM->Z_PAD and H_DIM->H_PAD with
    zeros, cast weights to bf16.

    Zero padding is mathematically exact: padded z columns meet zero W1z rows,
    LeakyReLU(0) = 0, and padded W2 rows are zero, so padded lanes contribute
    nothing to the output.
    """
    w1, b1, w2, b2 = params
    w1z = w1[:Z_DIM, :]          # (Z_DIM, H_DIM)
    w1c = w1[Z_DIM:, :]          # (EEG_DIM, H_DIM)
    pad_z = Z_PAD - Z_DIM
    pad_h = H_PAD - H_DIM
    w1z_p = jnp.pad(w1z, ((0, pad_z), (0, pad_h))).astype(jnp.bfloat16)
    w1c_p = jnp.pad(w1c, ((0, 0), (0, pad_h))).astype(jnp.bfloat16)
    b1_p = jnp.pad(b1, ((0, 0), (0, pad_h))).astype(jnp.float32)
    w2_p = jnp.pad(w2, ((0, pad_h), (0, 0))).astype(jnp.bfloat16)
    b2_p = b2.astype(jnp.float32)
    return w1z_p, w1c_p, b1_p, w2_p, b2_p


def netg_reference(z, c, params):
    """Pure-JAX f32 reference for correctness check."""
    w1, b1, w2, b2 = params
    x = jnp.concatenate([z, c], axis=1)
    h = x @ w1 + b1
    h = jnp.where(h > 0, h, LEAKY_SLOPE * h)
    o = jnp.tanh(h @ w2 + b2)
    return o, c


if __name__ == "__main__":
    key = jax.random.PRNGKey(0)
    kp, kz, kc, kz2, kc2 = jax.random.split(key, 5)

    params = init_params(kp)
    kernel_params = prepare_kernel_params(params)

    # Case 1: small batch, f32 output (matches PyTorch semantics exactly).
    B = 8
    z = jax.random.normal(kz, (B, Z_DIM), jnp.float32)
    c = jax.random.normal(kc, (B, EEG_DIM), jnp.float32)
    out, real_eeg = netg_forward(z, c, kernel_params)
    out = jax.block_until_ready(out)
    real_eeg = jax.block_until_ready(real_eeg)
    ref_out, ref_eeg = netg_reference(z, c, params)
    assert out.shape == (B, X_DIM)
    assert real_eeg.shape == (B, EEG_DIM)
    # bf16 matmul operands with f32 accumulation -> relaxed tolerance.
    assert jnp.allclose(out, ref_out, atol=3e-2, rtol=3e-2), (
        float(jnp.max(jnp.abs(out - ref_out))))
    assert jnp.array_equal(real_eeg, ref_eeg)

    # Case 2: non-tile-multiple batch + bf16 output path (v6e HBM-traffic win).
    B2 = 12
    z2 = jax.random.normal(kz2, (B2, Z_DIM), jnp.float32)
    c2 = jax.random.normal(kc2, (B2, EEG_DIM), jnp.float32)
    out2, real_eeg2 = netg_forward(z2, c2, kernel_params, out_dtype=jnp.bfloat16)
    out2 = jax.block_until_ready(out2)
    ref_out2, _ = netg_reference(z2, c2, params)
    assert out2.shape == (B2, X_DIM) and out2.dtype == jnp.bfloat16
    assert jnp.allclose(out2.astype(jnp.float32), ref_out2, atol=4e-2, rtol=4e-2), (
        float(jnp.max(jnp.abs(out2.astype(jnp.float32) - ref_out2))))
    assert jnp.array_equal(real_eeg2, c2)

    print("KERNEL_OK")
</pallas_src>

<mosaic_0001>
module attributes {stable_mosaic.version = 11 : i64} {
  func.func @_netg_kernel(%arg0: i32, %arg1: memref<8x128xf32, #tpu.memory_space<vmem>>, %arg2: memref<8x768xf32, #tpu.memory_space<vmem>>, %arg3: memref<128x1024xbf16, #tpu.memory_space<vmem>>, %arg4: memref<768x1024xbf16, #tpu.memory_space<vmem>>, %arg5: memref<1x1024xf32, #tpu.memory_space<vmem>>, %arg6: memref<1024x768xbf16, #tpu.memory_space<vmem>>, %arg7: memref<1x768xf32, #tpu.memory_space<vmem>>, %arg8: memref<8x768xf32, #tpu.memory_space<vmem>>) attributes {dimension_semantics = [#tpu.dimension_semantics<parallel>], iteration_bounds = array<i64: 1>, scalar_prefetch = 0 : i64, scratch_operands = 0 : i64, tpu.core_type = #tpu.core_type<tc>, window_params = [{transform_indices = @transform_0, window_bounds = array<i64: 8, 128>}, {transform_indices = @transform_1, window_bounds = array<i64: 8, 768>}, {pipeline_mode = #tpu.pipeline_mode<synchronous>, transform_indices = @transform_2, window_bounds = array<i64: 128, 1024>}, {pipeline_mode = #tpu.pipeline_mode<synchronous>, transform_indices = @transform_3, window_bounds = array<i64: 768, 1024>}, {pipeline_mode = #tpu.pipeline_mode<synchronous>, transform_indices = @transform_4, window_bounds = array<i64: 1, 1024>}, {pipeline_mode = #tpu.pipeline_mode<synchronous>, transform_indices = @transform_5, window_bounds = array<i64: 1024, 768>}, {pipeline_mode = #tpu.pipeline_mode<synchronous>, transform_indices = @transform_6, window_bounds = array<i64: 1, 768>}, {transform_indices = @transform_7, window_bounds = array<i64: 8, 768>}]} {
    %c0 = arith.constant 0 : index
    %c0_0 = arith.constant 0 : index
    %0 = vector.load %arg1[%c0, %c0_0] : memref<8x128xf32, #tpu.memory_space<vmem>>, vector<8x128xf32>
    %1 = arith.truncf %0 : vector<8x128xf32> to vector<8x128xbf16>
    %c0_1 = arith.constant 0 : index
    %c0_2 = arith.constant 0 : index
    %2 = vector.load %arg2[%c0_1, %c0_2] : memref<8x768xf32, #tpu.memory_space<vmem>>, vector<8x768xf32>
    %3 = arith.truncf %2 : vector<8x768xf32> to vector<8x768xbf16>
    %c0_3 = arith.constant 0 : index
    %c0_4 = arith.constant 0 : index
    %4 = vector.load %arg3[%c0_3, %c0_4] : memref<128x1024xbf16, #tpu.memory_space<vmem>>, vector<128x1024xbf16>
    %cst = arith.constant dense<0.000000e+00> : vector<8x1024xf32>
    %5 = tpu.matmul %1, %4, %cst {dimension_numbers = #tpu.dot_dimension_numbers<[1], [0], [0], [1], [0, 0, 1, 1], [], []>} : vector<8x128xbf16>, vector<128x1024xbf16>, vector<8x1024xf32> -> vector<8x1024xf32>
    %c0_5 = arith.constant 0 : index
    %c0_6 = arith.constant 0 : index
    %6 = vector.load %arg4[%c0_5, %c0_6] : memref<768x1024xbf16, #tpu.memory_space<vmem>>, vector<768x1024xbf16>
    %cst_7 = arith.constant dense<0.000000e+00> : vector<8x1024xf32>
    %7 = tpu.matmul %3, %6, %cst_7 {dimension_numbers = #tpu.dot_dimension_numbers<[1], [0], [0], [1], [0, 0, 1, 1], [], []>} : vector<8x768xbf16>, vector<768x1024xbf16>, vector<8x1024xf32> -> vector<8x1024xf32>
    %8 = arith.addf %5, %7 : vector<8x1024xf32>
    %c0_8 = arith.constant 0 : index
    %c0_9 = arith.constant 0 : index
    %9 = vector.load %arg5[%c0_8, %c0_9] : memref<1x1024xf32, #tpu.memory_space<vmem>>, vector<1x1024xf32>
    %10 = vector.broadcast %9 : vector<1x1024xf32> to vector<8x1024xf32>
    %11 = arith.addf %8, %10 : vector<8x1024xf32>
    %cst_10 = arith.constant 0.00999999977 : f32
    %12 = vector.broadcast %cst_10 : f32 to vector<8x1024xf32>
    %13 = arith.mulf %12, %11 : vector<8x1024xf32>
    %14 = arith.maximumf %11, %13 : vector<8x1024xf32>
    %15 = arith.truncf %14 : vector<8x1024xf32> to vector<8x1024xbf16>
    %c0_11 = arith.constant 0 : index
    %c0_12 = arith.constant 0 : index
    %16 = vector.load %arg6[%c0_11, %c0_12] : memref<1024x768xbf16, #tpu.memory_space<vmem>>, vector<1024x768xbf16>
    %cst_13 = arith.constant dense<0.000000e+00> : vector<8x768xf32>
    %17 = tpu.matmul %15, %16, %cst_13 {dimension_numbers = #tpu.dot_dimension_numbers<[1], [0], [0], [1], [0, 0, 1, 1], [], []>} : vector<8x1024xbf16>, vector<1024x768xbf16>, vector<8x768xf32> -> vector<8x768xf32>
    %c0_14 = arith.constant 0 : index
    %c0_15 = arith.constant 0 : index
    %18 = vector.load %arg7[%c0_14, %c0_15] : memref<1x768xf32, #tpu.memory_space<vmem>>, vector<1x768xf32>
    %19 = vector.broadcast %18 : vector<1x768xf32> to vector<8x768xf32>
    %20 = arith.addf %17, %19 : vector<8x768xf32>
    %21 = math.tanh %20 : vector<8x768xf32>
    %c0_16 = arith.constant 0 : index
    %c0_17 = arith.constant 0 : index
    %22 = vector.load %arg8[%c0_16, %c0_17] : memref<8x768xf32, #tpu.memory_space<vmem>>, vector<8x768xf32>
    tpu.vector_store %arg8[%c0_16, %c0_17], %21 {strides = array<i32>} : memref<8x768xf32, #tpu.memory_space<vmem>>, vector<8x768xf32>,
    return
  }
  func.func @transform_0(%arg0: i32) -> (i32, i32) {
    %c0_i32 = arith.constant 0 : i32
    %c0_i32_0 = arith.constant 0 : i32
    return %arg0, %c0_i32 : i32, i32
  }
  func.func @transform_1(%arg0: i32) -> (i32, i32) {
    %c0_i32 = arith.constant 0 : i32
    %c0_i32_0 = arith.constant 0 : i32
    return %arg0, %c0_i32 : i32, i32
  }
  func.func @transform_2(%arg0: i32) -> (i32, i32) {
    %c0_i32 = arith.constant 0 : i32
    %c0_i32_0 = arith.constant 0 : i32
    %c0_i32_1 = arith.constant 0 : i32
    return %c0_i32, %c0_i32_0 : i32, i32
  }
  func.func @transform_3(%arg0: i32) -> (i32, i32) {
    %c0_i32 = arith.constant 0 : i32
    %c0_i32_0 = arith.constant 0 : i32
    %c0_i32_1 = arith.constant 0 : i32
    return %c0_i32, %c0_i32_0 : i32, i32
  }
  func.func @transform_4(%arg0: i32) -> (i32, i32) {
    %c0_i32 = arith.constant 0 : i32
    %c0_i32_0 = arith.constant 0 : i32
    %c0_i32_1 = arith.constant 0 : i32
    return %c0_i32, %c0_i32_0 : i32, i32
  }
  func.func @transform_5(%arg0: i32) -> (i32, i32) {
    %c0_i32 = arith.constant 0 : i32
    %c0_i32_0 = arith.constant 0 : i32
    %c0_i32_1 = arith.constant 0 : i32
    return %c0_i32, %c0_i32_0 : i32, i32
  }
  func.func @transform_6(%arg0: i32) -> (i32, i32) {
    %c0_i32 = arith.constant 0 : i32
    %c0_i32_0 = arith.constant 0 : i32
    %c0_i32_1 = arith.constant 0 : i32
    return %c0_i32, %c0_i32_0 : i32, i32
  }
  func.func @transform_7(%arg0: i32) -> (i32, i32) {
    %c0_i32 = arith.constant 0 : i32
    %c0_i32_0 = arith.constant 0 : i32
    return %arg0, %c0_i32 : i32, i32
  }
}

</mosaic_0001>

<llo_original>
// kernel: netg_forward.1
$region0: #{netg_forward.1}
  #allocation0 [shape = 'u32[]', space=smem, size = 0x4, offset = 0x4, fixed_abs, tag = 'smem constant byte address 0x4 - core index']
  #allocation1 [shape = 'u32[144,128]{1,0:T(1,128)}', space=vmem, size = 0x12000, scoped, tag = 'internal scratch']
  %s0 = inlined_call_operand.vmem [shape: f32[8,128], index: 0, kind: input, shape index: {}]
  %s1 = inlined_call_operand.hbm [shape: f32[8,768], index: 1, kind: input, shape index: {}]
  %s2 = inlined_call_operand.hbm [shape: bf16[128,1024], index: 2, kind: input, shape index: {}]
  %s3 = inlined_call_operand.hbm [shape: bf16[768,1024], index: 3, kind: input, shape index: {}]
  %s4 = inlined_call_operand.hbm [shape: f32[1,1024], index: 4, kind: input, shape index: {}]
  %s5 = inlined_call_operand.hbm [shape: bf16[1024,768], index: 5, kind: input, shape index: {}]
  %s6 = inlined_call_operand.hbm [shape: f32[1,768], index: 6, kind: input, shape index: {}]
  %s7 = inlined_call_operand.hbm [shape: f32[8,768], index: 7, kind: output, shape index: {}]
  %s8 = sld [smem:[#allocation0]]
  $region62: #{netg_forward.1} parent=0
    _
  %s10 = ssub.s32 1, %s8
  %s11 = scalar_select 0, %s10, %s8
  $region1: #{netg_forward.1} parent=0
    #allocation2 [shape = 'u8[24576]{0}', space=vmem, size = 0x6000, scoped, tag = 'input window, operand 1, single buffered']
    #allocation3 [shape = 's32[1]{0}', space=sflag, size = 0x4, scoped, tag = 'scoped memory for netg_forward.1']
    #allocation4 [shape = 's32[1]{0}', space=sflag, size = 0x4, scoped, tag = 'scoped memory for netg_forward.1']
    #allocation5 [shape = 'u8[262144]{0}', space=vmem, size = 0x40000, scoped, tag = 'input window, operand 2, single buffered']
    #allocation6 [shape = 's32[1]{0}', space=sflag, size = 0x4, scoped, tag = 'scoped memory for netg_forward.1']
    #allocation7 [shape = 'u8[1572864]{0}', space=vmem, size = 0x180000, scoped, tag = 'input window, operand 3, single buffered']
    #allocation8 [shape = 'u8[4096]{0}', space=vmem, size = 0x1000, scoped, tag = 'input window, operand 4, single buffered']
    #allocation9 [shape = 's32[1]{0}', space=sflag, size = 0x4, scoped, tag = 'scoped memory for netg_forward.1']
    #allocation10 [shape = 'u8[1572864]{0}', space=vmem, size = 0x180000, scoped, tag = 'input window, operand 5, single buffered']
    #allocation11 [shape = 'u8[3072]{0}', space=vmem, size = 0xc00, scoped, tag = 'input window, operand 6, single buffered']
    #allocation12 [shape = 's32[1]{0}', space=sflag, size = 0x4, scoped, tag = 'scoped memory for netg_forward.1']
    #allocation13 [shape = 'u8[24576]{0}', space=vmem, size = 0x6000, scoped, tag = 'output window, operand 0, single buffered']
    %12 = vsyncpa [#allocation3], 0
    %13 = vsyncpa [#allocation6], 0
    %14 = vsyncpa [#allocation9], 0
    %15 = vsyncpa [#allocation12], 0
    %16 = vsyncpa [#allocation4], 0
    // Predicated region
    $region2: #{netg_forward.1} parent=1 // pred_check
      _
    $region3: #{netg_forward.1} parent=1 // pred_check_branch
      %18 = sbr.rel (0) target = $region5
    $region4: #{netg_forward.1} parent=1 // pred_region
      _
    $region5: #{netg_forward.1} parent=1 // pred_fallthru
      _
    // Predicated region
    $region6: #{netg_forward.1} parent=1 // pred_check
      _
    $region7: #{netg_forward.1} parent=1 // pred_check_branch
      %20 = sbr.rel (0) target = $region9
    $region8: #{netg_forward.1} parent=1 // pred_region
      %s22 = ssub.s32 768, 768
      %23 = vsyncadd [#allocation3], %s22
      %s25 = sshll.u32 [#allocation2], 4
      %s26 = int_to_ptr.vmem [resolvable:$true] %s25
      %28 = dma.hbm_to_vmem [thread:$0]  %s1, 768, %s26, [#allocation3]
    $region9: #{netg_forward.1} parent=1 // pred_fallthru
      _
    // Predicated region
    $region10: #{netg_forward.1} parent=1 // pred_check
      _
    $region11: #{netg_forward.1} parent=1 // pred_check_branch
      %30 = sbr.rel (0) target = $region13
    $region12: #{netg_forward.1} parent=1 // pred_region
      %s32 = ssub.s32 8192, 8192
      %33 = vsyncadd [#allocation6], %s32
      %s34 = sshll.u32 [#allocation5], 4
      %s35 = int_to_ptr.vmem [resolvable:$true] %s34
      %40 = dma.hbm_to_vmem [thread:$0]  %s2, 8192, %s35, [#allocation6], 512, 512, 32
    $region13: #{netg_forward.1} parent=1 // pred_fallthru
      _
    // Predicated region
    $region14: #{netg_forward.1} parent=1 // pred_check
      _
    $region15: #{netg_forward.1} parent=1 // pred_check_branch
      %42 = sbr.rel (0) target = $region17
    $region16: #{netg_forward.1} parent=1 // pred_region
      %s44 = ssub.s32 49152, 49152
      %45 = vsyncadd [#allocation6], %s44
      %s46 = sshll.u32 [#allocation7], 4
      %s47 = int_to_ptr.vmem [resolvable:$true] %s46
      %52 = dma.hbm_to_vmem [thread:$0]  %s3, 49152, %s47, [#allocation6], 512, 512, 32
    $region17: #{netg_forward.1} parent=1 // pred_fallthru
      _
    // Predicated region
    $region18: #{netg_forward.1} parent=1 // pred_check
      _
    $region19: #{netg_forward.1} parent=1 // pred_check_branch
      %54 = sbr.rel (0) target = $region21
    $region20: #{netg_forward.1} parent=1 // pred_region
      %s56 = ssub.s32 128, 128
      %57 = vsyncadd [#allocation9], %s56
      %s59 = sshll.u32 [#allocation8], 4
      %s60 = int_to_ptr.vmem [resolvable:$true] %s59
      %62 = dma.hbm_to_vmem [thread:$0]  %s4, 128, %s60, [#allocation9]
    $region21: #{netg_forward.1} parent=1 // pred_fallthru
      _
    // Predicated region
    $region22: #{netg_forward.1} parent=1 // pred_check
      _
    $region23: #{netg_forward.1} parent=1 // pred_check_branch
      %64 = sbr.rel (0) target = $region25
    $region24: #{netg_forward.1} parent=1 // pred_region
      %s66 = ssub.s32 49152, 49152
      %67 = vsyncadd [#allocation9], %s66
      %s68 = sshll.u32 [#allocation10], 4
      %s69 = int_to_ptr.vmem [resolvable:$true] %s68
      %74 = dma.hbm_to_vmem [thread:$0]  %s5, 49152, %s69, [#allocation9], 384, 384, 24
    $region25: #{netg_forward.1} parent=1 // pred_fallthru
      _
    // Predicated region
    $region26: #{netg_forward.1} parent=1 // pred_check
      _
    $region27: #{netg_forward.1} parent=1 // pred_check_branch
      %76 = sbr.rel (0) target = $region29
    $region28: #{netg_forward.1} parent=1 // pred_region
      %s78 = ssub.s32 96, 96
      %79 = vsyncadd [#allocation12], %s78
      %s81 = sshll.u32 [#allocation11], 4
      %s82 = int_to_ptr.vmem [resolvable:$true] %s81
      %84 = dma.hbm_to_vmem [thread:$0]  %s6, 96, %s82, [#allocation12]
    $region29: #{netg_forward.1} parent=1 // pred_fallthru
      _
    // Predicated region
    $region30: #{netg_forward.1} parent=1 // pred_check
      _
    $region31: #{netg_forward.1} parent=1 // pred_check_branch
      %86 = sbr.rel (0) target = $region33
    $region32: #{netg_forward.1} parent=1 // pred_region
      %87 = dma.done [#allocation3], 768
    $region33: #{netg_forward.1} parent=1 // pred_fallthru
      _
    // Predicated region
    $region34: #{netg_forward.1} parent=1 // pred_check
      _
    $region35: #{netg_forward.1} parent=1 // pred_check_branch
      %89 = sbr.rel (0) target = $region37
    $region36: #{netg_forward.1} parent=1 // pred_region
      %90 = dma.done [#allocation6], 8192
    $region37: #{netg_forward.1} parent=1 // pred_fallthru
      _
    // Predicated region
    $region38: #{netg_forward.1} parent=1 // pred_check
      _
    $region39: #{netg_forward.1} parent=1 // pred_check_branch
      %92 = sbr.rel (0) target = $region41
    $region40: #{netg_forward.1} parent=1 // pred_region
      %93 = dma.done [#allocation6], 49152
    $region41: #{netg_forward.1} parent=1 // pred_fallthru
      _
    // Predicated region
    $region42: #{netg_forward.1} parent=1 // pred_check
      _
    $region43: #{netg_forward.1} parent=1 // pred_check_branch
      %95 = sbr.rel (0) target = $region45
    $region44: #{netg_forward.1} parent=1 // pred_region
      %96 = dma.done [#allocation9], 128
    $region45: #{netg_forward.1} parent=1 // pred_fallthru
      _
    // Predicated region
    $region46: #{netg_forward.1} parent=1 // pred_check
      _
    $region47: #{netg_forward.1} parent=1 // pred_check_branch
      %98 = sbr.rel (0) target = $region49
    $region48: #{netg_forward.1} parent=1 // pred_region
      %99 = dma.done [#allocation9], 49152
    $region49: #{netg_forward.1} parent=1 // pred_fallthru
      _
    // Predicated region
    $region50: #{netg_forward.1} parent=1 // pred_check
      _
    $region51: #{netg_forward.1} parent=1 // pred_check_branch
      %101 = sbr.rel (0) target = $region53
    $region52: #{netg_forward.1} parent=1 // pred_region
      %102 = dma.done [#allocation12], 96
    $region53: #{netg_forward.1} parent=1 // pred_fallthru
      _
    %v104 = vld [vmem:[%s0] sm:$0xff]
    %v105 = vpack.c.bf16 %v104, %v104
    %v106 = vld [vmem:[#allocation2] sm:$0xff]
    %v107 = vld [vmem:[#allocation2 + $0x8] sm:$0xff]
    %v108 = vld [vmem:[#allocation2 + $0x10] sm:$0xff]
    %v109 = vld [vmem:[#allocation2 + $0x18] sm:$0xff]
    %v110 = vld [vmem:[#allocation2 + $0x20] sm:$0xff]
    %v111 = vld [vmem:[#allocation2 + $0x28] sm:$0xff]
    %v112 = vpack.c.bf16 %v106, %v106
    %v113 = vpack.c.bf16 %v107, %v107
    %v114 = vpack.c.bf16 %v108, %v108
    %v115 = vpack.c.bf16 %v109, %v109
    %v116 = vpack.c.bf16 %v110, %v110
    %v117 = vpack.c.bf16 %v111, %v111
    %v118 = vld [vmem:[#allocation5] sm:$0xff]
    %v119 = vld [vmem:[#allocation5 + $0x8] sm:$0xff]
    %v120 = vld [vmem:[#allocation5 + $0x10] sm:$0xff]
    %v121 = vld [vmem:[#allocation5 + $0x18] sm:$0xff]
    %v122 = vld [vmem:[#allocation5 + $0x20] sm:$0xff]
    %v123 = vld [vmem:[#allocation5 + $0x28] sm:$0xff]
    %v124 = vld [vmem:[#allocation5 + $0x30] sm:$0xff]
    %v125 = vld [vmem:[#allocation5 + $0x38] sm:$0xff]
    %v126 = vld [vmem:[#allocation5 + $0x40] sm:$0xff]
    %v127 = vld [vmem:[#allocation5 + $0x48] sm:$0xff]
    %v128 = vld [vmem:[#allocation5 + $0x50] sm:$0xff]
    %v129 = vld [vmem:[#allocation5 + $0x58] sm:$0xff]
    %v130 = vld [vmem:[#allocation5 + $0x60] sm:$0xff]
    %v131 = vld [vmem:[#allocation5 + $0x68] sm:$0xff]
    %v132 = vld [vmem:[#allocation5 + $0x70] sm:$0xff]
    %v133 = vld [vmem:[#allocation5 + $0x78] sm:$0xff]
    %v134 = vld [vmem:[#allocation5 + $0x80] sm:$0xff]
    %v135 = vld [vmem:[#allocation5 + $0x88] sm:$0xff]
    %v136 = vld [vmem:[#allocation5 + $0x90] sm:$0xff]
    %v137 = vld [vmem:[#allocation5 + $0x98] sm:$0xff]
    %v138 = vld [vmem:[#allocation5 + $0xa0] sm:$0xff]
    %v139 = vld [vmem:[#allocation5 + $0xa8] sm:$0xff]
    %v140 = vld [vmem:[#allocation5 + $0xb0] sm:$0xff]
    %v141 = vld [vmem:[#allocation5 + $0xb8] sm:$0xff]
    %v142 = vld [vmem:[#allocation5 + $0xc0] sm:$0xff]
    %v143 = vld [vmem:[#allocation5 + $0xc8] sm:$0xff]
    %v144 = vld [vmem:[#allocation5 + $0xd0] sm:$0xff]
    %v145 = vld [vmem:[#allocation5 + $0xd8] sm:$0xff]
    %v146 = vld [vmem:[#allocation5 + $0xe0] sm:$0xff]
    %v147 = vld [vmem:[#allocation5 + $0xe8] sm:$0xff]
    %v148 = vld [vmem:[#allocation5 + $0xf0] sm:$0xff]
    %v149 = vld [vmem:[#allocation5 + $0xf8] sm:$0xff]
    %v150 = vld [vmem:[#allocation5 + $0x100] sm:$0xff]
    %v151 = vld [vmem:[#allocation5 + $0x108] sm:$0xff]
    %v152 = vld [vmem:[#allocation5 + $0x110] sm:$0xff]
    %v153 = vld [vmem:[#allocation5 + $0x118] sm:$0xff]
    %v154 = vld [vmem:[#allocation5 + $0x120] sm:$0xff]
    %v155 = vld [vmem:[#allocation5 + $0x128] sm:$0xff]
    %v156 = vld [vmem:[#allocation5 + $0x130] sm:$0xff]
    %v157 = vld [vmem:[#allocation5 + $0x138] sm:$0xff]
    %v158 = vld [vmem:[#allocation5 + $0x140] sm:$0xff]
    %v159 = vld [vmem:[#allocation5 + $0x148] sm:$0xff]
    %v160 = vld [vmem:[#allocation5 + $0x150] sm:$0xff]
    %v161 = vld [vmem:[#allocation5 + $0x158] sm:$0xff]
    %v162 = vld [vmem:[#allocation5 + $0x160] sm:$0xff]
    %v163 = vld [vmem:[#allocation5 + $0x168] sm:$0xff]
    %v164 = vld [vmem:[#allocation5 + $0x170] sm:$0xff]
    %v165 = vld [vmem:[#allocation5 + $0x178] sm:$0xff]
    %v166 = vld [vmem:[#allocation5 + $0x180] sm:$0xff]
    %v167 = vld [vmem:[#allocation5 + $0x188] sm:$0xff]
    %v168 = vld [vmem:[#allocation5 + $0x190] sm:$0xff]
    %v169 = vld [vmem:[#allocation5 + $0x198] sm:$0xff]
    %v170 = vld [vmem:[#allocation5 + $0x1a0] sm:$0xff]
    %v171 = vld [vmem:[#allocation5 + $0x1a8] sm:$0xff]
    %v172 = vld [vmem:[#allocation5 + $0x1b0] sm:$0xff]
    %v173 = vld [vmem:[#allocation5 + $0x1b8] sm:$0xff]
    %v174 = vld [vmem:[#allocation5 + $0x1c0] sm:$0xff]
    %v175 = vld [vmem:[#allocation5 + $0x1c8] sm:$0xff]
    %v176 = vld [vmem:[#allocation5 + $0x1d0] sm:$0xff]
    %v177 = vld [vmem:[#allocation5 + $0x1d8] sm:$0xff]
    %v178 = vld [vmem:[#allocation5 + $0x1e0] sm:$0xff]
    %v179 = vld [vmem:[#allocation5 + $0x1e8] sm:$0xff]
    %v180 = vld [vmem:[#allocation5 + $0x1f0] sm:$0xff]
    %v181 = vld [vmem:[#allocation5 + $0x1f8] sm:$0xff]
    %v182 = vld [vmem:[#allocation7] sm:$0xff]
    %v183 = vld [vmem:[#allocation7 + $0x8] sm:$0xff]
    %v184 = vld [vmem:[#allocation7 + $0x10] sm:$0xff]
    %v185 = vld [vmem:[#allocation7 + $0x18] sm:$0xff]
    %v186 = vld [vmem:[#allocation7 + $0x20] sm:$0xff]
    %v187 = vld [vmem:[#allocation7 + $0x28] sm:$0xff]
    %v188 = vld [vmem:[#allocation7 + $0x30] sm:$0xff]
    %v189 = vld [vmem:[#allocation7 + $0x38] sm:$0xff]
    %v190 = vld [vmem:[#allocation7 + $0x40] sm:$0xff]
    %v191 = vld [vmem:[#allocation7 + $0x48] sm:$0xff]
    %v192 = vld [vmem:[#allocation7 + $0x50] sm:$0xff]
    %v193 = vld [vmem:[#allocation7 + $0x58] sm:$0xff]
    %v194 = vld [vmem:[#allocation7 + $0x60] sm:$0xff]
    %v195 = vld [vmem:[#allocation7 + $0x68] sm:$0xff]
    %v196 = vld [vmem:[#allocation7 + $0x70] sm:$0xff]
    %v197 = vld [vmem:[#allocation7 + $0x78] sm:$0xff]
    %v198 = vld [vmem:[#allocation7 + $0x80] sm:$0xff]
    %v199 = vld [vmem:[#allocation7 + $0x88] sm:$0xff]
    %v200 = vld [vmem:[#allocation7 + $0x90] sm:$0xff]
    %v201 = vld [vmem:[#allocation7 + $0x98] sm:$0xff]
    %v202 = vld [vmem:[#allocation7 + $0xa0] sm:$0xff]
    %v203 = vld [vmem:[#allocation7 + $0xa8] sm:$0xff]
    %v204 = vld [vmem:[#allocation7 + $0xb0] sm:$0xff]
    %v205 = vld [vmem:[#allocation7 + $0xb8] sm:$0xff]
    %v206 = vld [vmem:[#allocation7 + $0xc0] sm:$0xff]
    %v207 = vld [vmem:[#allocation7 + $0xc8] sm:$0xff]
    %v208 = vld [vmem:[#allocation7 + $0xd0] sm:$0xff]
    %v209 = vld [vmem:[#allocation7 + $0xd8] sm:$0xff]
    %v210 = vld [vmem:[#allocation7 + $0xe0] sm:$0xff]
    %v211 = vld [vmem:[#allocation7 + $0xe8] sm:$0xff]
    %v212 = vld [vmem:[#allocation7 + $0xf0] sm:$0xff]
    %v213 = vld [vmem:[#allocation7 + $0xf8] sm:$0xff]
    %v214 = vld [vmem:[#allocation7 + $0x100] sm:$0xff]
    %v215 = vld [vmem:[#allocation7 + $0x108] sm:$0xff]
    %v216 = vld [vmem:[#allocation7 + $0x110] sm:$0xff]
    %v217 = vld [vmem:[#allocation7 + $0x118] sm:$0xff]
    %v218 = vld [vmem:[#allocation7 + $0x120] sm:$0xff]
    %v219 = vld [vmem:[#allocation7 + $0x128] sm:$0xff]
    %v220 = vld [vmem:[#allocation7 + $0x130] sm:$0xff]
    %v221 = vld [vmem:[#allocation7 + $0x138] sm:$0xff]
    %v222 = vld [vmem:[#allocation7 + $0x140] sm:$0xff]
    %v223 = vld [vmem:[#allocation7 + $0x148] sm:$0xff]
    %v224 = vld [vmem:[#allocation7 + $0x150] sm:$0xff]
    %v225 = vld [vmem:[#allocation7 + $0x158] sm:$0xff]
    %v226 = vld [vmem:[#allocation7 + $0x160] sm:$0xff]
    %v227 = vld [vmem:[#allocation7 + $0x168] sm:$0xff]
    %v228 = vld [vmem:[#allocation7 + $0x170] sm:$0xff]
    %v229 = vld [vmem:[#allocation7 + $0x178] sm:$0xff]
    %v230 = vld [vmem:[#allocation7 + $0x180] sm:$0xff]
    %v231 = vld [vmem:[#allocation7 + $0x188] sm:$0xff]
    %v232 = vld [vmem:[#allocation7 + $0x190] sm:$0xff]
    %v233 = vld [vmem:[#allocation7 + $0x198] sm:$0xff]
    %v234 = vld [vmem:[#allocation7 + $0x1a0] sm:$0xff]
    %v235 = vld [vmem:[#allocation7 + $0x1a8] sm:$0xff]
    %v236 = vld [vmem:[#allocation7 + $0x1b0] sm:$0xff]
    %v237 = vld [vmem:[#allocation7 + $0x1b8] sm:$0xff]
    %v238 = vld [vmem:[#allocation7 + $0x1c0] sm:$0xff]
    %v239 = vld [vmem:[#allocation7 + $0x1c8] sm:$0xff]
    %v240 = vld [vmem:[#allocation7 + $0x1d0] sm:$0xff]
    %v241 = vld [vmem:[#allocation7 + $0x1d8] sm:$0xff]
    %v242 = vld [vmem:[#allocation7 + $0x1e0] sm:$0xff]
    %v243 = vld [vmem:[#allocation7 + $0x1e8] sm:$0xff]
    %v244 = vld [vmem:[#allocation7 + $0x1f0] sm:$0xff]
    %v245 = vld [vmem:[#allocation7 + $0x1f8] sm:$0xff]
    %v246 = vld [vmem:[#allocation7 + $0x200] sm:$0xff]
    %v247 = vld [vmem:[#allocation7 + $0x208] sm:$0xff]
    %v248 = vld [vmem:[#allocation7 + $0x210] sm:$0xff]
    %v249 = vld [vmem:[#allocation7 + $0x218] sm:$0xff]
    %v250 = vld [vmem:[#allocation7 + $0x220] sm:$0xff]
    %v251 = vld [vmem:[#allocation7 + $0x228] sm:$0xff]
    %v252 = vld [vmem:[#allocation7 + $0x230] sm:$0xff]
    %v253 = vld [vmem:[#allocation7 + $0x238] sm:$0xff]
    %v254 = vld [vmem:[#allocation7 + $0x240] sm:$0xff]
    %v255 = vld [vmem:[#allocation7 + $0x248] sm:$0xff]
    %v256 = vld [vmem:[#allocation7 + $0x250] sm:$0xff]
    %v257 = vld [vmem:[#allocation7 + $0x258] sm:$0xff]
    %v258 = vld [vmem:[#allocation7 + $0x260] sm:$0xff]
    %v259 = vld [vmem:[#allocation7 + $0x268] sm:$0xff]
    %v260 = vld [vmem:[#allocation7 + $0x270] sm:$0xff]
    %v261 = vld [vmem:[#allocation7 + $0x278] sm:$0xff]
    %v262 = vld [vmem:[#allocation7 + $0x280] sm:$0xff]
    %v263 = vld [vmem:[#allocation7 + $0x288] sm:$0xff]
    %v264 = vld [vmem:[#allocation7 + $0x290] sm:$0xff]
    %v265 = vld [vmem:[#allocation7 + $0x298] sm:$0xff]
    %v266 = vld [vmem:[#allocation7 + $0x2a0] sm:$0xff]
    %v267 = vld [vmem:[#allocation7 + $0x2a8] sm:$0xff]
    %v268 = vld [vmem:[#allocation7 + $0x2b0] sm:$0xff]
    %v269 = vld [vmem:[#allocation7 + $0x2b8] sm:$0xff]
    %v270 = vld [vmem:[#allocation7 + $0x2c0] sm:$0xff]
    %v271 = vld [vmem:[#allocation7 + $0x2c8] sm:$0xff]
    %v272 = vld [vmem:[#allocation7 + $0x2d0] sm:$0xff]
    %v273 = vld [vmem:[#allocation7 + $0x2d8] sm:$0xff]
    %v274 = vld [vmem:[#allocation7 + $0x2e0] sm:$0xff]
    %v275 = vld [vmem:[#allocation7 + $0x2e8] sm:$0xff]
    %v276 = vld [vmem:[#allocation7 + $0x2f0] sm:$0xff]
    %v277 = vld [vmem:[#allocation7 + $0x2f8] sm:$0xff]
    %v278 = vld [vmem:[#allocation7 + $0x300] sm:$0xff]
    %v279 = vld [vmem:[#allocation7 + $0x308] sm:$0xff]
    %v280 = vld [vmem:[#allocation7 + $0x310] sm:$0xff]
    %v281 = vld [vmem:[#allocation7 + $0x318] sm:$0xff]
    %v282 = vld [vmem:[#allocation7 + $0x320] sm:$0xff]
    %v283 = vld [vmem:[#allocation7 + $0x328] sm:$0xff]
    %v284 = vld [vmem:[#allocation7 + $0x330] sm:$0xff]
    %v285 = vld [vmem:[#allocation7 + $0x338] sm:$0xff]
    %v286 = vld [vmem:[#allocation7 + $0x340] sm:$0xff]
    %v287 = vld [vmem:[#allocation7 + $0x348] sm:$0xff]
    %v288 = vld [vmem:[#allocation7 + $0x350] sm:$0xff]
    %v289 = vld [vmem:[#allocation7 + $0x358] sm:$0xff]
    %v290 = vld [vmem:[#allocation7 + $0x360] sm:$0xff]
    %v291 = vld [vmem:[#allocation7 + $0x368] sm:$0xff]
    %v292 = vld [vmem:[#allocation7 + $0x370] sm:$0xff]
    %v293 = vld [vmem:[#allocation7 + $0x378] sm:$0xff]
    %v294 = vld [vmem:[#allocation7 + $0x380] sm:$0xff]
    %v295 = vld [vmem:[#allocation7 + $0x388] sm:$0xff]
    %v296 = vld [vmem:[#allocation7 + $0x390] sm:$0xff]
    %v297 = vld [vmem:[#allocation7 + $0x398] sm:$0xff]
    %v298 = vld [vmem:[#allocation7 + $0x3a0] sm:$0xff]
    %v299 = vld [vmem:[#allocation7 + $0x3a8] sm:$0xff]
    %v300 = vld [vmem:[#allocation7 + $0x3b0] sm:$0xff]
    %v301 = vld [vmem:[#allocation7 + $0x3b8] sm:$0xff]
    %v302 = vld [vmem:[#allocation7 + $0x3c0] sm:$0xff]
    %v303 = vld [vmem:[#allocation7 + $0x3c8] sm:$0xff]
    %v304 = vld [vmem:[#allocation7 + $0x3d0] sm:$0xff]
    %v305 = vld [vmem:[#allocation7 + $0x3d8] sm:$0xff]
    %v306 = vld [vmem:[#allocation7 + $0x3e0] sm:$0xff]
    %v307 = vld [vmem:[#allocation7 + $0x3e8] sm:$0xff]
    %v308 = vld [vmem:[#allocation7 + $0x3f0] sm:$0xff]
    %v309 = vld [vmem:[#allocation7 + $0x3f8] sm:$0xff]
    %v310 = vld [vmem:[#allocation7 + $0x400] sm:$0xff]
    %v311 = vld [vmem:[#allocation7 + $0x408] sm:$0xff]
    %v312 = vld [vmem:[#allocation7 + $0x410] sm:$0xff]
    %v313 = vld [vmem:[#allocation7 + $0x418] sm:$0xff]
    %v314 = vld [vmem:[#allocation7 + $0x420] sm:$0xff]
    %v315 = vld [vmem:[#allocation7 + $0x428] sm:$0xff]
    %v316 = vld [vmem:[#allocation7 + $0x430] sm:$0xff]
    %v317 = vld [vmem:[#allocation7 + $0x438] sm:$0xff]
    %v318 = vld [vmem:[#allocation7 + $0x440] sm:$0xff]
    %v319 = vld [vmem:[#allocation7 + $0x448] sm:$0xff]
    %v320 = vld [vmem:[#allocation7 + $0x450] sm:$0xff]
    %v321 = vld [vmem:[#allocation7 + $0x458] sm:$0xff]
    %v322 = vld [vmem:[#allocation7 + $0x460] sm:$0xff]
    %v323 = vld [vmem:[#allocation7 + $0x468] sm:$0xff]
    %v324 = vld [vmem:[#allocation7 + $0x470] sm:$0xff]
    %v325 = vld [vmem:[#allocation7 + $0x478] sm:$0xff]
    %v326 = vld [vmem:[#allocation7 + $0x480] sm:$0xff]
    %v327 = vld [vmem:[#allocation7 + $0x488] sm:$0xff]
    %v328 = vld [vmem:[#allocation7 + $0x490] sm:$0xff]
    %v329 = vld [vmem:[#allocation7 + $0x498] sm:$0xff]
    %v330 = vld [vmem:[#allocation7 + $0x4a0] sm:$0xff]
    %v331 = vld [vmem:[#allocation7 + $0x4a8] sm:$0xff]
    %v332 = vld [vmem:[#allocation7 + $0x4b0] sm:$0xff]
    %v333 = vld [vmem:[#allocation7 + $0x4b8] sm:$0xff]
    %v334 = vld [vmem:[#allocation7 + $0x4c0] sm:$0xff]
    %v335 = vld [vmem:[#allocation7 + $0x4c8] sm:$0xff]
    %v336 = vld [vmem:[#allocation7 + $0x4d0] sm:$0xff]
    %v337 = vld [vmem:[#allocation7 + $0x4d8] sm:$0xff]
    %v338 = vld [vmem:[#allocation7 + $0x4e0] sm:$0xff]
    %v339 = vld [vmem:[#allocation7 + $0x4e8] sm:$0xff]
    %v340 = vld [vmem:[#allocation7 + $0x4f0] sm:$0xff]
    %v341 = vld [vmem:[#allocation7 + $0x4f8] sm:$0xff]
    %v342 = vld [vmem:[#allocation7 + $0x500] sm:$0xff]
    %v343 = vld [vmem:[#allocation7 + $0x508] sm:$0xff]
    %v344 = vld [vmem:[#allocation7 + $0x510] sm:$0xff]
    %v345 = vld [vmem:[#allocation7 + $0x518] sm:$0xff]
    %v346 = vld [vmem:[#allocation7 + $0x520] sm:$0xff]
    %v347 = vld [vmem:[#allocation7 + $0x528] sm:$0xff]
    %v348 = vld [vmem:[#allocation7 + $0x530] sm:$0xff]
    %v349 = vld [vmem:[#allocation7 + $0x538] sm:$0xff]
    %v350 = vld [vmem:[#allocation7 + $0x540] sm:$0xff]
    %v351 = vld [vmem:[#allocation7 + $0x548] sm:$0xff]
    %v352 = vld [vmem:[#allocation7 + $0x550] sm:$0xff]
    %v353 = vld [vmem:[#allocation7 + $0x558] sm:$0xff]
    %v354 = vld [vmem:[#allocation7 + $0x560] sm:$0xff]
    %v355 = vld [vmem:[#allocation7 + $0x568] sm:$0xff]
    %v356 = vld [vmem:[#allocation7 + $0x570] sm:$0xff]
    %v357 = vld [vmem:[#allocation7 + $0x578] sm:$0xff]
    %v358 = vld [vmem:[#allocation7 + $0x580] sm:$0xff]
    %v359 = vld [vmem:[#allocation7 + $0x588] sm:$0xff]
    %v360 = vld [vmem:[#allocation7 + $0x590] sm:$0xff]
    %v361 = vld [vmem:[#allocation7 + $0x598] sm:$0xff]
    %v362 = vld [vmem:[#allocation7 + $0x5a0] sm:$0xff]
    %v363 = vld [vmem:[#allocation7 + $0x5a8] sm:$0xff]
    %v364 = vld [vmem:[#allocation7 + $0x5b0] sm:$0xff]
    %v365 = vld [vmem:[#allocation7 + $0x5b8] sm:$0xff]
    %v366 = vld [vmem:[#allocation7 + $0x5c0] sm:$0xff]
    %v367 = vld [vmem:[#allocation7 + $0x5c8] sm:$0xff]
    %v368 = vld [vmem:[#allocation7 + $0x5d0] sm:$0xff]
    %v369 = vld [vmem:[#allocation7 + $0x5d8] sm:$0xff]
    %v370 = vld [vmem:[#allocation7 + $0x5e0] sm:$0xff]
    %v371 = vld [vmem:[#allocation7 + $0x5e8] sm:$0xff]
    %v372 = vld [vmem:[#allocation7 + $0x5f0] sm:$0xff]
    %v373 = vld [vmem:[#allocation7 + $0x5f8] sm:$0xff]
    %v374 = vld [vmem:[#allocation7 + $0x600] sm:$0xff]
    %v375 = vld [vmem:[#allocation7 + $0x608] sm:$0xff]
    %v376 = vld [vmem:[#allocation7 + $0x610] sm:$0xff]
    %v377 = vld [vmem:[#allocation7 + $0x618] sm:$0xff]
    %v378 = vld [vmem:[#allocation7 + $0x620] sm:$0xff]
    %v379 = vld [vmem:[#allocation7 + $0x628] sm:$0xff]
    %v380 = vld [vmem:[#allocation7 + $0x630] sm:$0xff]
    %v381 = vld [vmem:[#allocation7 + $0x638] sm:$0xff]
    %v382 = vld [vmem:[#allocation7 + $0x640] sm:$0xff]
    %v383 = vld [vmem:[#allocation7 + $0x648] sm:$0xff]
    %v384 = vld [vmem:[#allocation7 + $0x650] sm:$0xff]
    %v385 = vld [vmem:[#allocation7 + $0x658] sm:$0xff]
    %v386 = vld [vmem:[#allocation7 + $0x660] sm:$0xff]
    %v387 = vld [vmem:[#allocation7 + $0x668] sm:$0xff]
    %v388 = vld [vmem:[#allocation7 + $0x670] sm:$0xff]
    %v389 = vld [vmem:[#allocation7 + $0x678] sm:$0xff]
    %v390 = vld [vmem:[#allocation7 + $0x680] sm:$0xff]
    %v391 = vld [vmem:[#allocation7 + $0x688] sm:$0xff]
    %v392 = vld [vmem:[#allocation7 + $0x690] sm:$0xff]
    %v393 = vld [vmem:[#allocation7 + $0x698] sm:$0xff]
    %v394 = vld [vmem:[#allocation7 + $0x6a0] sm:$0xff]
    %v395 = vld [vmem:[#allocation7 + $0x6a8] sm:$0xff]
    %v396 = vld [vmem:[#allocation7 + $0x6b0] sm:$0xff]
    %v397 = vld [vmem:[#allocation7 + $0x6b8] sm:$0xff]
    %v398 = vld [vmem:[#allocation7 + $0x6c0] sm:$0xff]
    %v399 = vld [vmem:[#allocation7 + $0x6c8] sm:$0xff]
    %v400 = vld [vmem:[#allocation7 + $0x6d0] sm:$0xff]
    %v401 = vld [vmem:[#allocation7 + $0x6d8] sm:$0xff]
    %v402 = vld [vmem:[#allocation7 + $0x6e0] sm:$0xff]
    %v403 = vld [vmem:[#allocation7 + $0x6e8] sm:$0xff]
    %v404 = vld [vmem:[#allocation7 + $0x6f0] sm:$0xff]
    %v405 = vld [vmem:[#allocation7 + $0x6f8] sm:$0xff]
    %v406 = vld [vmem:[#allocation7 + $0x700] sm:$0xff]
    %v407 = vld [vmem:[#allocation7 + $0x708] sm:$0xff]
    %v408 = vld [vmem:[#allocation7 + $0x710] sm:$0xff]
    %v409 = vld [vmem:[#allocation7 + $0x718] sm:$0xff]
    %v410 = vld [vmem:[#allocation7 + $0x720] sm:$0xff]
    %v411 = vld [vmem:[#allocation7 + $0x728] sm:$0xff]
    %v412 = vld [vmem:[#allocation7 + $0x730] sm:$0xff]
    %v413 = vld [vmem:[#allocation7 + $0x738] sm:$0xff]
    %v414 = vld [vmem:[#allocation7 + $0x740] sm:$0xff]
    %v415 = vld [vmem:[#allocation7 + $0x748] sm:$0xff]
    %v416 = vld [vmem:[#allocation7 + $0x750] sm:$0xff]
    %v417 = vld [vmem:[#allocation7 + $0x758] sm:$0xff]
    %v418 = vld [vmem:[#allocation7 + $0x760] sm:$0xff]
    %v419 = vld [vmem:[#allocation7 + $0x768] sm:$0xff]
    %v420 = vld [vmem:[#allocation7 + $0x770] sm:$0xff]
    %v421 = vld [vmem:[#allocation7 + $0x778] sm:$0xff]
    %v422 = vld [vmem:[#allocation7 + $0x780] sm:$0xff]
    %v423 = vld [vmem:[#allocation7 + $0x788] sm:$0xff]
    %v424 = vld [vmem:[#allocation7 + $0x790] sm:$0xff]
    %v425 = vld [vmem:[#allocation7 + $0x798] sm:$0xff]
    %v426 = vld [vmem:[#allocation7 + $0x7a0] sm:$0xff]
    %v427 = vld [vmem:[#allocation7 + $0x7a8] sm:$0xff]
    %v428 = vld [vmem:[#allocation7 + $0x7b0] sm:$0xff]
    %v429 = vld [vmem:[#allocation7 + $0x7b8] sm:$0xff]
    %v430 = vld [vmem:[#allocation7 + $0x7c0] sm:$0xff]
    %v431 = vld [vmem:[#allocation7 + $0x7c8] sm:$0xff]
    %v432 = vld [vmem:[#allocation7 + $0x7d0] sm:$0xff]
    %v433 = vld [vmem:[#allocation7 + $0x7d8] sm:$0xff]
    %v434 = vld [vmem:[#allocation7 + $0x7e0] sm:$0xff]
    %v435 = vld [vmem:[#allocation7 + $0x7e8] sm:$0xff]
    %v436 = vld [vmem:[#allocation7 + $0x7f0] sm:$0xff]
    %v437 = vld [vmem:[#allocation7 + $0x7f8] sm:$0xff]
    %v438 = vld [vmem:[#allocation7 + $0x800] sm:$0xff]
    %v439 = vld [vmem:[#allocation7 + $0x808] sm:$0xff]
    %v440 = vld [vmem:[#allocation7 + $0x810] sm:$0xff]
    %v441 = vld [vmem:[#allocation7 + $0x818] sm:$0xff]
    %v442 = vld [vmem:[#allocation7 + $0x820] sm:$0xff]
    %v443 = vld [vmem:[#allocation7 + $0x828] sm:$0xff]
    %v444 = vld [vmem:[#allocation7 + $0x830] sm:$0xff]
    %v445 = vld [vmem:[#allocation7 + $0x838] sm:$0xff]
    %v446 = vld [vmem:[#allocation7 + $0x840] sm:$0xff]
    %v447 = vld [vmem:[#allocation7 + $0x848] sm:$0xff]
    %v448 = vld [vmem:[#allocation7 + $0x850] sm:$0xff]
    %v449 = vld [vmem:[#allocation7 + $0x858] sm:$0xff]
    %v450 = vld [vmem:[#allocation7 + $0x860] sm:$0xff]
    %v451 = vld [vmem:[#allocation7 + $0x868] sm:$0xff]
    %v452 = vld [vmem:[#allocation7 + $0x870] sm:$0xff]
    %v453 = vld [vmem:[#allocation7 + $0x878] sm:$0xff]
    %v454 = vld [vmem:[#allocation7 + $0x880] sm:$0xff]
    %v455 = vld [vmem:[#allocation7 + $0x888] sm:$0xff]
    %v456 = vld [vmem:[#allocation7 + $0x890] sm:$0xff]
    %v457 = vld [vmem:[#allocation7 + $0x898] sm:$0xff]
    %v458 = vld [vmem:[#allocation7 + $0x8a0] sm:$0xff]
    %v459 = vld [vmem:[#allocation7 + $0x8a8] sm:$0xff]
    %v460 = vld [vmem:[#allocation7 + $0x8b0] sm:$0xff]
    %v461 = vld [vmem:[#allocation7 + $0x8b8] sm:$0xff]
    %v462 = vld [vmem:[#allocation7 + $0x8c0] sm:$0xff]
    %v463 = vld [vmem:[#allocation7 + $0x8c8] sm:$0xff]
    %v464 = vld [vmem:[#allocation7 + $0x8d0] sm:$0xff]
    %v465 = vld [vmem:[#allocation7 + $0x8d8] sm:$0xff]
    %v466 = vld [vmem:[#allocation7 + $0x8e0] sm:$0xff]
    %v467 = vld [vmem:[#allocation7 + $0x8e8] sm:$0xff]
    %v468 = vld [vmem:[#allocation7 + $0x8f0] sm:$0xff]
    %v469 = vld [vmem:[#allocation7 + $0x8f8] sm:$0xff]
    %v470 = vld [vmem:[#allocation7 + $0x900] sm:$0xff]
    %v471 = vld [vmem:[#allocation7 + $0x908] sm:$0xff]
    %v472 = vld [vmem:[#allocation7 + $0x910] sm:$0xff]
    %v473 = vld [vmem:[#allocation7 + $0x918] sm:$0xff]
    %v474 = vld [vmem:[#allocation7 + $0x920] sm:$0xff]
    %v475 = vld [vmem:[#allocation7 + $0x928] sm:$0xff]
    %v476 = vld [vmem:[#allocation7 + $0x930] sm:$0xff]
    %v477 = vld [vmem:[#allocation7 + $0x938] sm:$0xff]
    %v478 = vld [vmem:[#allocation7 + $0x940] sm:$0xff]
    %v479 = vld [vmem:[#allocation7 + $0x948] sm:$0xff]
    %v480 = vld [vmem:[#allocation7 + $0x950] sm:$0xff]
    %v481 = vld [vmem:[#allocation7 + $0x958] sm:$0xff]
    %v482 = vld [vmem:[#allocation7 + $0x960] sm:$0xff]
    %v483 = vld [vmem:[#allocation7 + $0x968] sm:$0xff]
    %v484 = vld [vmem:[#allocation7 + $0x970] sm:$0xff]
    %v485 = vld [vmem:[#allocation7 + $0x978] sm:$0xff]
    %v486 = vld [vmem:[#allocation7 + $0x980] sm:$0xff]
    %v487 = vld [vmem:[#allocation7 + $0x988] sm:$0xff]
    %v488 = vld [vmem:[#allocation7 + $0x990] sm:$0xff]
    %v489 = vld [vmem:[#allocation7 + $0x998] sm:$0xff]
    %v490 = vld [vmem:[#allocation7 + $0x9a0] sm:$0xff]
    %v491 = vld [vmem:[#allocation7 + $0x9a8] sm:$0xff]
    %v492 = vld [vmem:[#allocation7 + $0x9b0] sm:$0xff]
    %v493 = vld [vmem:[#allocation7 + $0x9b8] sm:$0xff]
    %v494 = vld [vmem:[#allocation7 + $0x9c0] sm:$0xff]
    %v495 = vld [vmem:[#allocation7 + $0x9c8] sm:$0xff]
    %v496 = vld [vmem:[#allocation7 + $0x9d0] sm:$0xff]
    %v497 = vld [vmem:[#allocation7 + $0x9d8] sm:$0xff]
    %v498 = vld [vmem:[#allocation7 + $0x9e0] sm:$0xff]
    %v499 = vld [vmem:[#allocation7 + $0x9e8] sm:$0xff]
    %v500 = vld [vmem:[#allocation7 + $0x9f0] sm:$0xff]
    %v501 = vld [vmem:[#allocation7 + $0x9f8] sm:$0xff]
    %v502 = vld [vmem:[#allocation7 + $0xa00] sm:$0xff]
    %v503 = vld [vmem:[#allocation7 + $0xa08] sm:$0xff]
    %v504 = vld [vmem:[#allocation7 + $0xa10] sm:$0xff]
    %v505 = vld [vmem:[#allocation7 + $0xa18] sm:$0xff]
    %v506 = vld [vmem:[#allocation7 + $0xa20] sm:$0xff]
    %v507 = vld [vmem:[#allocation7 + $0xa28] sm:$0xff]
    %v508 = vld [vmem:[#allocation7 + $0xa30] sm:$0xff]
    %v509 = vld [vmem:[#allocation7 + $0xa38] sm:$0xff]
    %v510 = vld [vmem:[#allocation7 + $0xa40] sm:$0xff]
    %v511 = vld [vmem:[#allocation7 + $0xa48] sm:$0xff]
    %v512 = vld [vmem:[#allocation7 + $0xa50] sm:$0xff]
    %v513 = vld [vmem:[#allocation7 + $0xa58] sm:$0xff]
    %v514 = vld [vmem:[#allocation7 + $0xa60] sm:$0xff]
    %v515 = vld [vmem:[#allocation7 + $0xa68] sm:$0xff]
    %v516 = vld [vmem:[#allocation7 + $0xa70] sm:$0xff]
    %v517 = vld [vmem:[#allocation7 + $0xa78] sm:$0xff]
    %v518 = vld [vmem:[#allocation7 + $0xa80] sm:$0xff]
    %v519 = vld [vmem:[#allocation7 + $0xa88] sm:$0xff]
    %v520 = vld [vmem:[#allocation7 + $0xa90] sm:$0xff]
    %v521 = vld [vmem:[#allocation7 + $0xa98] sm:$0xff]
    %v522 = vld [vmem:[#allocation7 + $0xaa0] sm:$0xff]
    %v523 = vld [vmem:[#allocation7 + $0xaa8] sm:$0xff]
    %v524 = vld [vmem:[#allocation7 + $0xab0] sm:$0xff]
    %v525 = vld [vmem:[#allocation7 + $0xab8] sm:$0xff]
    %v526 = vld [vmem:[#allocation7 + $0xac0] sm:$0xff]
    %v527 = vld [vmem:[#allocation7 + $0xac8] sm:$0xff]
    %v528 = vld [vmem:[#allocation7 + $0xad0] sm:$0xff]
    %v529 = vld [vmem:[#allocation7 + $0xad8] sm:$0xff]
    %v530 = vld [vmem:[#allocation7 + $0xae0] sm:$0xff]
    %v531 = vld [vmem:[#allocation7 + $0xae8] sm:$0xff]
    %v532 = vld [vmem:[#allocation7 + $0xaf0] sm:$0xff]
    %v533 = vld [vmem:[#allocation7 + $0xaf8] sm:$0xff]
    %v534 = vld [vmem:[#allocation7 + $0xb00] sm:$0xff]
    %v535 = vld [vmem:[#allocation7 + $0xb08] sm:$0xff]
    %v536 = vld [vmem:[#allocation7 + $0xb10] sm:$0xff]
    %v537 = vld [vmem:[#allocation7 + $0xb18] sm:$0xff]
    %v538 = vld [vmem:[#allocation7 + $0xb20] sm:$0xff]
    %v539 = vld [vmem:[#allocation7 + $0xb28] sm:$0xff]
    %v540 = vld [vmem:[#allocation7 + $0xb30] sm:$0xff]
    %v541 = vld [vmem:[#allocation7 + $0xb38] sm:$0xff]
    %v542 = vld [vmem:[#allocation7 + $0xb40] sm:$0xff]
    %v543 = vld [vmem:[#allocation7 + $0xb48] sm:$0xff]
    %v544 = vld [vmem:[#allocation7 + $0xb50] sm:$0xff]
    %v545 = vld [vmem:[#allocation7 + $0xb58] sm:$0xff]
    %v546 = vld [vmem:[#allocation7 + $0xb60] sm:$0xff]
    %v547 = vld [vmem:[#allocation7 + $0xb68] sm:$0xff]
    %v548 = vld [vmem:[#allocation7 + $0xb70] sm:$0xff]
    %v549 = vld [vmem:[#allocation7 + $0xb78] sm:$0xff]
    %v550 = vld [vmem:[#allocation7 + $0xb80] sm:$0xff]
    %v551 = vld [vmem:[#allocation7 + $0xb88] sm:$0xff]
    %v552 = vld [vmem:[#allocation7 + $0xb90] sm:$0xff]
    %v553 = vld [vmem:[#allocation7 + $0xb98] sm:$0xff]
    %v554 = vld [vmem:[#allocation7 + $0xba0] sm:$0xff]
    %v555 = vld [vmem:[#allocation7 + $0xba8] sm:$0xff]
    %v556 = vld [vmem:[#allocation7 + $0xbb0] sm:$0xff]
    %v557 = vld [vmem:[#allocation7 + $0xbb8] sm:$0xff]
    %v558 = vld [vmem:[#allocation7 + $0xbc0] sm:$0xff]
    %v559 = vld [vmem:[#allocation7 + $0xbc8] sm:$0xff]
    %v560 = vld [vmem:[#allocation7 + $0xbd0] sm:$0xff]
    %v561 = vld [vmem:[#allocation7 + $0xbd8] sm:$0xff]
    %v562 = vld [vmem:[#allocation7 + $0xbe0] sm:$0xff]
    %v563 = vld [vmem:[#allocation7 + $0xbe8] sm:$0xff]
    %v564 = vld [vmem:[#allocation7 + $0xbf0] sm:$0xff]
    %v565 = vld [vmem:[#allocation7 + $0xbf8] sm:$0xff]
    %v950 = vunpack.c.l.b16 %v182
    %v951 = vunpack.c.h.b16 %v182
    %v952 = vunpack.c.l.b16 %v183
    %v953 = vunpack.c.h.b16 %v183
    %v954 = vunpack.c.l.b16 %v184
    %v955 = vunpack.c.h.b16 %v184
    %v956 = vunpack.c.l.b16 %v185
    %v957 = vunpack.c.h.b16 %v185
    %v958 = vunpack.c.l.b16 %v186
    %v959 = vunpack.c.h.b16 %v186
    %v960 = vunpack.c.l.b16 %v187
    %v961 = vunpack.c.h.b16 %v187
    %v962 = vunpack.c.l.b16 %v188
    %v963 = vunpack.c.h.b16 %v188
    %v964 = vunpack.c.l.b16 %v189
    %v965 = vunpack.c.h.b16 %v189
    %v966 = vunpack.c.l.b16 %v190
    %v967 = vunpack.c.h.b16 %v190
    %v968 = vunpack.c.l.b16 %v191
    %v969 = vunpack.c.h.b16 %v191
    %v970 = vunpack.c.l.b16 %v192
    %v971 = vunpack.c.h.b16 %v192
    %v972 = vunpack.c.l.b16 %v193
    %v973 = vunpack.c.h.b16 %v193
    %v974 = vunpack.c.l.b16 %v194
    %v975 = vunpack.c.h.b16 %v194
    %v976 = vunpack.c.l.b16 %v195
    %v977 = vunpack.c.h.b16 %v195
    %v978 = vunpack.c.l.b16 %v196
    %v979 = vunpack.c.h.b16 %v196
    %v980 = vunpack.c.l.b16 %v197
    %v981 = vunpack.c.h.b16 %v197
    %v982 = vunpack.c.l.b16 %v198
    %v983 = vunpack.c.h.b16 %v198
    %v984 = vunpack.c.l.b16 %v199
    %v985 = vunpack.c.h.b16 %v199
    %v986 = vunpack.c.l.b16 %v200
    %v987 = vunpack.c.h.b16 %v200
    %v988 = vunpack.c.l.b16 %v201
    %v989 = vunpack.c.h.b16 %v201
    %v990 = vunpack.c.l.b16 %v202
    %v991 = vunpack.c.h.b16 %v202
    %v992 = vunpack.c.l.b16 %v203
    %v993 = vunpack.c.h.b16 %v203
    %v994 = vunpack.c.l.b16 %v204
    %v995 = vunpack.c.h.b16 %v204
    %v996 = vunpack.c.l.b16 %v205
    %v997 = vunpack.c.h.b16 %v205
    %v998 = vunpack.c.l.b16 %v206
    %v999 = vunpack.c.h.b16 %v206
    %v1000 = vunpack.c.l.b16 %v207
    %v1001 = vunpack.c.h.b16 %v207
    %v1002 = vunpack.c.l.b16 %v208
    %v1003 = vunpack.c.h.b16 %v208
    %v1004 = vunpack.c.l.b16 %v209
    %v1005 = vunpack.c.h.b16 %v209
    %v1006 = vunpack.c.l.b16 %v210
    %v1007 = vunpack.c.h.b16 %v210
    %v1008 = vunpack.c.l.b16 %v211
    %v1009 = vunpack.c.h.b16 %v211
    %v1010 = vunpack.c.l.b16 %v212
    %v1011 = vunpack.c.h.b16 %v212
    %v1012 = vunpack.c.l.b16 %v213
    %v1013 = vunpack.c.h.b16 %v213
    %v1014 = vunpack.c.l.b16 %v214
    %v1015 = vunpack.c.h.b16 %v214
    %v1016 = vunpack.c.l.b16 %v215
    %v1017 = vunpack.c.h.b16 %v215
    %v1018 = vunpack.c.l.b16 %v216
    %v1019 = vunpack.c.h.b16 %v216
    %v1020 = vunpack.c.l.b16 %v217
    %v1021 = vunpack.c.h.b16 %v217
    %v1022 = vunpack.c.l.b16 %v218
    %v1023 = vunpack.c.h.b16 %v218
    %v1024 = vunpack.c.l.b16 %v219
    %v1025 = vunpack.c.h.b16 %v219
    %v1026 = vunpack.c.l.b16 %v220
    %v1027 = vunpack.c.h.b16 %v220
    %v1028 = vunpack.c.l.b16 %v221
    %v1029 = vunpack.c.h.b16 %v221
    %v1030 = vunpack.c.l.b16 %v222
    %v1031 = vunpack.c.h.b16 %v222
    %v1032 = vunpack.c.l.b16 %v223
    %v1033 = vunpack.c.h.b16 %v223
    %v1034 = vunpack.c.l.b16 %v224
    %v1035 = vunpack.c.h.b16 %v224
    %v1036 = vunpack.c.l.b16 %v225
    %v1037 = vunpack.c.h.b16 %v225
    %v1038 = vunpack.c.l.b16 %v226
    %v1039 = vunpack.c.h.b16 %v226
    %v1040 = vunpack.c.l.b16 %v227
    %v1041 = vunpack.c.h.b16 %v227
    %v1042 = vunpack.c.l.b16 %v228
    %v1043 = vunpack.c.h.b16 %v228
    %v1044 = vunpack.c.l.b16 %v229
    %v1045 = vunpack.c.h.b16 %v229
    %v1046 = vunpack.c.l.b16 %v230
    %v1047 = vunpack.c.h.b16 %v230
    %v1048 = vunpack.c.l.b16 %v231
    %v1049 = vunpack.c.h.b16 %v231
    %v1050 = vunpack.c.l.b16 %v232
    %v1051 = vunpack.c.h.b16 %v232
    %v1052 = vunpack.c.l.b16 %v233
    %v1053 = vunpack.c.h.b16 %v233
    %v1054 = vunpack.c.l.b16 %v234
    %v1055 = vunpack.c.h.b16 %v234
    %v1056 = vunpack.c.l.b16 %v235
    %v1057 = vunpack.c.h.b16 %v235
    %v1058 = vunpack.c.l.b16 %v236
    %v1059 = vunpack.c.h.b16 %v236
    %v1060 = vunpack.c.l.b16 %v237
    %v1061 = vunpack.c.h.b16 %v237
    %v1062 = vunpack.c.l.b16 %v238
    %v1063 = vunpack.c.h.b16 %v238
    %v1064 = vunpack.c.l.b16 %v239
    %v1065 = vunpack.c.h.b16 %v239
    %v1066 = vunpack.c.l.b16 %v240
    %v1067 = vunpack.c.h.b16 %v240
    %v1068 = vunpack.c.l.b16 %v241
    %v1069 = vunpack.c.h.b16 %v241
    %v1070 = vunpack.c.l.b16 %v242
    %v1071 = vunpack.c.h.b16 %v242
    %v1072 = vunpack.c.l.b16 %v243
    %v1073 = vunpack.c.h.b16 %v243
    %v1074 = vunpack.c.l.b16 %v244
    %v1075 = vunpack.c.h.b16 %v244
    %v1076 = vunpack.c.l.b16 %v245
    %v1077 = vunpack.c.h.b16 %v245
    %v1078 = vunpack.c.l.b16 %v246
    %v1079 = vunpack.c.h.b16 %v246
    %v1080 = vunpack.c.l.b16 %v247
    %v1081 = vunpack.c.h.b16 %v247
    %v1082 = vunpack.c.l.b16 %v248
    %v1083 = vunpack.c.h.b16 %v248
    %v1084 = vunpack.c.l.b16 %v249
    %v1085 = vunpack.c.h.b16 %v249
    %v1086 = vunpack.c.l.b16 %v250
    %v1087 = vunpack.c.h.b16 %v250
    %v1088 = vunpack.c.l.b16 %v251
    %v1089 = vunpack.c.h.b16 %v251
    %v1090 = vunpack.c.l.b16 %v252
    %v1091 = vunpack.c.h.b16 %v252
    %v1092 = vunpack.c.l.b16 %v253
    %v1093 = vunpack.c.h.b16 %v253
    %v1094 = vunpack.c.l.b16 %v254
    %v1095 = vunpack.c.h.b16 %v254
    %v1096 = vunpack.c.l.b16 %v255
    %v1097 = vunpack.c.h.b16 %v255
    %v1098 = vunpack.c.l.b16 %v256
    %v1099 = vunpack.c.h.b16 %v256
    %v1100 = vunpack.c.l.b16 %v257
    %v1101 = vunpack.c.h.b16 %v257
    %v1102 = vunpack.c.l.b16 %v258
    %v1103 = vunpack.c.h.b16 %v258
    %v1104 = vunpack.c.l.b16 %v259
    %v1105 = vunpack.c.h.b16 %v259
    %v1106 = vunpack.c.l.b16 %v260
    %v1107 = vunpack.c.h.b16 %v260
    %v1108 = vunpack.c.l.b16 %v261
    %v1109 = vunpack.c.h.b16 %v261
    %v1110 = vunpack.c.l.b16 %v262
    %v1111 = vunpack.c.h.b16 %v262
    %v1112 = vunpack.c.l.b16 %v263
    %v1113 = vunpack.c.h.b16 %v263
    %v1114 = vunpack.c.l.b16 %v264
    %v1115 = vunpack.c.h.b16 %v264
    %v1116 = vunpack.c.l.b16 %v265
    %v1117 = vunpack.c.h.b16 %v265
    %v1118 = vunpack.c.l.b16 %v266
    %v1119 = vunpack.c.h.b16 %v266
    %v1120 = vunpack.c.l.b16 %v267
    %v1121 = vunpack.c.h.b16 %v267
    %v1122 = vunpack.c.l.b16 %v268
    %v1123 = vunpack.c.h.b16 %v268
    %v1124 = vunpack.c.l.b16 %v269
    %v1125 = vunpack.c.h.b16 %v269
    %v1126 = vunpack.c.l.b16 %v270
    %v1127 = vunpack.c.h.b16 %v270
    %v1128 = vunpack.c.l.b16 %v271
    %v1129 = vunpack.c.h.b16 %v271
    %v1130 = vunpack.c.l.b16 %v272
    %v1131 = vunpack.c.h.b16 %v272
    %v1132 = vunpack.c.l.b16 %v273
    %v1133 = vunpack.c.h.b16 %v273
    %v1134 = vunpack.c.l.b16 %v274
    %v1135 = vunpack.c.h.b16 %v274
    %v1136 = vunpack.c.l.b16 %v275
    %v1137 = vunpack.c.h.b16 %v275
    %v1138 = vunpack.c.l.b16 %v276
    %v1139 = vunpack.c.h.b16 %v276
    %v1140 = vunpack.c.l.b16 %v277
    %v1141 = vunpack.c.h.b16 %v277
    %v1142 = vunpack.c.l.b16 %v278
    %v1143 = vunpack.c.h.b16 %v278
    %v1144 = vunpack.c.l.b16 %v279
    %v1145 = vunpack.c.h.b16 %v279
    %v1146 = vunpack.c.l.b16 %v280
    %v1147 = vunpack.c.h.b16 %v280
    %v1148 = vunpack.c.l.b16 %v281
    %v1149 = vunpack.c.h.b16 %v281
    %v1150 = vunpack.c.l.b16 %v282
    %v1151 = vunpack.c.h.b16 %v282
    %v1152 = vunpack.c.l.b16 %v283
    %v1153 = vunpack.c.h.b16 %v283
    %v1154 = vunpack.c.l.b16 %v284
    %v1155 = vunpack.c.h.b16 %v284
    %v1156 = vunpack.c.l.b16 %v285
    %v1157 = vunpack.c.h.b16 %v285
    %v1158 = vunpack.c.l.b16 %v286
    %v1159 = vunpack.c.h.b16 %v286
    %v1160 = vunpack.c.l.b16 %v287
    %v1161 = vunpack.c.h.b16 %v287
    %v1162 = vunpack.c.l.b16 %v288
    %v1163 = vunpack.c.h.b16 %v288
    %v1164 = vunpack.c.l.b16 %v289
    %v1165 = vunpack.c.h.b16 %v289
    %v1166 = vunpack.c.l.b16 %v290
    %v1167 = vunpack.c.h.b16 %v290
    %v1168 = vunpack.c.l.b16 %v291
    %v1169 = vunpack.c.h.b16 %v291
    %v1170 = vunpack.c.l.b16 %v292
    %v1171 = vunpack.c.h.b16 %v292
    %v1172 = vunpack.c.l.b16 %v293
    %v1173 = vunpack.c.h.b16 %v293
    %v1174 = vunpack.c.l.b16 %v294
    %v1175 = vunpack.c.h.b16 %v294
    %v1176 = vunpack.c.l.b16 %v295
    %v1177 = vunpack.c.h.b16 %v295
    %v1178 = vunpack.c.l.b16 %v296
    %v1179 = vunpack.c.h.b16 %v296
    %v1180 = vunpack.c.l.b16 %v297
    %v1181 = vunpack.c.h.b16 %v297
    %v1182 = vunpack.c.l.b16 %v298
    %v1183 = vunpack.c.h.b16 %v298
    %v1184 = vunpack.c.l.b16 %v299
    %v1185 = vunpack.c.h.b16 %v299
    %v1186 = vunpack.c.l.b16 %v300
    %v1187 = vunpack.c.h.b16 %v300
    %v1188 = vunpack.c.l.b16 %v301
    %v1189 = vunpack.c.h.b16 %v301
    %v1190 = vunpack.c.l.b16 %v302
    %v1191 = vunpack.c.h.b16 %v302
    %v1192 = vunpack.c.l.b16 %v303
    %v1193 = vunpack.c.h.b16 %v303
    %v1194 = vunpack.c.l.b16 %v304
    %v1195 = vunpack.c.h.b16 %v304
    %v1196 = vunpack.c.l.b16 %v305
    %v1197 = vunpack.c.h.b16 %v305
    %v1198 = vunpack.c.l.b16 %v306
    %v1199 = vunpack.c.h.b16 %v306
    %v1200 = vunpack.c.l.b16 %v307
    %v1201 = vunpack.c.h.b16 %v307
    %v1202 = vunpack.c.l.b16 %v308
    %v1203 = vunpack.c.h.b16 %v308
    %v1204 = vunpack.c.l.b16 %v309
    %v1205 = vunpack.c.h.b16 %v309
    %v1206 = vunpack.c.l.b16 %v310
    %v1207 = vunpack.c.h.b16 %v310
    %v1208 = vunpack.c.l.b16 %v311
    %v1209 = vunpack.c.h.b16 %v311
    %v1210 = vunpack.c.l.b16 %v312
    %v1211 = vunpack.c.h.b16 %v312
    %v1212 = vunpack.c.l.b16 %v313
    %v1213 = vunpack.c.h.b16 %v313
    %v1214 = vunpack.c.l.b16 %v314
    %v1215 = vunpack.c.h.b16 %v314
    %v1216 = vunpack.c.l.b16 %v315
    %v1217 = vunpack.c.h.b16 %v315
    %v1218 = vunpack.c.l.b16 %v316
    %v1219 = vunpack.c.h.b16 %v316
    %v1220 = vunpack.c.l.b16 %v317
    %v1221 = vunpack.c.h.b16 %v317
    %v1222 = vunpack.c.l.b16 %v318
    %v1223 = vunpack.c.h.b16 %v318
    %v1224 = vunpack.c.l.b16 %v319
    %v1225 = vunpack.c.h.b16 %v319
    %v1226 = vunpack.c.l.b16 %v320
    %v1227 = vunpack.c.h.b16 %v320
    %v1228 = vunpack.c.l.b16 %v321
    %v1229 = vunpack.c.h.b16 %v321
    %v1230 = vunpack.c.l.b16 %v322
    %v1231 = vunpack.c.h.b16 %v322
    %v1232 = vunpack.c.l.b16 %v323
    %v1233 = vunpack.c.h.b16 %v323
    %v1234 = vunpack.c.l.b16 %v324
    %v1235 = vunpack.c.h.b16 %v324
    %v1236 = vunpack.c.l.b16 %v325
    %v1237 = vunpack.c.h.b16 %v325
    %v1238 = vunpack.c.l.b16 %v326
    %v1239 = vunpack.c.h.b16 %v326
    %v1240 = vunpack.c.l.b16 %v327
    %v1241 = vunpack.c.h.b16 %v327
    %v1242 = vunpack.c.l.b16 %v328
    %v1243 = vunpack.c.h.b16 %v328
    %v1244 = vunpack.c.l.b16 %v329
    %v1245 = vunpack.c.h.b16 %v329
    %v1246 = vunpack.c.l.b16 %v330
    %v1247 = vunpack.c.h.b16 %v330
    %v1248 = vunpack.c.l.b16 %v331
    %v1249 = vunpack.c.h.b16 %v331
    %v1250 = vunpack.c.l.b16 %v332
    %v1251 = vunpack.c.h.b16 %v332
    %v1252 = vunpack.c.l.b16 %v333
    %v1253 = vunpack.c.h.b16 %v333
    %v1254 = vunpack.c.l.b16 %v334
    %v1255 = vunpack.c.h.b16 %v334
    %v1256 = vunpack.c.l.b16 %v335
    %v1257 = vunpack.c.h.b16 %v335
    %v1258 = vunpack.c.l.b16 %v336
    %v1259 = vunpack.c.h.b16 %v336
    %v1260 = vunpack.c.l.b16 %v337
    %v1261 = vunpack.c.h.b16 %v337
    %v1262 = vunpack.c.l.b16 %v338
    %v1263 = vunpack.c.h.b16 %v338
    %v1264 = vunpack.c.l.b16 %v339
    %v1265 = vunpack.c.h.b16 %v339
    %v1266 = vunpack.c.l.b16 %v340
    %v1267 = vunpack.c.h.b16 %v340
    %v1268 = vunpack.c.l.b16 %v341
    %v1269 = vunpack.c.h.b16 %v341
    %v1270 = vunpack.c.l.b16 %v342
    %v1271 = vunpack.c.h.b16 %v342
    %v1272 = vunpack.c.l.b16 %v343
    %v1273 = vunpack.c.h.b16 %v343
    %v1274 = vunpack.c.l.b16 %v344
    %v1275 = vunpack.c.h.b16 %v344
    %v1276 = vunpack.c.l.b16 %v345
    %v1277 = vunpack.c.h.b16 %v345
    %v1278 = vunpack.c.l.b16 %v346
    %v1279 = vunpack.c.h.b16 %v346
    %v1280 = vunpack.c.l.b16 %v347
    %v1281 = vunpack.c.h.b16 %v347
    %v1282 = vunpack.c.l.b16 %v348
    %v1283 = vunpack.c.h.b16 %v348
    %v1284 = vunpack.c.l.b16 %v349
    %v1285 = vunpack.c.h.b16 %v349
    %v1286 = vunpack.c.l.b16 %v350
    %v1287 = vunpack.c.h.b16 %v350
    %v1288 = vunpack.c.l.b16 %v351
    %v1289 = vunpack.c.h.b16 %v351
    %v1290 = vunpack.c.l.b16 %v352
    %v1291 = vunpack.c.h.b16 %v352
    %v1292 = vunpack.c.l.b16 %v353
    %v1293 = vunpack.c.h.b16 %v353
    %v1294 = vunpack.c.l.b16 %v354
    %v1295 = vunpack.c.h.b16 %v354
    %v1296 = vunpack.c.l.b16 %v355
    %v1297 = vunpack.c.h.b16 %v355
    %v1298 = vunpack.c.l.b16 %v356
    %v1299 = vunpack.c.h.b16 %v356
    %v1300 = vunpack.c.l.b16 %v357
    %v1301 = vunpack.c.h.b16 %v357
    %v1302 = vunpack.c.l.b16 %v358
    %v1303 = vunpack.c.h.b16 %v358
    %v1304 = vunpack.c.l.b16 %v359
    %v1305 = vunpack.c.h.b16 %v359
    %v1306 = vunpack.c.l.b16 %v360
    %v1307 = vunpack.c.h.b16 %v360
    %v1308 = vunpack.c.l.b16 %v361
    %v1309 = vunpack.c.h.b16 %v361
    %v1310 = vunpack.c.l.b16 %v362
    %v1311 = vunpack.c.h.b16 %v362
    %v1312 = vunpack.c.l.b16 %v363
    %v1313 = vunpack.c.h.b16 %v363
    %v1314 = vunpack.c.l.b16 %v364
    %v1315 = vunpack.c.h.b16 %v364
    %v1316 = vunpack.c.l.b16 %v365
    %v1317 = vunpack.c.h.b16 %v365
    %v1318 = vunpack.c.l.b16 %v366
    %v1319 = vunpack.c.h.b16 %v366
    %v1320 = vunpack.c.l.b16 %v367
    %v1321 = vunpack.c.h.b16 %v367
    %v1322 = vunpack.c.l.b16 %v368
    %v1323 = vunpack.c.h.b16 %v368
    %v1324 = vunpack.c.l.b16 %v369
    %v1325 = vunpack.c.h.b16 %v369
    %v1326 = vunpack.c.l.b16 %v370
    %v1327 = vunpack.c.h.b16 %v370
    %v1328 = vunpack.c.l.b16 %v371
    %v1329 = vunpack.c.h.b16 %v371
    %v1330 = vunpack.c.l.b16 %v372
    %v1331 = vunpack.c.h.b16 %v372
    %v1332 = vunpack.c.l.b16 %v373
    %v1333 = vunpack.c.h.b16 %v373
    %v1334 = vunpack.c.l.b16 %v374
    %v1335 = vunpack.c.h.b16 %v374
    %v1336 = vunpack.c.l.b16 %v375
    %v1337 = vunpack.c.h.b16 %v375
    %v1338 = vunpack.c.l.b16 %v376
    %v1339 = vunpack.c.h.b16 %v376
    %v1340 = vunpack.c.l.b16 %v377
    %v1341 = vunpack.c.h.b16 %v377
    %v1342 = vunpack.c.l.b16 %v378
    %v1343 = vunpack.c.h.b16 %v378
    %v1344 = vunpack.c.l.b16 %v379
    %v1345 = vunpack.c.h.b16 %v379
    %v1346 = vunpack.c.l.b16 %v380
    %v1347 = vunpack.c.h.b16 %v380
    %v1348 = vunpack.c.l.b16 %v381
    %v1349 = vunpack.c.h.b16 %v381
    %v1350 = vunpack.c.l.b16 %v382
    %v1351 = vunpack.c.h.b16 %v382
    %v1352 = vunpack.c.l.b16 %v383
    %v1353 = vunpack.c.h.b16 %v383
    %v1354 = vunpack.c.l.b16 %v384
    %v1355 = vunpack.c.h.b16 %v384
    %v1356 = vunpack.c.l.b16 %v385
    %v1357 = vunpack.c.h.b16 %v385
    %v1358 = vunpack.c.l.b16 %v386
    %v1359 = vunpack.c.h.b16 %v386
    %v1360 = vunpack.c.l.b16 %v387
    %v1361 = vunpack.c.h.b16 %v387
    %v1362 = vunpack.c.l.b16 %v388
    %v1363 = vunpack.c.h.b16 %v388
    %v1364 = vunpack.c.l.b16 %v389
    %v1365 = vunpack.c.h.b16 %v389
    %v1366 = vunpack.c.l.b16 %v390
    %v1367 = vunpack.c.h.b16 %v390
    %v1368 = vunpack.c.l.b16 %v391
    %v1369 = vunpack.c.h.b16 %v391
    %v1370 = vunpack.c.l.b16 %v392
    %v1371 = vunpack.c.h.b16 %v392
    %v1372 = vunpack.c.l.b16 %v393
    %v1373 = vunpack.c.h.b16 %v393
    %v1374 = vunpack.c.l.b16 %v394
    %v1375 = vunpack.c.h.b16 %v394
    %v1376 = vunpack.c.l.b16 %v395
    %v1377 = vunpack.c.h.b16 %v395
    %v1378 = vunpack.c.l.b16 %v396
    %v1379 = vunpack.c.h.b16 %v396
    %v1380 = vunpack.c.l.b16 %v397
    %v1381 = vunpack.c.h.b16 %v397
    %v1382 = vunpack.c.l.b16 %v398
    %v1383 = vunpack.c.h.b16 %v398
    %v1384 = vunpack.c.l.b16 %v399
    %v1385 = vunpack.c.h.b16 %v399
    %v1386 = vunpack.c.l.b16 %v400
    %v1387 = vunpack.c.h.b16 %v400
    %v1388 = vunpack.c.l.b16 %v401
    %v1389 = vunpack.c.h.b16 %v401
    %v1390 = vunpack.c.l.b16 %v402
    %v1391 = vunpack.c.h.b16 %v402
    %v1392 = vunpack.c.l.b16 %v403
    %v1393 = vunpack.c.h.b16 %v403
    %v1394 = vunpack.c.l.b16 %v404
    %v1395 = vunpack.c.h.b16 %v404
    %v1396 = vunpack.c.l.b16 %v405
    %v1397 = vunpack.c.h.b16 %v405
    %v1398 = vunpack.c.l.b16 %v406
    %v1399 = vunpack.c.h.b16 %v406
    %v1400 = vunpack.c.l.b16 %v407
    %v1401 = vunpack.c.h.b16 %v407
    %v1402 = vunpack.c.l.b16 %v408
    %v1403 = vunpack.c.h.b16 %v408
    %v1404 = vunpack.c.l.b16 %v409
    %v1405 = vunpack.c.h.b16 %v409
    %v1406 = vunpack.c.l.b16 %v410
    %v1407 = vunpack.c.h.b16 %v410
    %v1408 = vunpack.c.l.b16 %v411
    %v1409 = vunpack.c.h.b16 %v411
    %v1410 = vunpack.c.l.b16 %v412
    %v1411 = vunpack.c.h.b16 %v412
    %v1412 = vunpack.c.l.b16 %v413
    %v1413 = vunpack.c.h.b16 %v413
    %v1414 = vunpack.c.l.b16 %v414
    %v1415 = vunpack.c.h.b16 %v414
    %v1416 = vunpack.c.l.b16 %v415
    %v1417 = vunpack.c.h.b16 %v415
    %v1418 = vunpack.c.l.b16 %v416
    %v1419 = vunpack.c.h.b16 %v416
    %v1420 = vunpack.c.l.b16 %v417
    %v1421 = vunpack.c.h.b16 %v417
    %v1422 = vunpack.c.l.b16 %v418
    %v1423 = vunpack.c.h.b16 %v418
    %v1424 = vunpack.c.l.b16 %v419
    %v1425 = vunpack.c.h.b16 %v419
    %v1426 = vunpack.c.l.b16 %v420
    %v1427 = vunpack.c.h.b16 %v420
    %v1428 = vunpack.c.l.b16 %v421
    %v1429 = vunpack.c.h.b16 %v421
    %v1430 = vunpack.c.l.b16 %v422
    %v1431 = vunpack.c.h.b16 %v422
    %v1432 = vunpack.c.l.b16 %v423
    %v1433 = vunpack.c.h.b16 %v423
    %v1434 = vunpack.c.l.b16 %v424
    %v1435 = vunpack.c.h.b16 %v424
    %v1436 = vunpack.c.l.b16 %v425
    %v1437 = vunpack.c.h.b16 %v425
    %v1438 = vunpack.c.l.b16 %v426
    %v1439 = vunpack.c.h.b16 %v426
    %v1440 = vunpack.c.l.b16 %v427
    %v1441 = vunpack.c.h.b16 %v427
    %v1442 = vunpack.c.l.b16 %v428
    %v1443 = vunpack.c.h.b16 %v428
    %v1444 = vunpack.c.l.b16 %v429
    %v1445 = vunpack.c.h.b16 %v429
    %v1446 = vunpack.c.l.b16 %v430
    %v1447 = vunpack.c.h.b16 %v430
    %v1448 = vunpack.c.l.b16 %v431
    %v1449 = vunpack.c.h.b16 %v431
    %v1450 = vunpack.c.l.b16 %v432
    %v1451 = vunpack.c.h.b16 %v432
    %v1452 = vunpack.c.l.b16 %v433
    %v1453 = vunpack.c.h.b16 %v433
    %v1454 = vunpack.c.l.b16 %v434
    %v1455 = vunpack.c.h.b16 %v434
    %v1456 = vunpack.c.l.b16 %v435
    %v1457 = vunpack.c.h.b16 %v435
    %v1458 = vunpack.c.l.b16 %v436
    %v1459 = vunpack.c.h.b16 %v436
    %v1460 = vunpack.c.l.b16 %v437
    %v1461 = vunpack.c.h.b16 %v437
    %v1462 = vunpack.c.l.b16 %v438
    %v1463 = vunpack.c.h.b16 %v438
    %v1464 = vunpack.c.l.b16 %v439
    %v1465 = vunpack.c.h.b16 %v439
    %v1466 = vunpack.c.l.b16 %v440
    %v1467 = vunpack.c.h.b16 %v440
    %v1468 = vunpack.c.l.b16 %v441
    %v1469 = vunpack.c.h.b16 %v441
    %v1470 = vunpack.c.l.b16 %v442
    %v1471 = vunpack.c.h.b16 %v442
    %v1472 = vunpack.c.l.b16 %v443
    %v1473 = vunpack.c.h.b16 %v443
    %v1474 = vunpack.c.l.b16 %v444
    %v1475 = vunpack.c.h.b16 %v444
    %v1476 = vunpack.c.l.b16 %v445
    %v1477 = vunpack.c.h.b16 %v445
    %v1478 = vunpack.c.l.b16 %v446
    %v1479 = vunpack.c.h.b16 %v446
    %v1480 = vunpack.c.l.b16 %v447
    %v1481 = vunpack.c.h.b16 %v447
    %v1482 = vunpack.c.l.b16 %v448
    %v1483 = vunpack.c.h.b16 %v448
    %v1484 = vunpack.c.l.b16 %v449
    %v1485 = vunpack.c.h.b16 %v449
    %v1486 = vunpack.c.l.b16 %v450
    %v1487 = vunpack.c.h.b16 %v450
    %v1488 = vunpack.c.l.b16 %v451
    %v1489 = vunpack.c.h.b16 %v451
    %v1490 = vunpack.c.l.b16 %v452
    %v1491 = vunpack.c.h.b16 %v452
    %v1492 = vunpack.c.l.b16 %v453
    %v1493 = vunpack.c.h.b16 %v453
    %v1494 = vunpack.c.l.b16 %v454
    %v1495 = vunpack.c.h.b16 %v454
    %v1496 = vunpack.c.l.b16 %v455
    %v1497 = vunpack.c.h.b16 %v455
    %v1498 = vunpack.c.l.b16 %v456
    %v1499 = vunpack.c.h.b16 %v456
    %v1500 = vunpack.c.l.b16 %v457
    %v1501 = vunpack.c.h.b16 %v457
    %v1502 = vunpack.c.l.b16 %v458
    %v1503 = vunpack.c.h.b16 %v458
    %v1504 = vunpack.c.l.b16 %v459
    %v1505 = vunpack.c.h.b16 %v459
    %v1506 = vunpack.c.l.b16 %v460
    %v1507 = vunpack.c.h.b16 %v460
    %v1508 = vunpack.c.l.b16 %v461
    %v1509 = vunpack.c.h.b16 %v461
    %v1510 = vunpack.c.l.b16 %v462
    %v1511 = vunpack.c.h.b16 %v462
    %v1512 = vunpack.c.l.b16 %v463
    %v1513 = vunpack.c.h.b16 %v463
    %v1514 = vunpack.c.l.b16 %v464
    %v1515 = vunpack.c.h.b16 %v464
    %v1516 = vunpack.c.l.b16 %v465
    %v1517 = vunpack.c.h.b16 %v465
    %v1518 = vunpack.c.l.b16 %v466
    %v1519 = vunpack.c.h.b16 %v466
    %v1520 = vunpack.c.l.b16 %v467
    %v1521 = vunpack.c.h.b16 %v467
    %v1522 = vunpack.c.l.b16 %v468
    %v1523 = vunpack.c.h.b16 %v468
    %v1524 = vunpack.c.l.b16 %v469
    %v1525 = vunpack.c.h.b16 %v469
    %v1526 = vunpack.c.l.b16 %v470
    %v1527 = vunpack.c.h.b16 %v470
    %v1528 = vunpack.c.l.b16 %v471
    %v1529 = vunpack.c.h.b16 %v471
    %v1530 = vunpack.c.l.b16 %v472
    %v1531 = vunpack.c.h.b16 %v472
    %v1532 = vunpack.c.l.b16 %v473
    %v1533 = vunpack.c.h.b16 %v473
    %v1534 = vunpack.c.l.b16 %v474
    %v1535 = vunpack.c.h.b16 %v474
    %v1536 = vunpack.c.l.b16 %v475
    %v1537 = vunpack.c.h.b16 %v475
    %v1538 = vunpack.c.l.b16 %v476
    %v1539 = vunpack.c.h.b16 %v476
    %v1540 = vunpack.c.l.b16 %v477
    %v1541 = vunpack.c.h.b16 %v477
    %v1542 = vunpack.c.l.b16 %v478
    %v1543 = vunpack.c.h.b16 %v478
    %v1544 = vunpack.c.l.b16 %v479
    %v1545 = vunpack.c.h.b16 %v479
    %v1546 = vunpack.c.l.b16 %v480
    %v1547 = vunpack.c.h.b16 %v480
    %v1548 = vunpack.c.l.b16 %v481
    %v1549 = vunpack.c.h.b16 %v481
    %v1550 = vunpack.c.l.b16 %v482
    %v1551 = vunpack.c.h.b16 %v482
    %v1552 = vunpack.c.l.b16 %v483
    %v1553 = vunpack.c.h.b16 %v483
    %v1554 = vunpack.c.l.b16 %v484
    %v1555 = vunpack.c.h.b16 %v484
    %v1556 = vunpack.c.l.b16 %v485
    %v1557 = vunpack.c.h.b16 %v485
    %v1558 = vunpack.c.l.b16 %v486
    %v1559 = vunpack.c.h.b16 %v486
    %v1560 = vunpack.c.l.b16 %v487
    %v1561 = vunpack.c.h.b16 %v487
    %v1562 = vunpack.c.l.b16 %v488
    %v1563 = vunpack.c.h.b16 %v488
    %v1564 = vunpack.c.l.b16 %v489
    %v1565 = vunpack.c.h.b16 %v489
    %v1566 = vunpack.c.l.b16 %v490
    %v1567 = vunpack.c.h.b16 %v490
    %v1568 = vunpack.c.l.b16 %v491
    %v1569 = vunpack.c.h.b16 %v491
    %v1570 = vunpack.c.l.b16 %v492
    %v1571 = vunpack.c.h.b16 %v492
    %v1572 = vunpack.c.l.b16 %v493
    %v1573 = vunpack.c.h.b16 %v493
    %v1574 = vunpack.c.l.b16 %v494
    %v1575 = vunpack.c.h.b16 %v494
    %v1576 = vunpack.c.l.b16 %v495
    %v1577 = vunpack.c.h.b16 %v495
    %v1578 = vunpack.c.l.b16 %v496
    %v1579 = vunpack.c.h.b16 %v496
    %v1580 = vunpack.c.l.b16 %v497
    %v1581 = vunpack.c.h.b16 %v497
    %v1582 = vunpack.c.l.b16 %v498
    %v1583 = vunpack.c.h.b16 %v498
    %v1584 = vunpack.c.l.b16 %v499
    %v1585 = vunpack.c.h.b16 %v499
    %v1586 = vunpack.c.l.b16 %v500
    %v1587 = vunpack.c.h.b16 %v500
    %v1588 = vunpack.c.l.b16 %v501
    %v1589 = vunpack.c.h.b16 %v501
    %v1590 = vunpack.c.l.b16 %v502
    %v1591 = vunpack.c.h.b16 %v502
    %v1592 = vunpack.c.l.b16 %v503
    %v1593 = vunpack.c.h.b16 %v503
    %v1594 = vunpack.c.l.b16 %v504
    %v1595 = vunpack.c.h.b16 %v504
    %v1596 = vunpack.c.l.b16 %v505
    %v1597 = vunpack.c.h.b16 %v505
    %v1598 = vunpack.c.l.b16 %v506
    %v1599 = vunpack.c.h.b16 %v506
    %v1600 = vunpack.c.l.b16 %v507
    %v1601 = vunpack.c.h.b16 %v507
    %v1602 = vunpack.c.l.b16 %v508
    %v1603 = vunpack.c.h.b16 %v508
    %v1604 = vunpack.c.l.b16 %v509
    %v1605 = vunpack.c.h.b16 %v509
    %v1606 = vunpack.c.l.b16 %v510
    %v1607 = vunpack.c.h.b16 %v510
    %v1608 = vunpack.c.l.b16 %v511
    %v1609 = vunpack.c.h.b16 %v511
    %v1610 = vunpack.c.l.b16 %v512
    %v1611 = vunpack.c.h.b16 %v512
    %v1612 = vunpack.c.l.b16 %v513
    %v1613 = vunpack.c.h.b16 %v513
    %v1614 = vunpack.c.l.b16 %v514
    %v1615 = vunpack.c.h.b16 %v514
    %v1616 = vunpack.c.l.b16 %v515
    %v1617 = vunpack.c.h.b16 %v515
    %v1618 = vunpack.c.l.b16 %v516
    %v1619 = vunpack.c.h.b16 %v516
    %v1620 = vunpack.c.l.b16 %v517
    %v1621 = vunpack.c.h.b16 %v517
    %v1622 = vunpack.c.l.b16 %v518
    %v1623 = vunpack.c.h.b16 %v518
    %v1624 = vunpack.c.l.b16 %v519
    %v1625 = vunpack.c.h.b16 %v519
    %v1626 = vunpack.c.l.b16 %v520
    %v1627 = vunpack.c.h.b16 %v520
    %v1628 = vunpack.c.l.b16 %v521
    %v1629 = vunpack.c.h.b16 %v521
    %v1630 = vunpack.c.l.b16 %v522
    %v1631 = vunpack.c.h.b16 %v522
    %v1632 = vunpack.c.l.b16 %v523
    %v1633 = vunpack.c.h.b16 %v523
    %v1634 = vunpack.c.l.b16 %v524
    %v1635 = vunpack.c.h.b16 %v524
    %v1636 = vunpack.c.l.b16 %v525
    %v1637 = vunpack.c.h.b16 %v525
    %v1638 = vunpack.c.l.b16 %v526
    %v1639 = vunpack.c.h.b16 %v526
    %v1640 = vunpack.c.l.b16 %v527
    %v1641 = vunpack.c.h.b16 %v527
    %v1642 = vunpack.c.l.b16 %v528
    %v1643 = vunpack.c.h.b16 %v528
    %v1644 = vunpack.c.l.b16 %v529
    %v1645 = vunpack.c.h.b16 %v529
    %v1646 = vunpack.c.l.b16 %v530
    %v1647 = vunpack.c.h.b16 %v530
    %v1648 = vunpack.c.l.b16 %v531
    %v1649 = vunpack.c.h.b16 %v531
    %v1650 = vunpack.c.l.b16 %v532
    %v1651 = vunpack.c.h.b16 %v532
    %v1652 = vunpack.c.l.b16 %v533
    %v1653 = vunpack.c.h.b16 %v533
    %v1654 = vunpack.c.l.b16 %v534
    %v1655 = vunpack.c.h.b16 %v534
    %v1656 = vunpack.c.l.b16 %v535
    %v1657 = vunpack.c.h.b16 %v535
    %v1658 = vunpack.c.l.b16 %v536
    %v1659 = vunpack.c.h.b16 %v536
    %v1660 = vunpack.c.l.b16 %v537
    %v1661 = vunpack.c.h.b16 %v537
    %v1662 = vunpack.c.l.b16 %v538
    %v1663 = vunpack.c.h.b16 %v538
    %v1664 = vunpack.c.l.b16 %v539
    %v1665 = vunpack.c.h.b16 %v539
    %v1666 = vunpack.c.l.b16 %v540
    %v1667 = vunpack.c.h.b16 %v540
    %v1668 = vunpack.c.l.b16 %v541
    %v1669 = vunpack.c.h.b16 %v541
    %v1670 = vunpack.c.l.b16 %v542
    %v1671 = vunpack.c.h.b16 %v542
    %v1672 = vunpack.c.l.b16 %v543
    %v1673 = vunpack.c.h.b16 %v543
    %v1674 = vunpack.c.l.b16 %v544
    %v1675 = vunpack.c.h.b16 %v544
    %v1676 = vunpack.c.l.b16 %v545
    %v1677 = vunpack.c.h.b16 %v545
    %v1678 = vunpack.c.l.b16 %v546
    %v1679 = vunpack.c.h.b16 %v546
    %v1680 = vunpack.c.l.b16 %v547
    %v1681 = vunpack.c.h.b16 %v547
    %v1682 = vunpack.c.l.b16 %v548
    %v1683 = vunpack.c.h.b16 %v548
    %v1684 = vunpack.c.l.b16 %v549
    %v1685 = vunpack.c.h.b16 %v549
    %v1686 = vunpack.c.l.b16 %v550
    %v1687 = vunpack.c.h.b16 %v550
    %v1688 = vunpack.c.l.b16 %v551
    %v1689 = vunpack.c.h.b16 %v551
    %v1690 = vunpack.c.l.b16 %v552
    %v1691 = vunpack.c.h.b16 %v552
    %v1692 = vunpack.c.l.b16 %v553
    %v1693 = vunpack.c.h.b16 %v553
    %v1694 = vunpack.c.l.b16 %v554
    %v1695 = vunpack.c.h.b16 %v554
    %v1696 = vunpack.c.l.b16 %v555
    %v1697 = vunpack.c.h.b16 %v555
    %v1698 = vunpack.c.l.b16 %v556
    %v1699 = vunpack.c.h.b16 %v556
    %v1700 = vunpack.c.l.b16 %v557
    %v1701 = vunpack.c.h.b16 %v557
    %v1702 = vunpack.c.l.b16 %v558
    %v1703 = vunpack.c.h.b16 %v558
    %v1704 = vunpack.c.l.b16 %v559
    %v1705 = vunpack.c.h.b16 %v559
    %v1706 = vunpack.c.l.b16 %v560
    %v1707 = vunpack.c.h.b16 %v560
    %v1708 = vunpack.c.l.b16 %v561
    %v1709 = vunpack.c.h.b16 %v561
    %v1710 = vunpack.c.l.b16 %v562
    %v1711 = vunpack.c.h.b16 %v562
    %v1712 = vunpack.c.l.b16 %v563
    %v1713 = vunpack.c.h.b16 %v563
    %v1714 = vunpack.c.l.b16 %v564
    %v1715 = vunpack.c.h.b16 %v564
    %v1716 = vunpack.c.l.b16 %v565
    %v1717 = vunpack.c.h.b16 %v565
    %v1718 = vpack.c.b16 %v958, %v950
    %v1719 = vpack.c.b16 %v959, %v951
    %v1720 = vpack.c.b16 %v960, %v952
    %v1721 = vpack.c.b16 %v961, %v953
    %v1722 = vpack.c.b16 %v962, %v954
    %v1723 = vpack.c.b16 %v963, %v955
    %v1724 = vpack.c.b16 %v964, %v956
    %v1725 = vpack.c.b16 %v965, %v957
    %v1726 = vpack.c.b16 %v974, %v966
    %v1727 = vpack.c.b16 %v975, %v967
    %v1728 = vpack.c.b16 %v976, %v968
    %v1729 = vpack.c.b16 %v977, %v969
    %v1730 = vpack.c.b16 %v978, %v970
    %v1731 = vpack.c.b16 %v979, %v971
    %v1732 = vpack.c.b16 %v980, %v972
    %v1733 = vpack.c.b16 %v981, %v973
    %v1734 = vpack.c.b16 %v990, %v982
    %v1735 = vpack.c.b16 %v991, %v983
    %v1736 = vpack.c.b16 %v992, %v984
    %v1737 = vpack.c.b16 %v993, %v985
    %v1738 = vpack.c.b16 %v994, %v986
    %v1739 = vpack.c.b16 %v995, %v987
    %v1740 = vpack.c.b16 %v996, %v988
    %v1741 = vpack.c.b16 %v997, %v989
    %v1742 = vpack.c.b16 %v1006, %v998
    %v1743 = vpack.c.b16 %v1007, %v999
    %v1744 = vpack.c.b16 %v1008, %v1000
    %v1745 = vpack.c.b16 %v1009, %v1001
    %v1746 = vpack.c.b16 %v1010, %v1002
    %v1747 = vpack.c.b16 %v1011, %v1003
    %v1748 = vpack.c.b16 %v1012, %v1004
    %v1749 = vpack.c.b16 %v1013, %v1005
    %v1750 = vpack.c.b16 %v1022, %v1014
    %v1751 = vpack.c.b16 %v1023, %v1015
    %v1752 = vpack.c.b16 %v1024, %v1016
    %v1753 = vpack.c.b16 %v1025, %v1017
    %v1754 = vpack.c.b16 %v1026, %v1018
    %v1755 = vpack.c.b16 %v1027, %v1019
    %v1756 = vpack.c.b16 %v1028, %v1020
    %v1757 = vpack.c.b16 %v1029, %v1021
    %v1758 = vpack.c.b16 %v1038, %v1030
    %v1759 = vpack.c.b16 %v1039, %v1031
    %v1760 = vpack.c.b16 %v1040, %v1032
    %v1761 = vpack.c.b16 %v1041, %v1033
    %v1762 = vpack.c.b16 %v1042, %v1034
    %v1763 = vpack.c.b16 %v1043, %v1035
    %v1764 = vpack.c.b16 %v1044, %v1036
    %v1765 = vpack.c.b16 %v1045, %v1037
    %v1766 = vpack.c.b16 %v1054, %v1046
    %v1767 = vpack.c.b16 %v1055, %v1047
    %v1768 = vpack.c.b16 %v1056, %v1048
    %v1769 = vpack.c.b16 %v1057, %v1049
    %v1770 = vpack.c.b16 %v1058, %v1050
    %v1771 = vpack.c.b16 %v1059, %v1051
    %v1772 = vpack.c.b16 %v1060, %v1052
    %v1773 = vpack.c.b16 %v1061, %v1053
    %v1774 = vpack.c.b16 %v1070, %v1062
    %v1775 = vpack.c.b16 %v1071, %v1063
    %v1776 = vpack.c.b16 %v1072, %v1064
    %v1777 = vpack.c.b16 %v1073, %v1065
    %v1778 = vpack.c.b16 %v1074, %v1066
    %v1779 = vpack.c.b16 %v1075, %v1067
    %v1780 = vpack.c.b16 %v1076, %v1068
    %v1781 = vpack.c.b16 %v1077, %v1069
    %v1782 = vpack.c.b16 %v1086, %v1078
    %v1783 = vpack.c.b16 %v1087, %v1079
    %v1784 = vpack.c.b16 %v1088, %v1080
    %v1785 = vpack.c.b16 %v1089, %v1081
    %v1786 = vpack.c.b16 %v1090, %v1082
    %v1787 = vpack.c.b16 %v1091, %v1083
    %v1788 = vpack.c.b16 %v1092, %v1084
    %v1789 = vpack.c.b16 %v1093, %v1085
    %v1790 = vpack.c.b16 %v1102, %v1094
    %v1791 = vpack.c.b16 %v1103, %v1095
    %v1792 = vpack.c.b16 %v1104, %v1096
    %v1793 = vpack.c.b16 %v1105, %v1097
    %v1794 = vpack.c.b16 %v1106, %v1098
    %v1795 = vpack.c.b16 %v1107, %v1099
    %v1796 = vpack.c.b16 %v1108, %v1100
    %v1797 = vpack.c.b16 %v1109, %v1101
    %v1798 = vpack.c.b16 %v1118, %v1110
    %v1799 = vpack.c.b16 %v1119, %v1111
    %v1800 = vpack.c.b16 %v1120, %v1112
    %v1801 = vpack.c.b16 %v1121, %v1113
    %v1802 = vpack.c.b16 %v1122, %v1114
    %v1803 = vpack.c.b16 %v1123, %v1115
    %v1804 = vpack.c.b16 %v1124, %v1116
    %v1805 = vpack.c.b16 %v1125, %v1117
    %v1806 = vpack.c.b16 %v1134, %v1126
    %v1807 = vpack.c.b16 %v1135, %v1127
    %v1808 = vpack.c.b16 %v1136, %v1128
    %v1809 = vpack.c.b16 %v1137, %v1129
    %v1810 = vpack.c.b16 %v1138, %v1130
    %v1811 = vpack.c.b16 %v1139, %v1131
    %v1812 = vpack.c.b16 %v1140, %v1132
    %v1813 = vpack.c.b16 %v1141, %v1133
    %v1814 = vpack.c.b16 %v1150, %v1142
    %v1815 = vpack.c.b16 %v1151, %v1143
    %v1816 = vpack.c.b16 %v1152, %v1144
    %v1817 = vpack.c.b16 %v1153, %v1145
    %v1818 = vpack.c.b16 %v1154, %v1146
    %v1819 = vpack.c.b16 %v1155, %v1147
    %v1820 = vpack.c.b16 %v1156, %v1148
    %v1821 = vpack.c.b16 %v1157, %v1149
    %v1822 = vpack.c.b16 %v1166, %v1158
    %v1823 = vpack.c.b16 %v1167, %v1159
    %v1824 = vpack.c.b16 %v1168, %v1160
    %v1825 = vpack.c.b16 %v1169, %v1161
    %v1826 = vpack.c.b16 %v1170, %v1162
    %v1827 = vpack.c.b16 %v1171, %v1163
    %v1828 = vpack.c.b16 %v1172, %v1164
    %v1829 = vpack.c.b16 %v1173, %v1165
    %v1830 = vpack.c.b16 %v1182, %v1174
    %v1831 = vpack.c.b16 %v1183, %v1175
    %v1832 = vpack.c.b16 %v1184, %v1176
    %v1833 = vpack.c.b16 %v1185, %v1177
    %v1834 = vpack.c.b16 %v1186, %v1178
    %v1835 = vpack.c.b16 %v1187, %v1179
    %v1836 = vpack.c.b16 %v1188, %v1180
    %v1837 = vpack.c.b16 %v1189, %v1181
    %v1838 = vpack.c.b16 %v1198, %v1190
    %v1839 = vpack.c.b16 %v1199, %v1191
    %v1840 = vpack.c.b16 %v1200, %v1192
    %v1841 = vpack.c.b16 %v1201, %v1193
    %v1842 = vpack.c.b16 %v1202, %v1194
    %v1843 = vpack.c.b16 %v1203, %v1195
    %v1844 = vpack.c.b16 %v1204, %v1196
    %v1845 = vpack.c.b16 %v1205, %v1197
    %v1846 = vpack.c.b16 %v1214, %v1206
    %v1847 = vpack.c.b16 %v1215, %v1207
    %v1848 = vpack.c.b16 %v1216, %v1208
    %v1849 = vpack.c.b16 %v1217, %v1209
    %v1850 = vpack.c.b16 %v1218, %v1210
    %v1851 = vpack.c.b16 %v1219, %v1211
    %v1852 = vpack.c.b16 %v1220, %v1212
    %v1853 = vpack.c.b16 %v1221, %v1213
    %v1854 = vpack.c.b16 %v1230, %v1222
    %v1855 = vpack.c.b16 %v1231, %v1223
    %v1856 = vpack.c.b16 %v1232, %v1224
    %v1857 = vpack.c.b16 %v1233, %v1225
    %v1858 = vpack.c.b16 %v1234, %v1226
    %v1859 = vpack.c.b16 %v1235, %v1227
    %v1860 = vpack.c.b16 %v1236, %v1228
    %v1861 = vpack.c.b16 %v1237, %v1229
    %v1862 = vpack.c.b16 %v1246, %v1238
    %v1863 = vpack.c.b16 %v1247, %v1239
    %v1864 = vpack.c.b16 %v1248, %v1240
    %v1865 = vpack.c.b16 %v1249, %v1241
    %v1866 = vpack.c.b16 %v1250, %v1242
    %v1867 = vpack.c.b16 %v1251, %v1243
    %v1868 = vpack.c.b16 %v1252, %v1244
    %v1869 = vpack.c.b16 %v1253, %v1245
    %v1870 = vpack.c.b16 %v1262, %v1254
    %v1871 = vpack.c.b16 %v1263, %v1255
    %v1872 = vpack.c.b16 %v1264, %v1256
    %v1873 = vpack.c.b16 %v1265, %v1257
    %v1874 = vpack.c.b16 %v1266, %v1258
    %v1875 = vpack.c.b16 %v1267, %v1259
    %v1876 = vpack.c.b16 %v1268, %v1260
    %v1877 = vpack.c.b16 %v1269, %v1261
    %v1878 = vpack.c.b16 %v1278, %v1270
    %v1879 = vpack.c.b16 %v1279, %v1271
    %v1880 = vpack.c.b16 %v1280, %v1272
    %v1881 = vpack.c.b16 %v1281, %v1273
    %v1882 = vpack.c.b16 %v1282, %v1274
    %v1883 = vpack.c.b16 %v1283, %v1275
    %v1884 = vpack.c.b16 %v1284, %v1276
    %v1885 = vpack.c.b16 %v1285, %v1277
    %v1886 = vpack.c.b16 %v1294, %v1286
    %v1887 = vpack.c.b16 %v1295, %v1287
    %v1888 = vpack.c.b16 %v1296, %v1288
    %v1889 = vpack.c.b16 %v1297, %v1289
    %v1890 = vpack.c.b16 %v1298, %v1290
    %v1891 = vpack.c.b16 %v1299, %v1291
    %v1892 = vpack.c.b16 %v1300, %v1292
    %v1893 = vpack.c.b16 %v1301, %v1293
    %v1894 = vpack.c.b16 %v1310, %v1302
    %v1895 = vpack.c.b16 %v1311, %v1303
    %v1896 = vpack.c.b16 %v1312, %v1304
    %v1897 = vpack.c.b16 %v1313, %v1305
    %v1898 = vpack.c.b16 %v1314, %v1306
    %v1899 = vpack.c.b16 %v1315, %v1307
    %v1900 = vpack.c.b16 %v1316, %v1308
    %v1901 = vpack.c.b16 %v1317, %v1309
    %v1902 = vpack.c.b16 %v1326, %v1318
    %v1903 = vpack.c.b16 %v1327, %v1319
    %v1904 = vpack.c.b16 %v1328, %v1320
    %v1905 = vpack.c.b16 %v1329, %v1321
    %v1906 = vpack.c.b16 %v1330, %v1322
    %v1907 = vpack.c.b16 %v1331, %v1323
    %v1908 = vpack.c.b16 %v1332, %v1324
    %v1909 = vpack.c.b16 %v1333, %v1325
    %v1910 = vpack.c.b16 %v1342, %v1334
    %v1911 = vpack.c.b16 %v1343, %v1335
    %v1912 = vpack.c.b16 %v1344, %v1336
    %v1913 = vpack.c.b16 %v1345, %v1337
    %v1914 = vpack.c.b16 %v1346, %v1338
    %v1915 = vpack.c.b16 %v1347, %v1339
    %v1916 = vpack.c.b16 %v1348, %v1340
    %v1917 = vpack.c.b16 %v1349, %v1341
    %v1918 = vpack.c.b16 %v1358, %v1350
    %v1919 = vpack.c.b16 %v1359, %v1351
    %v1920 = vpack.c.b16 %v1360, %v1352
    %v1921 = vpack.c.b16 %v1361, %v1353
    %v1922 = vpack.c.b16 %v1362, %v1354
    %v1923 = vpack.c.b16 %v1363, %v1355
    %v1924 = vpack.c.b16 %v1364, %v1356
    %v1925 = vpack.c.b16 %v1365, %v1357
    %v1926 = vpack.c.b16 %v1374, %v1366
    %v1927 = vpack.c.b16 %v1375, %v1367
    %v1928 = vpack.c.b16 %v1376, %v1368
    %v1929 = vpack.c.b16 %v1377, %v1369
    %v1930 = vpack.c.b16 %v1378, %v1370
    %v1931 = vpack.c.b16 %v1379, %v1371
    %v1932 = vpack.c.b16 %v1380, %v1372
    %v1933 = vpack.c.b16 %v1381, %v1373
    %v1934 = vpack.c.b16 %v1390, %v1382
    %v1935 = vpack.c.b16 %v1391, %v1383
    %v1936 = vpack.c.b16 %v1392, %v1384
    %v1937 = vpack.c.b16 %v1393, %v1385
    %v1938 = vpack.c.b16 %v1394, %v1386
    %v1939 = vpack.c.b16 %v1395, %v1387
    %v1940 = vpack.c.b16 %v1396, %v1388
    %v1941 = vpack.c.b16 %v1397, %v1389
    %v1942 = vpack.c.b16 %v1406, %v1398
    %v1943 = vpack.c.b16 %v1407, %v1399
    %v1944 = vpack.c.b16 %v1408, %v1400
    %v1945 = vpack.c.b16 %v1409, %v1401
    %v1946 = vpack.c.b16 %v1410, %v1402
    %v1947 = vpack.c.b16 %v1411, %v1403
    %v1948 = vpack.c.b16 %v1412, %v1404
    %v1949 = vpack.c.b16 %v1413, %v1405
    %v1950 = vpack.c.b16 %v1422, %v1414
    %v1951 = vpack.c.b16 %v1423, %v1415
    %v1952 = vpack.c.b16 %v1424, %v1416
    %v1953 = vpack.c.b16 %v1425, %v1417
    %v1954 = vpack.c.b16 %v1426, %v1418
    %v1955 = vpack.c.b16 %v1427, %v1419
    %v1956 = vpack.c.b16 %v1428, %v1420
    %v1957 = vpack.c.b16 %v1429, %v1421
    %v1958 = vpack.c.b16 %v1438, %v1430
    %v1959 = vpack.c.b16 %v1439, %v1431
    %v1960 = vpack.c.b16 %v1440, %v1432
    %v1961 = vpack.c.b16 %v1441, %v1433
    %v1962 = vpack.c.b16 %v1442, %v1434
    %v1963 = vpack.c.b16 %v1443, %v1435
    %v1964 = vpack.c.b16 %v1444, %v1436
    %v1965 = vpack.c.b16 %v1445, %v1437
    %v1966 = vpack.c.b16 %v1454, %v1446
    %v1967 = vpack.c.b16 %v1455, %v1447
    %v1968 = vpack.c.b16 %v1456, %v1448
    %v1969 = vpack.c.b16 %v1457, %v1449
    %v1970 = vpack.c.b16 %v1458, %v1450
    %v1971 = vpack.c.b16 %v1459, %v1451
    %v1972 = vpack.c.b16 %v1460, %v1452
    %v1973 = vpack.c.b16 %v1461, %v1453
    %v1974 = vpack.c.b16 %v1470, %v1462
    %v1975 = vpack.c.b16 %v1471, %v1463
    %v1976 = vpack.c.b16 %v1472, %v1464
    %v1977 = vpack.c.b16 %v1473, %v1465
    %v1978 = vpack.c.b16 %v1474, %v1466
    %v1979 = vpack.c.b16 %v1475, %v1467
    %v1980 = vpack.c.b16 %v1476, %v1468
    %v1981 = vpack.c.b16 %v1477, %v1469
    %v1982 = vpack.c.b16 %v1486, %v1478
    %v1983 = vpack.c.b16 %v1487, %v1479
    %v1984 = vpack.c.b16 %v1488, %v1480
    %v1985 = vpack.c.b16 %v1489, %v1481
    %v1986 = vpack.c.b16 %v1490, %v1482
    %v1987 = vpack.c.b16 %v1491, %v1483
    %v1988 = vpack.c.b16 %v1492, %v1484
    %v1989 = vpack.c.b16 %v1493, %v1485
    %v1990 = vpack.c.b16 %v1502, %v1494
    %v1991 = vpack.c.b16 %v1503, %v1495
    %v1992 = vpack.c.b16 %v1504, %v1496
    %v1993 = vpack.c.b16 %v1505, %v1497
    %v1994 = vpack.c.b16 %v1506, %v1498
    %v1995 = vpack.c.b16 %v1507, %v1499
    %v1996 = vpack.c.b16 %v1508, %v1500
    %v1997 = vpack.c.b16 %v1509, %v1501
    %v1998 = vpack.c.b16 %v1518, %v1510
    %v1999 = vpack.c.b16 %v1519, %v1511
    %v2000 = vpack.c.b16 %v1520, %v1512
    %v2001 = vpack.c.b16 %v1521, %v1513
    %v2002 = vpack.c.b16 %v1522, %v1514
    %v2003 = vpack.c.b16 %v1523, %v1515
    %v2004 = vpack.c.b16 %v1524, %v1516
    %v2005 = vpack.c.b16 %v1525, %v1517
    %v2006 = vpack.c.b16 %v1534, %v1526
    %v2007 = vpack.c.b16 %v1535, %v1527
    %v2008 = vpack.c.b16 %v1536, %v1528
    %v2009 = vpack.c.b16 %v1537, %v1529
    %v2010 = vpack.c.b16 %v1538, %v1530
    %v2011 = vpack.c.b16 %v1539, %v1531
    %v2012 = vpack.c.b16 %v1540, %v1532
    %v2013 = vpack.c.b16 %v1541, %v1533
    %v2014 = vpack.c.b16 %v1550, %v1542
    %v2015 = vpack.c.b16 %v1551, %v1543
    %v2016 = vpack.c.b16 %v1552, %v1544
    %v2017 = vpack.c.b16 %v1553, %v1545
    %v2018 = vpack.c.b16 %v1554, %v1546
    %v2019 = vpack.c.b16 %v1555, %v1547
    %v2020 = vpack.c.b16 %v1556, %v1548
    %v2021 = vpack.c.b16 %v1557, %v1549
    %v2022 = vpack.c.b16 %v1566, %v1558
    %v2023 = vpack.c.b16 %v1567, %v1559
    %v2024 = vpack.c.b16 %v1568, %v1560
    %v2025 = vpack.c.b16 %v1569, %v1561
    %v2026 = vpack.c.b16 %v1570, %v1562
    %v2027 = vpack.c.b16 %v1571, %v1563
    %v2028 = vpack.c.b16 %v1572, %v1564
    %v2029 = vpack.c.b16 %v1573, %v1565
    %v2030 = vpack.c.b16 %v1582, %v1574
    %v2031 = vpack.c.b16 %v1583, %v1575
    %v2032 = vpack.c.b16 %v1584, %v1576
    %v2033 = vpack.c.b16 %v1585, %v1577
    %v2034 = vpack.c.b16 %v1586, %v1578
    %v2035 = vpack.c.b16 %v1587, %v1579
    %v2036 = vpack.c.b16 %v1588, %v1580
    %v2037 = vpack.c.b16 %v1589, %v1581
    %v2038 = vpack.c.b16 %v1598, %v1590
    %v2039 = vpack.c.b16 %v1599, %v1591
    %v2040 = vpack.c.b16 %v1600, %v1592
    %v2041 = vpack.c.b16 %v1601, %v1593
    %v2042 = vpack.c.b16 %v1602, %v1594
    %v2043 = vpack.c.b16 %v1603, %v1595
    %v2044 = vpack.c.b16 %v1604, %v1596
    %v2045 = vpack.c.b16 %v1605, %v1597
    %v2046 = vpack.c.b16 %v1614, %v1606
    %v2047 = vpack.c.b16 %v1615, %v1607
    %v2048 = vpack.c.b16 %v1616, %v1608
    %v2049 = vpack.c.b16 %v1617, %v1609
    %v2050 = vpack.c.b16 %v1618, %v1610
    %v2051 = vpack.c.b16 %v1619, %v1611
    %v2052 = vpack.c.b16 %v1620, %v1612
    %v2053 = vpack.c.b16 %v1621, %v1613
    %v2054 = vpack.c.b16 %v1630, %v1622
    %v2055 = vpack.c.b16 %v1631, %v1623
    %v2056 = vpack.c.b16 %v1632, %v1624
    %v2057 = vpack.c.b16 %v1633, %v1625
    %v2058 = vpack.c.b16 %v1634, %v1626
    %v2059 = vpack.c.b16 %v1635, %v1627
    %v2060 = vpack.c.b16 %v1636, %v1628
    %v2061 = vpack.c.b16 %v1637, %v1629
    %v2062 = vpack.c.b16 %v1646, %v1638
    %v2063 = vpack.c.b16 %v1647, %v1639
    %v2064 = vpack.c.b16 %v1648, %v1640
    %v2065 = vpack.c.b16 %v1649, %v1641
    %v2066 = vpack.c.b16 %v1650, %v1642
    %v2067 = vpack.c.b16 %v1651, %v1643
    %v2068 = vpack.c.b16 %v1652, %v1644
    %v2069 = vpack.c.b16 %v1653, %v1645
    %v2070 = vpack.c.b16 %v1662, %v1654
    %v2071 = vpack.c.b16 %v1663, %v1655
    %v2072 = vpack.c.b16 %v1664, %v1656
    %v2073 = vpack.c.b16 %v1665, %v1657
    %v2074 = vpack.c.b16 %v1666, %v1658
    %v2075 = vpack.c.b16 %v1667, %v1659
    %v2076 = vpack.c.b16 %v1668, %v1660
    %v2077 = vpack.c.b16 %v1669, %v1661
    %v2078 = vpack.c.b16 %v1678, %v1670
    %v2079 = vpack.c.b16 %v1679, %v1671
    %v2080 = vpack.c.b16 %v1680, %v1672
    %v2081 = vpack.c.b16 %v1681, %v1673
    %v2082 = vpack.c.b16 %v1682, %v1674
    %v2083 = vpack.c.b16 %v1683, %v1675
    %v2084 = vpack.c.b16 %v1684, %v1676
    %v2085 = vpack.c.b16 %v1685, %v1677
    %v2086 = vpack.c.b16 %v1694, %v1686
    %v2087 = vpack.c.b16 %v1695, %v1687
    %v2088 = vpack.c.b16 %v1696, %v1688
    %v2089 = vpack.c.b16 %v1697, %v1689
    %v2090 = vpack.c.b16 %v1698, %v1690
    %v2091 = vpack.c.b16 %v1699, %v1691
    %v2092 = vpack.c.b16 %v1700, %v1692
    %v2093 = vpack.c.b16 %v1701, %v1693
    %v2094 = vpack.c.b16 %v1710, %v1702
    %v2095 = vpack.c.b16 %v1711, %v1703
    %v2096 = vpack.c.b16 %v1712, %v1704
    %v2097 = vpack.c.b16 %v1713, %v1705
    %v2098 = vpack.c.b16 %v1714, %v1706
    %v2099 = vpack.c.b16 %v1715, %v1707
    %v2100 = vpack.c.b16 %v1716, %v1708
    %v2101 = vpack.c.b16 %v1717, %v1709
    %2486 = vmatprep.subr.bf16.mxu0 %v1719
    %2487 = vmatpush1.bf16.msra.mxu0 %v1718
    %2488 = vmatprep.subr.bf16.mxu0 %v1727
    %2489 = vmatpush1.bf16.msra.mxu0 %v1726
    %2490 = vmatprep.subr.bf16.mxu0 %v1735
    %2491 = vmatpush1.bf16.msra.mxu0 %v1734
    %2492 = vmatprep.subr.bf16.mxu0 %v1743
    %2493 = vmatpush1.bf16.msra.mxu0 %v1742
    %2494 = vmatprep.subr.bf16.mxu0 %v1751
    %2495 = vmatpush1.bf16.msra.mxu0 %v1750
    %2496 = vmatprep.subr.bf16.mxu0 %v1759
    %2497 = vmatpush1.bf16.msra.mxu0 %v1758
    %2498 = vmatprep.subr.bf16.mxu0 %v1767
    %2499 = vmatpush1.bf16.msra.mxu0 %v1766
    %2500 = vmatprep.subr.bf16.mxu0 %v1775
    %2501 = vmatpush1.bf16.msra.mxu0 %v1774
    %2502 = vmatprep.subr.bf16.mxu0 %v1783
    %2503 = vmatpush1.bf16.msra.mxu0 %v1782
    %2504 = vmatprep.subr.bf16.mxu0 %v1791
    %2505 = vmatpush1.bf16.msra.mxu0 %v1790
    %2506 = vmatprep.subr.bf16.mxu0 %v1799
    %2507 = vmatpush1.bf16.msra.mxu0 %v1798
    %2508 = vmatprep.subr.bf16.mxu0 %v1807
    %2509 = vmatpush1.bf16.msra.mxu0 %v1806
    %2510 = vmatprep.subr.bf16.mxu0 %v1815
    %2511 = vmatpush1.bf16.msra.mxu0 %v1814
    %2512 = vmatprep.subr.bf16.mxu0 %v1823
    %2513 = vmatpush1.bf16.msra.mxu0 %v1822
    %2514 = vmatprep.subr.bf16.mxu0 %v1831
    %2515 = vmatpush1.bf16.msra.mxu0 %v1830
    %2516 = vmatprep.subr.bf16.mxu0 %v1839
    %2517 = vmatpush1.bf16.msra.mxu0 %v1838
    %2518 = vmatprep.mubr.bf16.mxu0 %v113
    %2519 = vmatmul.mubr.bf16.gmra.mrb[0].mxu0 %v112
    %v2520 = vpop.f32.mrb[0].mxu0
    %v2521 = vadd.f32 0.0, %v2520
    %v2522 = vpop.f32.mrb[0].mxu0
    %v2523 = vadd.f32 0.0, %v2522
    %v2524 = vpop.f32.mrb[0].mxu0
    %v2525 = vpop.f32.mrb[0].mxu0
    %2526 = vdwg.mxu0
    %2527 = vmatprep.subr.bf16.mxu0 %v1847
    %2528 = vmatpush1.bf16.msra.mxu0 %v1846
    %2529 = vmatprep.subr.bf16.mxu0 %v1855
    %2530 = vmatpush1.bf16.msra.mxu0 %v1854
    %2531 = vmatprep.subr.bf16.mxu0 %v1863
    %2532 = vmatpush1.bf16.msra.mxu0 %v1862
    %2533 = vmatprep.subr.bf16.mxu0 %v1871
    %2534 = vmatpush1.bf16.msra.mxu0 %v1870
    %2535 = vmatprep.subr.bf16.mxu0 %v1879
    %2536 = vmatpush1.bf16.msra.mxu0 %v1878
    %2537 = vmatprep.subr.bf16.mxu0 %v1887
    %2538 = vmatpush1.bf16.msra.mxu0 %v1886
    %2539 = vmatprep.subr.bf16.mxu0 %v1895
    %2540 = vmatpush1.bf16.msra.mxu0 %v1894
    %2541 = vmatprep.subr.bf16.mxu0 %v1903
    %2542 = vmatpush1.bf16.msra.mxu0 %v1902
    %2543 = vmatprep.subr.bf16.mxu0 %v1911
    %2544 = vmatpush1.bf16.msra.mxu0 %v1910
    %2545 = vmatprep.subr.bf16.mxu0 %v1919
    %2546 = vmatpush1.bf16.msra.mxu0 %v1918
    %2547 = vmatprep.subr.bf16.mxu0 %v1927
    %2548 = vmatpush1.bf16.msra.mxu0 %v1926
    %2549 = vmatprep.subr.bf16.mxu0 %v1935
    %2550 = vmatpush1.bf16.msra.mxu0 %v1934
    %2551 = vmatprep.subr.bf16.mxu0 %v1943
    %2552 = vmatpush1.bf16.msra.mxu0 %v1942
    %2553 = vmatprep.subr.bf16.mxu0 %v1951
    %2554 = vmatpush1.bf16.msra.mxu0 %v1950
    %2555 = vmatprep.subr.bf16.mxu0 %v1959
    %2556 = vmatpush1.bf16.msra.mxu0 %v1958
    %2557 = vmatprep.subr.bf16.mxu0 %v1967
    %2558 = vmatpush1.bf16.msra.mxu0 %v1966
    %2559 = vmatprep.mubr.bf16.mxu0 %v115
    %2560 = vmatmul.mubr.bf16.gmra.mrb[0].mxu0 %v114
    %v2561 = vpop.f32.mrb[0].mxu0
    %v2562 = vadd.f32 %v2521, %v2561
    %v2563 = vpop.f32.mrb[0].mxu0
    %v2564 = vadd.f32 %v2523, %v2563
    %v2565 = vpop.f32.mrb[0].mxu0
    %v2566 = vpop.f32.mrb[0].mxu0
    %2567 = vdwg.mxu0
    %2568 = vmatprep.subr.bf16.mxu0 %v1975
    %2569 = vmatpush1.bf16.msra.mxu0 %v1974
    %2570 = vmatprep.subr.bf16.mxu0 %v1983
    %2571 = vmatpush1.bf16.msra.mxu0 %v1982
    %2572 = vmatprep.subr.bf16.mxu0 %v1991
    %2573 = vmatpush1.bf16.msra.mxu0 %v1990
    %2574 = vmatprep.subr.bf16.mxu0 %v1999
    %2575 = vmatpush1.bf16.msra.mxu0 %v1998
    %2576 = vmatprep.subr.bf16.mxu0 %v2007
    %2577 = vmatpush1.bf16.msra.mxu0 %v2006
    %2578 = vmatprep.subr.bf16.mxu0 %v2015
    %2579 = vmatpush1.bf16.msra.mxu0 %v2014
    %2580 = vmatprep.subr.bf16.mxu0 %v2023
    %2581 = vmatpush1.bf16.msra.mxu0 %v2022
    %2582 = vmatprep.subr.bf16.mxu0 %v2031
    %2583 = vmatpush1.bf16.msra.mxu0 %v2030
    %2584 = vmatprep.subr.bf16.mxu0 %v2039
    %2585 = vmatpush1.bf16.msra.mxu0 %v2038
    %2586 = vmatprep.subr.bf16.mxu0 %v2047
    %2587 = vmatpush1.bf16.msra.mxu0 %v2046
    %2588 = vmatprep.subr.bf16.mxu0 %v2055
    %2589 = vmatpush1.bf16.msra.mxu0 %v2054
    %2590 = vmatprep.subr.bf16.mxu0 %v2063
    %2591 = vmatpush1.bf16.msra.mxu0 %v2062
    %2592 = vmatprep.subr.bf16.mxu0 %v2071
    %2593 = vmatpush1.bf16.msra.mxu0 %v2070
    %2594 = vmatprep.subr.bf16.mxu0 %v2079
    %2595 = vmatpush1.bf16.msra.mxu0 %v2078
    %2596 = vmatprep.subr.bf16.mxu0 %v2087
    %2597 = vmatpush1.bf16.msra.mxu0 %v2086
    %2598 = vmatprep.subr.bf16.mxu0 %v2095
    %2599 = vmatpush1.bf16.msra.mxu0 %v2094
    %2600 = vmatprep.mubr.bf16.mxu0 %v117
    %2601 = vmatmul.mubr.bf16.gmra.mrb[0].mxu0 %v116
    %v2602 = vpop.f32.mrb[0].mxu0
    %v2603 = vadd.f32 %v2562, %v2602
    %v2604 = vpop.f32.mrb[0].mxu0
    %v2605 = vadd.f32 %v2564, %v2604
    %v2606 = vpop.f32.mrb[0].mxu0
    %v2607 = vpop.f32.mrb[0].mxu0
    %2608 = vdwg.mxu0
    %2609 = vmatprep.subr.bf16.mxu0 %v1721
    %2610 = vmatpush1.bf16.msra.mxu0 %v1720
    %2611 = vmatprep.subr.bf16.mxu0 %v1729
    %2612 = vmatpush1.bf16.msra.mxu0 %v1728
    %2613 = vmatprep.subr.bf16.mxu0 %v1737
    %2614 = vmatpush1.bf16.msra.mxu0 %v1736
    %2615 = vmatprep.subr.bf16.mxu0 %v1745
    %2616 = vmatpush1.bf16.msra.mxu0 %v1744
    %2617 = vmatprep.subr.bf16.mxu0 %v1753
    %2618 = vmatpush1.bf16.msra.mxu0 %v1752
    %2619 = vmatprep.subr.bf16.mxu0 %v1761
    %2620 = vmatpush1.bf16.msra.mxu0 %v1760
    %2621 = vmatprep.subr.bf16.mxu0 %v1769
    %2622 = vmatpush1.bf16.msra.mxu0 %v1768
    %2623 = vmatprep.subr.bf16.mxu0 %v1777
    %2624 = vmatpush1.bf16.msra.mxu0 %v1776
    %2625 = vmatprep.subr.bf16.mxu0 %v1785
    %2626 = vmatpush1.bf16.msra.mxu0 %v1784
    %2627 = vmatprep.subr.bf16.mxu0 %v1793
    %2628 = vmatpush1.bf16.msra.mxu0 %v1792
    %2629 = vmatprep.subr.bf16.mxu0 %v1801
    %2630 = vmatpush1.bf16.msra.mxu0 %v1800
    %2631 = vmatprep.subr.bf16.mxu0 %v1809
    %2632 = vmatpush1.bf16.msra.mxu0 %v1808
    %2633 = vmatprep.subr.bf16.mxu0 %v1817
    %2634 = vmatpush1.bf16.msra.mxu0 %v1816
    %2635 = vmatprep.subr.bf16.mxu0 %v1825
    %2636 = vmatpush1.bf16.msra.mxu0 %v1824
    %2637 = vmatprep.subr.bf16.mxu0 %v1833
    %2638 = vmatpush1.bf16.msra.mxu0 %v1832
    %2639 = vmatprep.subr.bf16.mxu0 %v1841
    %2640 = vmatpush1.bf16.msra.mxu0 %v1840
    %2641 = vmatprep.mubr.bf16.mxu0 %v113
    %2642 = vmatmul.mubr.bf16.gmra.mrb[0].mxu0 %v112
    %v2643 = vpop.f32.mrb[0].mxu0
    %v2644 = vadd.f32 0.0, %v2643
    %v2645 = vpop.f32.mrb[0].mxu0
    %v2646 = vadd.f32 0.0, %v2645
    %v2647 = vpop.f32.mrb[0].mxu0
    %v2648 = vpop.f32.mrb[0].mxu0
    %2649 = vdwg.mxu0
    %2650 = vmatprep.subr.bf16.mxu0 %v1849
    %2651 = vmatpush1.bf16.msra.mxu0 %v1848
    %2652 = vmatprep.subr.bf16.mxu0 %v1857
    %2653 = vmatpush1.bf16.msra.mxu0 %v1856
    %2654 = vmatprep.subr.bf16.mxu0 %v1865
    %2655 = vmatpush1.bf16.msra.mxu0 %v1864
    %2656 = vmatprep.subr.bf16.mxu0 %v1873
    %2657 = vmatpush1.bf16.msra.mxu0 %v1872
    %2658 = vmatprep.subr.bf16.mxu0 %v1881
    %2659 = vmatpush1.bf16.msra.mxu0 %v1880
    %2660 = vmatprep.subr.bf16.mxu0 %v1889
    %2661 = vmatpush1.bf16.msra.mxu0 %v1888
    %2662 = vmatprep.subr.bf16.mxu0 %v1897
    %2663 = vmatpush1.bf16.msra.mxu0 %v1896
    %2664 = vmatprep.subr.bf16.mxu0 %v1905
    %2665 = vmatpush1.bf16.msra.mxu0 %v1904
    %2666 = vmatprep.subr.bf16.mxu0 %v1913
    %2667 = vmatpush1.bf16.msra.mxu0 %v1912
    %2668 = vmatprep.subr.bf16.mxu0 %v1921
    %2669 = vmatpush1.bf16.msra.mxu0 %v1920
    %2670 = vmatprep.subr.bf16.mxu0 %v1929
    %2671 = vmatpush1.bf16.msra.mxu0 %v1928
    %2672 = vmatprep.subr.bf16.mxu0 %v1937
    %2673 = vmatpush1.bf16.msra.mxu0 %v1936
    %2674 = vmatprep.subr.bf16.mxu0 %v1945
    %2675 = vmatpush1.bf16.msra.mxu0 %v1944
    %2676 = vmatprep.subr.bf16.mxu0 %v1953
    %2677 = vmatpush1.bf16.msra.mxu0 %v1952
    %2678 = vmatprep.subr.bf16.mxu0 %v1961
    %2679 = vmatpush1.bf16.msra.mxu0 %v1960
    %2680 = vmatprep.subr.bf16.mxu0 %v1969
    %2681 = vmatpush1.bf16.msra.mxu0 %v1968
    %2682 = vmatprep.mubr.bf16.mxu0 %v115
    %2683 = vmatmul.mubr.bf16.gmra.mrb[0].mxu0 %v114
    %v2684 = vpop.f32.mrb[0].mxu0
    %v2685 = vadd.f32 %v2644, %v2684
    %v2686 = vpop.f32.mrb[0].mxu0
    %v2687 = vadd.f32 %v2646, %v2686
    %v2688 = vpop.f32.mrb[0].mxu0
    %v2689 = vpop.f32.mrb[0].mxu0
    %2690 = vdwg.mxu0
    %2691 = vmatprep.subr.bf16.mxu0 %v1977
    %2692 = vmatpush1.bf16.msra.mxu0 %v1976
    %2693 = vmatprep.subr.bf16.mxu0 %v1985
    %2694 = vmatpush1.bf16.msra.mxu0 %v1984
    %2695 = vmatprep.subr.bf16.mxu0 %v1993
    %2696 = vmatpush1.bf16.msra.mxu0 %v1992
    %2697 = vmatprep.subr.bf16.mxu0 %v2001
    %2698 = vmatpush1.bf16.msra.mxu0 %v2000
    %2699 = vmatprep.subr.bf16.mxu0 %v2009
    %2700 = vmatpush1.bf16.msra.mxu0 %v2008
    %2701 = vmatprep.subr.bf16.mxu0 %v2017
    %2702 = vmatpush1.bf16.msra.mxu0 %v2016
    %2703 = vmatprep.subr.bf16.mxu0 %v2025
    %2704 = vmatpush1.bf16.msra.mxu0 %v2024
    %2705 = vmatprep.subr.bf16.mxu0 %v2033
    %2706 = vmatpush1.bf16.msra.mxu0 %v2032
    %2707 = vmatprep.subr.bf16.mxu0 %v2041
    %2708 = vmatpush1.bf16.msra.mxu0 %v2040
    %2709 = vmatprep.subr.bf16.mxu0 %v2049
    %2710 = vmatpush1.bf16.msra.mxu0 %v2048
    %2711 = vmatprep.subr.bf16.mxu0 %v2057
    %2712 = vmatpush1.bf16.msra.mxu0 %v2056
    %2713 = vmatprep.subr.bf16.mxu0 %v2065
    %2714 = vmatpush1.bf16.msra.mxu0 %v2064
    %2715 = vmatprep.subr.bf16.mxu0 %v2073
    %2716 = vmatpush1.bf16.msra.mxu0 %v2072
    %2717 = vmatprep.subr.bf16.mxu0 %v2081
    %2718 = vmatpush1.bf16.msra.mxu0 %v2080
    %2719 = vmatprep.subr.bf16.mxu0 %v2089
    %2720 = vmatpush1.bf16.msra.mxu0 %v2088
    %2721 = vmatprep.subr.bf16.mxu0 %v2097
    %2722 = vmatpush1.bf16.msra.mxu0 %v2096
    %2723 = vmatprep.mubr.bf16.mxu0 %v117
    %2724 = vmatmul.mubr.bf16.gmra.mrb[0].mxu0 %v116
    %v2725 = vpop.f32.mrb[0].mxu0
    %v2726 = vadd.f32 %v2685, %v2725
    %v2727 = vpop.f32.mrb[0].mxu0
    %v2728 = vadd.f32 %v2687, %v2727
    %v2729 = vpop.f32.mrb[0].mxu0
    %v2730 = vpop.f32.mrb[0].mxu0
    %2731 = vdwg.mxu0
    %2732 = vmatprep.subr.bf16.mxu0 %v1723
    %2733 = vmatpush1.bf16.msra.mxu0 %v1722
    %2734 = vmatprep.subr.bf16.mxu0 %v1731
    %2735 = vmatpush1.bf16.msra.mxu0 %v1730
    %2736 = vmatprep.subr.bf16.mxu0 %v1739
    %2737 = vmatpush1.bf16.msra.mxu0 %v1738
    %2738 = vmatprep.subr.bf16.mxu0 %v1747
    %2739 = vmatpush1.bf16.msra.mxu0 %v1746
    %2740 = vmatprep.subr.bf16.mxu0 %v1755
    %2741 = vmatpush1.bf16.msra.mxu0 %v1754
    %2742 = vmatprep.subr.bf16.mxu0 %v1763
    %2743 = vmatpush1.bf16.msra.mxu0 %v1762
    %2744 = vmatprep.subr.bf16.mxu0 %v1771
    %2745 = vmatpush1.bf16.msra.mxu0 %v1770
    %2746 = vmatprep.subr.bf16.mxu0 %v1779
    %2747 = vmatpush1.bf16.msra.mxu0 %v1778
    %2748 = vmatprep.subr.bf16.mxu0 %v1787
    %2749 = vmatpush1.bf16.msra.mxu0 %v1786
    %2750 = vmatprep.subr.bf16.mxu0 %v1795
    %2751 = vmatpush1.bf16.msra.mxu0 %v1794
    %2752 = vmatprep.subr.bf16.mxu0 %v1803
    %2753 = vmatpush1.bf16.msra.mxu0 %v1802
    %2754 = vmatprep.subr.bf16.mxu0 %v1811
    %2755 = vmatpush1.bf16.msra.mxu0 %v1810
    %2756 = vmatprep.subr.bf16.mxu0 %v1819
    %2757 = vmatpush1.bf16.msra.mxu0 %v1818
    %2758 = vmatprep.subr.bf16.mxu0 %v1827
    %2759 = vmatpush1.bf16.msra.mxu0 %v1826
    %2760 = vmatprep.subr.bf16.mxu0 %v1835
    %2761 = vmatpush1.bf16.msra.mxu0 %v1834
    %2762 = vmatprep.subr.bf16.mxu0 %v1843
    %2763 = vmatpush1.bf16.msra.mxu0 %v1842
    %2764 = vmatprep.mubr.bf16.mxu0 %v113
    %2765 = vmatmul.mubr.bf16.gmra.mrb[0].mxu0 %v112
    %v2766 = vpop.f32.mrb[0].mxu0
    %v2767 = vadd.f32 0.0, %v2766
    %v2768 = vpop.f32.mrb[0].mxu0
    %v2769 = vadd.f32 0.0, %v2768
    %v2770 = vpop.f32.mrb[0].mxu0
    %v2771 = vpop.f32.mrb[0].mxu0
    %2772 = vdwg.mxu0
    %2773 = vmatprep.subr.bf16.mxu0 %v1851
    %2774 = vmatpush1.bf16.msra.mxu0 %v1850
    %2775 = vmatprep.subr.bf16.mxu0 %v1859
    %2776 = vmatpush1.bf16.msra.mxu0 %v1858
    %2777 = vmatprep.subr.bf16.mxu0 %v1867
    %2778 = vmatpush1.bf16.msra.mxu0 %v1866
    %2779 = vmatprep.subr.bf16.mxu0 %v1875
    %2780 = vmatpush1.bf16.msra.mxu0 %v1874
    %2781 = vmatprep.subr.bf16.mxu0 %v1883
    %2782 = vmatpush1.bf16.msra.mxu0 %v1882
    %2783 = vmatprep.subr.bf16.mxu0 %v1891
    %2784 = vmatpush1.bf16.msra.mxu0 %v1890
    %2785 = vmatprep.subr.bf16.mxu0 %v1899
    %2786 = vmatpush1.bf16.msra.mxu0 %v1898
    %2787 = vmatprep.subr.bf16.mxu0 %v1907
    %2788 = vmatpush1.bf16.msra.mxu0 %v1906
    %2789 = vmatprep.subr.bf16.mxu0 %v1915
    %2790 = vmatpush1.bf16.msra.mxu0 %v1914
    %2791 = vmatprep.subr.bf16.mxu0 %v1923
    %2792 = vmatpush1.bf16.msra.mxu0 %v1922
    %2793 = vmatprep.subr.bf16.mxu0 %v1931
    %2794 = vmatpush1.bf16.msra.mxu0 %v1930
    %2795 = vmatprep.subr.bf16.mxu0 %v1939
    %2796 = vmatpush1.bf16.msra.mxu0 %v1938
    %2797 = vmatprep.subr.bf16.mxu0 %v1947
    %2798 = vmatpush1.bf16.msra.mxu0 %v1946
    %2799 = vmatprep.subr.bf16.mxu0 %v1955
    %2800 = vmatpush1.bf16.msra.mxu0 %v1954
    %2801 = vmatprep.subr.bf16.mxu0 %v1963
    %2802 = vmatpush1.bf16.msra.mxu0 %v1962
    %2803 = vmatprep.subr.bf16.mxu0 %v1971
    %2804 = vmatpush1.bf16.msra.mxu0 %v1970
    %2805 = vmatprep.mubr.bf16.mxu0 %v115
    %2806 = vmatmul.mubr.bf16.gmra.mrb[0].mxu0 %v114
    %v2807 = vpop.f32.mrb[0].mxu0
    %v2808 = vadd.f32 %v2767, %v2807
    %v2809 = vpop.f32.mrb[0].mxu0
    %v2810 = vadd.f32 %v2769, %v2809
    %v2811 = vpop.f32.mrb[0].mxu0
    %v2812 = vpop.f32.mrb[0].mxu0
    %2813 = vdwg.mxu0
    %2814 = vmatprep.subr.bf16.mxu0 %v1979
    %2815 = vmatpush1.bf16.msra.mxu0 %v1978
    %2816 = vmatprep.subr.bf16.mxu0 %v1987
    %2817 = vmatpush1.bf16.msra.mxu0 %v1986
    %2818 = vmatprep.subr.bf16.mxu0 %v1995
    %2819 = vmatpush1.bf16.msra.mxu0 %v1994
    %2820 = vmatprep.subr.bf16.mxu0 %v2003
    %2821 = vmatpush1.bf16.msra.mxu0 %v2002
    %2822 = vmatprep.subr.bf16.mxu0 %v2011
    %2823 = vmatpush1.bf16.msra.mxu0 %v2010
    %2824 = vmatprep.subr.bf16.mxu0 %v2019
    %2825 = vmatpush1.bf16.msra.mxu0 %v2018
    %2826 = vmatprep.subr.bf16.mxu0 %v2027
    %2827 = vmatpush1.bf16.msra.mxu0 %v2026
    %2828 = vmatprep.subr.bf16.mxu0 %v2035
    %2829 = vmatpush1.bf16.msra.mxu0 %v2034
    %2830 = vmatprep.subr.bf16.mxu0 %v2043
    %2831 = vmatpush1.bf16.msra.mxu0 %v2042
    %2832 = vmatprep.subr.bf16.mxu0 %v2051
    %2833 = vmatpush1.bf16.msra.mxu0 %v2050
    %2834 = vmatprep.subr.bf16.mxu0 %v2059
    %2835 = vmatpush1.bf16.msra.mxu0 %v2058
    %2836 = vmatprep.subr.bf16.mxu0 %v2067
    %2837 = vmatpush1.bf16.msra.mxu0 %v2066
    %2838 = vmatprep.subr.bf16.mxu0 %v2075
    %2839 = vmatpush1.bf16.msra.mxu0 %v2074
    %2840 = vmatprep.subr.bf16.mxu0 %v2083
    %2841 = vmatpush1.bf16.msra.mxu0 %v2082
    %2842 = vmatprep.subr.bf16.mxu0 %v2091
    %2843 = vmatpush1.bf16.msra.mxu0 %v2090
    %2844 = vmatprep.subr.bf16.mxu0 %v2099
    %2845 = vmatpush1.bf16.msra.mxu0 %v2098
    %2846 = vmatprep.mubr.bf16.mxu0 %v117
    %2847 = vmatmul.mubr.bf16.gmra.mrb[0].mxu0 %v116
    %v2848 = vpop.f32.mrb[0].mxu0
    %v2849 = vadd.f32 %v2808, %v2848
    %v2850 = vpop.f32.mrb[0].mxu0
    %v2851 = vadd.f32 %v2810, %v2850
    %v2852 = vpop.f32.mrb[0].mxu0
    %v2853 = vpop.f32.mrb[0].mxu0
    %2854 = vdwg.mxu0
    %2855 = vmatprep.subr.bf16.mxu0 %v1725
    %2856 = vmatpush1.bf16.msra.mxu0 %v1724
    %2857 = vmatprep.subr.bf16.mxu0 %v1733
    %2858 = vmatpush1.bf16.msra.mxu0 %v1732
    %2859 = vmatprep.subr.bf16.mxu0 %v1741
    %2860 = vmatpush1.bf16.msra.mxu0 %v1740
    %2861 = vmatprep.subr.bf16.mxu0 %v1749
    %2862 = vmatpush1.bf16.msra.mxu0 %v1748
    %2863 = vmatprep.subr.bf16.mxu0 %v1757
    %2864 = vmatpush1.bf16.msra.mxu0 %v1756
    %2865 = vmatprep.subr.bf16.mxu0 %v1765
    %2866 = vmatpush1.bf16.msra.mxu0 %v1764
    %2867 = vmatprep.subr.bf16.mxu0 %v1773
    %2868 = vmatpush1.bf16.msra.mxu0 %v1772
    %2869 = vmatprep.subr.bf16.mxu0 %v1781
    %2870 = vmatpush1.bf16.msra.mxu0 %v1780
    %2871 = vmatprep.subr.bf16.mxu0 %v1789
    %2872 = vmatpush1.bf16.msra.mxu0 %v1788
    %2873 = vmatprep.subr.bf16.mxu0 %v1797
    %2874 = vmatpush1.bf16.msra.mxu0 %v1796
    %2875 = vmatprep.subr.bf16.mxu0 %v1805
    %2876 = vmatpush1.bf16.msra.mxu0 %v1804
    %2877 = vmatprep.subr.bf16.mxu0 %v1813
    %2878 = vmatpush1.bf16.msra.mxu0 %v1812
    %2879 = vmatprep.subr.bf16.mxu0 %v1821
    %2880 = vmatpush1.bf16.msra.mxu0 %v1820
    %2881 = vmatprep.subr.bf16.mxu0 %v1829
    %2882 = vmatpush1.bf16.msra.mxu0 %v1828
    %2883 = vmatprep.subr.bf16.mxu0 %v1837
    %2884 = vmatpush1.bf16.msra.mxu0 %v1836
    %2885 = vmatprep.subr.bf16.mxu0 %v1845
    %2886 = vmatpush1.bf16.msra.mxu0 %v1844
    %2887 = vmatprep.mubr.bf16.mxu0 %v113
    %2888 = vmatmul.mubr.bf16.gmra.mrb[0].mxu0 %v112
    %v2889 = vpop.f32.mrb[0].mxu0
    %v2890 = vadd.f32 0.0, %v2889
    %v2891 = vpop.f32.mrb[0].mxu0
    %v2892 = vadd.f32 0.0, %v2891
    %v2893 = vpop.f32.mrb[0].mxu0
    %v2894 = vpop.f32.mrb[0].mxu0
    %2895 = vdwg.mxu0
    %2896 = vmatprep.subr.bf16.mxu0 %v1853
    %2897 = vmatpush1.bf16.msra.mxu0 %v1852
    %2898 = vmatprep.subr.bf16.mxu0 %v1861
    %2899 = vmatpush1.bf16.msra.mxu0 %v1860
    %2900 = vmatprep.subr.bf16.mxu0 %v1869
    %2901 = vmatpush1.bf16.msra.mxu0 %v1868
    %2902 = vmatprep.subr.bf16.mxu0 %v1877
    %2903 = vmatpush1.bf16.msra.mxu0 %v1876
    %2904 = vmatprep.subr.bf16.mxu0 %v1885
    %2905 = vmatpush1.bf16.msra.mxu0 %v1884
    %2906 = vmatprep.subr.bf16.mxu0 %v1893
    %2907 = vmatpush1.bf16.msra.mxu0 %v1892
    %2908 = vmatprep.subr.bf16.mxu0 %v1901
    %2909 = vmatpush1.bf16.msra.mxu0 %v1900
    %2910 = vmatprep.subr.bf16.mxu0 %v1909
    %2911 = vmatpush1.bf16.msra.mxu0 %v1908
    %2912 = vmatprep.subr.bf16.mxu0 %v1917
    %2913 = vmatpush1.bf16.msra.mxu0 %v1916
    %2914 = vmatprep.subr.bf16.mxu0 %v1925
    %2915 = vmatpush1.bf16.msra.mxu0 %v1924
    %2916 = vmatprep.subr.bf16.mxu0 %v1933
    %2917 = vmatpush1.bf16.msra.mxu0 %v1932
    %2918 = vmatprep.subr.bf16.mxu0 %v1941
    %2919 = vmatpush1.bf16.msra.mxu0 %v1940
    %2920 = vmatprep.subr.bf16.mxu0 %v1949
    %2921 = vmatpush1.bf16.msra.mxu0 %v1948
    %2922 = vmatprep.subr.bf16.mxu0 %v1957
    %2923 = vmatpush1.bf16.msra.mxu0 %v1956
    %2924 = vmatprep.subr.bf16.mxu0 %v1965
    %2925 = vmatpush1.bf16.msra.mxu0 %v1964
    %2926 = vmatprep.subr.bf16.mxu0 %v1973
    %2927 = vmatpush1.bf16.msra.mxu0 %v1972
    %2928 = vmatprep.mubr.bf16.mxu0 %v115
    %2929 = vmatmul.mubr.bf16.gmra.mrb[0].mxu0 %v114
    %v2930 = vpop.f32.mrb[0].mxu0
    %v2931 = vadd.f32 %v2890, %v2930
    %v2932 = vpop.f32.mrb[0].mxu0
    %v2933 = vadd.f32 %v2892, %v2932
    %v2934 = vpop.f32.mrb[0].mxu0
    %v2935 = vpop.f32.mrb[0].mxu0
    %2936 = vdwg.mxu0
    %2937 = vmatprep.subr.bf16.mxu0 %v1981
    %2938 = vmatpush1.bf16.msra.mxu0 %v1980
    %2939 = vmatprep.subr.bf16.mxu0 %v1989
    %2940 = vmatpush1.bf16.msra.mxu0 %v1988
    %2941 = vmatprep.subr.bf16.mxu0 %v1997
    %2942 = vmatpush1.bf16.msra.mxu0 %v1996
    %2943 = vmatprep.subr.bf16.mxu0 %v2005
    %2944 = vmatpush1.bf16.msra.mxu0 %v2004
    %2945 = vmatprep.subr.bf16.mxu0 %v2013
    %2946 = vmatpush1.bf16.msra.mxu0 %v2012
    %2947 = vmatprep.subr.bf16.mxu0 %v2021
    %2948 = vmatpush1.bf16.msra.mxu0 %v2020
    %2949 = vmatprep.subr.bf16.mxu0 %v2029
    %2950 = vmatpush1.bf16.msra.mxu0 %v2028
    %2951 = vmatprep.subr.bf16.mxu0 %v2037
    %2952 = vmatpush1.bf16.msra.mxu0 %v2036
    %2953 = vmatprep.subr.bf16.mxu0 %v2045
    %2954 = vmatpush1.bf16.msra.mxu0 %v2044
    %2955 = vmatprep.subr.bf16.mxu0 %v2053
    %2956 = vmatpush1.bf16.msra.mxu0 %v2052
    %2957 = vmatprep.subr.bf16.mxu0 %v2061
    %2958 = vmatpush1.bf16.msra.mxu0 %v2060
    %2959 = vmatprep.subr.bf16.mxu0 %v2069
    %2960 = vmatpush1.bf16.msra.mxu0 %v2068
    %2961 = vmatprep.subr.bf16.mxu0 %v2077
    %2962 = vmatpush1.bf16.msra.mxu0 %v2076
    %2963 = vmatprep.subr.bf16.mxu0 %v2085
    %2964 = vmatpush1.bf16.msra.mxu0 %v2084
    %2965 = vmatprep.subr.bf16.mxu0 %v2093
    %2966 = vmatpush1.bf16.msra.mxu0 %v2092
    %2967 = vmatprep.subr.bf16.mxu0 %v2101
    %2968 = vmatpush1.bf16.msra.mxu0 %v2100
    %2969 = vmatprep.mubr.bf16.mxu0 %v117
    %2970 = vmatmul.mubr.bf16.gmra.mrb[0].mxu0 %v116
    %v2971 = vpop.f32.mrb[0].mxu0
    %v2972 = vadd.f32 %v2931, %v2971
    %v2973 = vpop.f32.mrb[0].mxu0
    %v2974 = vadd.f32 %v2933, %v2973
    %v2975 = vpop.f32.mrb[0].mxu0
    %v2976 = vpop.f32.mrb[0].mxu0
    %2977 = vdwg.mxu0
    %v3042 = vunpack.c.l.b16 %v118
    %v3043 = vunpack.c.h.b16 %v118
    %v3044 = vunpack.c.l.b16 %v119
    %v3045 = vunpack.c.h.b16 %v119
    %v3046 = vunpack.c.l.b16 %v120
    %v3047 = vunpack.c.h.b16 %v120
    %v3048 = vunpack.c.l.b16 %v121
    %v3049 = vunpack.c.h.b16 %v121
    %v3050 = vunpack.c.l.b16 %v122
    %v3051 = vunpack.c.h.b16 %v122
    %v3052 = vunpack.c.l.b16 %v123
    %v3053 = vunpack.c.h.b16 %v123
    %v3054 = vunpack.c.l.b16 %v124
    %v3055 = vunpack.c.h.b16 %v124
    %v3056 = vunpack.c.l.b16 %v125
    %v3057 = vunpack.c.h.b16 %v125
    %v3058 = vunpack.c.l.b16 %v126
    %v3059 = vunpack.c.h.b16 %v126
    %v3060 = vunpack.c.l.b16 %v127
    %v3061 = vunpack.c.h.b16 %v127
    %v3062 = vunpack.c.l.b16 %v128
    %v3063 = vunpack.c.h.b16 %v128
    %v3064 = vunpack.c.l.b16 %v129
    %v3065 = vunpack.c.h.b16 %v129
    %v3066 = vunpack.c.l.b16 %v130
    %v3067 = vunpack.c.h.b16 %v130
    %v3068 = vunpack.c.l.b16 %v131
    %v3069 = vunpack.c.h.b16 %v131
    %v3070 = vunpack.c.l.b16 %v132
    %v3071 = vunpack.c.h.b16 %v132
    %v3072 = vunpack.c.l.b16 %v133
    %v3073 = vunpack.c.h.b16 %v133
    %v3074 = vunpack.c.l.b16 %v134
    %v3075 = vunpack.c.h.b16 %v134
    %v3076 = vunpack.c.l.b16 %v135
    %v3077 = vunpack.c.h.b16 %v135
    %v3078 = vunpack.c.l.b16 %v136
    %v3079 = vunpack.c.h.b16 %v136
    %v3080 = vunpack.c.l.b16 %v137
    %v3081 = vunpack.c.h.b16 %v137
    %v3082 = vunpack.c.l.b16 %v138
    %v3083 = vunpack.c.h.b16 %v138
    %v3084 = vunpack.c.l.b16 %v139
    %v3085 = vunpack.c.h.b16 %v139
    %v3086 = vunpack.c.l.b16 %v140
    %v3087 = vunpack.c.h.b16 %v140
    %v3088 = vunpack.c.l.b16 %v141
    %v3089 = vunpack.c.h.b16 %v141
    %v3090 = vunpack.c.l.b16 %v142
    %v3091 = vunpack.c.h.b16 %v142
    %v3092 = vunpack.c.l.b16 %v143
    %v3093 = vunpack.c.h.b16 %v143
    %v3094 = vunpack.c.l.b16 %v144
    %v3095 = vunpack.c.h.b16 %v144
    %v3096 = vunpack.c.l.b16 %v145
    %v3097 = vunpack.c.h.b16 %v145
    %v3098 = vunpack.c.l.b16 %v146
    %v3099 = vunpack.c.h.b16 %v146
    %v3100 = vunpack.c.l.b16 %v147
    %v3101 = vunpack.c.h.b16 %v147
    %v3102 = vunpack.c.l.b16 %v148
    %v3103 = vunpack.c.h.b16 %v148
    %v3104 = vunpack.c.l.b16 %v149
    %v3105 = vunpack.c.h.b16 %v149
    %v3106 = vunpack.c.l.b16 %v150
    %v3107 = vunpack.c.h.b16 %v150
    %v3108 = vunpack.c.l.b16 %v151
    %v3109 = vunpack.c.h.b16 %v151
    %v3110 = vunpack.c.l.b16 %v152
    %v3111 = vunpack.c.h.b16 %v152
    %v3112 = vunpack.c.l.b16 %v153
    %v3113 = vunpack.c.h.b16 %v153
    %v3114 = vunpack.c.l.b16 %v154
    %v3115 = vunpack.c.h.b16 %v154
    %v3116 = vunpack.c.l.b16 %v155
    %v3117 = vunpack.c.h.b16 %v155
    %v3118 = vunpack.c.l.b16 %v156
    %v3119 = vunpack.c.h.b16 %v156
    %v3120 = vunpack.c.l.b16 %v157
    %v3121 = vunpack.c.h.b16 %v157
    %v3122 = vunpack.c.l.b16 %v158
    %v3123 = vunpack.c.h.b16 %v158
    %v3124 = vunpack.c.l.b16 %v159
    %v3125 = vunpack.c.h.b16 %v159
    %v3126 = vunpack.c.l.b16 %v160
    %v3127 = vunpack.c.h.b16 %v160
    %v3128 = vunpack.c.l.b16 %v161
    %v3129 = vunpack.c.h.b16 %v161
    %v3130 = vunpack.c.l.b16 %v162
    %v3131 = vunpack.c.h.b16 %v162
    %v3132 = vunpack.c.l.b16 %v163
    %v3133 = vunpack.c.h.b16 %v163
    %v3134 = vunpack.c.l.b16 %v164
    %v3135 = vunpack.c.h.b16 %v164
    %v3136 = vunpack.c.l.b16 %v165
    %v3137 = vunpack.c.h.b16 %v165
    %v3138 = vunpack.c.l.b16 %v166
    %v3139 = vunpack.c.h.b16 %v166
    %v3140 = vunpack.c.l.b16 %v167
    %v3141 = vunpack.c.h.b16 %v167
    %v3142 = vunpack.c.l.b16 %v168
    %v3143 = vunpack.c.h.b16 %v168
    %v3144 = vunpack.c.l.b16 %v169
    %v3145 = vunpack.c.h.b16 %v169
    %v3146 = vunpack.c.l.b16 %v170
    %v3147 = vunpack.c.h.b16 %v170
    %v3148 = vunpack.c.l.b16 %v171
    %v3149 = vunpack.c.h.b16 %v171
    %v3150 = vunpack.c.l.b16 %v172
    %v3151 = vunpack.c.h.b16 %v172
    %v3152 = vunpack.c.l.b16 %v173
    %v3153 = vunpack.c.h.b16 %v173
    %v3154 = vunpack.c.l.b16 %v174
    %v3155 = vunpack.c.h.b16 %v174
    %v3156 = vunpack.c.l.b16 %v175
    %v3157 = vunpack.c.h.b16 %v175
    %v3158 = vunpack.c.l.b16 %v176
    %v3159 = vunpack.c.h.b16 %v176
    %v3160 = vunpack.c.l.b16 %v177
    %v3161 = vunpack.c.h.b16 %v177
    %v3162 = vunpack.c.l.b16 %v178
    %v3163 = vunpack.c.h.b16 %v178
    %v3164 = vunpack.c.l.b16 %v179
    %v3165 = vunpack.c.h.b16 %v179
    %v3166 = vunpack.c.l.b16 %v180
    %v3167 = vunpack.c.h.b16 %v180
    %v3168 = vunpack.c.l.b16 %v181
    %v3169 = vunpack.c.h.b16 %v181
    %v3170 = vpack.c.b16 %v3050, %v3042
    %v3171 = vpack.c.b16 %v3051, %v3043
    %v3172 = vpack.c.b16 %v3052, %v3044
    %v3173 = vpack.c.b16 %v3053, %v3045
    %v3174 = vpack.c.b16 %v3054, %v3046
    %v3175 = vpack.c.b16 %v3055, %v3047
    %v3176 = vpack.c.b16 %v3056, %v3048
    %v3177 = vpack.c.b16 %v3057, %v3049
    %v3178 = vpack.c.b16 %v3066, %v3058
    %v3179 = vpack.c.b16 %v3067, %v3059
    %v3180 = vpack.c.b16 %v3068, %v3060
    %v3181 = vpack.c.b16 %v3069, %v3061
    %v3182 = vpack.c.b16 %v3070, %v3062
    %v3183 = vpack.c.b16 %v3071, %v3063
    %v3184 = vpack.c.b16 %v3072, %v3064
    %v3185 = vpack.c.b16 %v3073, %v3065
    %v3186 = vpack.c.b16 %v3082, %v3074
    %v3187 = vpack.c.b16 %v3083, %v3075
    %v3188 = vpack.c.b16 %v3084, %v3076
    %v3189 = vpack.c.b16 %v3085, %v3077
    %v3190 = vpack.c.b16 %v3086, %v3078
    %v3191 = vpack.c.b16 %v3087, %v3079
    %v3192 = vpack.c.b16 %v3088, %v3080
    %v3193 = vpack.c.b16 %v3089, %v3081
    %v3194 = vpack.c.b16 %v3098, %v3090
    %v3195 = vpack.c.b16 %v3099, %v3091
    %v3196 = vpack.c.b16 %v3100, %v3092
    %v3197 = vpack.c.b16 %v3101, %v3093
    %v3198 = vpack.c.b16 %v3102, %v3094
    %v3199 = vpack.c.b16 %v3103, %v3095
    %v3200 = vpack.c.b16 %v3104, %v3096
    %v3201 = vpack.c.b16 %v3105, %v3097
    %v3202 = vpack.c.b16 %v3114, %v3106
    %v3203 = vpack.c.b16 %v3115, %v3107
    %v3204 = vpack.c.b16 %v3116, %v3108
    %v3205 = vpack.c.b16 %v3117, %v3109
    %v3206 = vpack.c.b16 %v3118, %v3110
    %v3207 = vpack.c.b16 %v3119, %v3111
    %v3208 = vpack.c.b16 %v3120, %v3112
    %v3209 = vpack.c.b16 %v3121, %v3113
    %v3210 = vpack.c.b16 %v3130, %v3122
    %v3211 = vpack.c.b16 %v3131, %v3123
    %v3212 = vpack.c.b16 %v3132, %v3124
    %v3213 = vpack.c.b16 %v3133, %v3125
    %v3214 = vpack.c.b16 %v3134, %v3126
    %v3215 = vpack.c.b16 %v3135, %v3127
    %v3216 = vpack.c.b16 %v3136, %v3128
    %v3217 = vpack.c.b16 %v3137, %v3129
    %v3218 = vpack.c.b16 %v3146, %v3138
    %v3219 = vpack.c.b16 %v3147, %v3139
    %v3220 = vpack.c.b16 %v3148, %v3140
    %v3221 = vpack.c.b16 %v3149, %v3141
    %v3222 = vpack.c.b16 %v3150, %v3142
    %v3223 = vpack.c.b16 %v3151, %v3143
    %v3224 = vpack.c.b16 %v3152, %v3144
    %v3225 = vpack.c.b16 %v3153, %v3145
    %v3226 = vpack.c.b16 %v3162, %v3154
    %v3227 = vpack.c.b16 %v3163, %v3155
    %v3228 = vpack.c.b16 %v3164, %v3156
    %v3229 = vpack.c.b16 %v3165, %v3157
    %v3230 = vpack.c.b16 %v3166, %v3158
    %v3231 = vpack.c.b16 %v3167, %v3159
    %v3232 = vpack.c.b16 %v3168, %v3160
    %v3233 = vpack.c.b16 %v3169, %v3161
    %3298 = vmatprep.subr.bf16.mxu0 %v3171
    %3299 = vmatpush1.bf16.msra.mxu0 %v3170
    %3300 = vmatprep.subr.bf16.mxu0 %v3179
    %3301 = vmatpush1.bf16.msra.mxu0 %v3178
    %3302 = vmatprep.subr.bf16.mxu0 %v3187
    %3303 = vmatpush1.bf16.msra.mxu0 %v3186
    %3304 = vmatprep.subr.bf16.mxu0 %v3195
    %3305 = vmatpush1.bf16.msra.mxu0 %v3194
    %3306 = vmatprep.subr.bf16.mxu0 %v3203
    %3307 = vmatpush1.bf16.msra.mxu0 %v3202
    %3308 = vmatprep.subr.bf16.mxu0 %v3211
    %3309 = vmatpush1.bf16.msra.mxu0 %v3210
    %3310 = vmatprep.subr.bf16.mxu0 %v3219
    %3311 = vmatpush1.bf16.msra.mxu0 %v3218
    %3312 = vmatprep.subr.bf16.mxu0 %v3227
    %3313 = vmatpush1.bf16.msra.mxu0 %v3226
    %3314 = vmatprep.subr.bf16.mxu0 0
    %3315 = vmatpush1.bf16.msra.mxu0 0
    %3316 = vmatprep.subr.bf16.mxu0 0
    %3317 = vmatpush1.bf16.msra.mxu0 0
    %3318 = vmatprep.subr.bf16.mxu0 0
    %3319 = vmatpush1.bf16.msra.mxu0 0
    %3320 = vmatprep.subr.bf16.mxu0 0
    %3321 = vmatpush1.bf16.msra.mxu0 0
    %3322 = vmatprep.subr.bf16.mxu0 0
    %3323 = vmatpush1.bf16.msra.mxu0 0
    %3324 = vmatprep.subr.bf16.mxu0 0
    %3325 = vmatpush1.bf16.msra.mxu0 0
    %3326 = vmatprep.subr.bf16.mxu0 0
    %3327 = vmatpush1.bf16.msra.mxu0 0
    %3328 = vmatprep.subr.bf16.mxu0 0
    %3329 = vmatpush1.bf16.msra.mxu0 0
    %3330 = vmatprep.mubr.bf16.mxu0 0
    %3331 = vmatmul.mubr.bf16.gmra.mrb[0].mxu0 %v105
    %v3332 = vpop.f32.mrb[0].mxu0
    %v3333 = vadd.f32 %v2603, %v3332
    %v3334 = vpop.f32.mrb[0].mxu0
    %v3335 = vadd.f32 %v2605, %v3334
    %v3336 = vpop.f32.mrb[0].mxu0
    %v3337 = vpop.f32.mrb[0].mxu0
    %3338 = vdwg.mxu0
    %3339 = vmatprep.subr.bf16.mxu0 %v3173
    %3340 = vmatpush1.bf16.msra.mxu0 %v3172
    %3341 = vmatprep.subr.bf16.mxu0 %v3181
    %3342 = vmatpush1.bf16.msra.mxu0 %v3180
    %3343 = vmatprep.subr.bf16.mxu0 %v3189
    %3344 = vmatpush1.bf16.msra.mxu0 %v3188
    %3345 = vmatprep.subr.bf16.mxu0 %v3197
    %3346 = vmatpush1.bf16.msra.mxu0 %v3196
    %3347 = vmatprep.subr.bf16.mxu0 %v3205
    %3348 = vmatpush1.bf16.msra.mxu0 %v3204
    %3349 = vmatprep.subr.bf16.mxu0 %v3213
    %3350 = vmatpush1.bf16.msra.mxu0 %v3212
    %3351 = vmatprep.subr.bf16.mxu0 %v3221
    %3352 = vmatpush1.bf16.msra.mxu0 %v3220
    %3353 = vmatprep.subr.bf16.mxu0 %v3229
    %3354 = vmatpush1.bf16.msra.mxu0 %v3228
    %3355 = vmatprep.subr.bf16.mxu0 0
    %3356 = vmatpush1.bf16.msra.mxu0 0
    %3357 = vmatprep.subr.bf16.mxu0 0
    %3358 = vmatpush1.bf16.msra.mxu0 0
    %3359 = vmatprep.subr.bf16.mxu0 0
    %3360 = vmatpush1.bf16.msra.mxu0 0
    %3361 = vmatprep.subr.bf16.mxu0 0
    %3362 = vmatpush1.bf16.msra.mxu0 0
    %3363 = vmatprep.subr.bf16.mxu0 0
    %3364 = vmatpush1.bf16.msra.mxu0 0
    %3365 = vmatprep.subr.bf16.mxu0 0
    %3366 = vmatpush1.bf16.msra.mxu0 0
    %3367 = vmatprep.subr.bf16.mxu0 0
    %3368 = vmatpush1.bf16.msra.mxu0 0
    %3369 = vmatprep.subr.bf16.mxu0 0
    %3370 = vmatpush1.bf16.msra.mxu0 0
    %3371 = vmatprep.mubr.bf16.mxu0 0
    %3372 = vmatmul.mubr.bf16.gmra.mrb[0].mxu0 %v105
    %v3373 = vpop.f32.mrb[0].mxu0
    %v3374 = vadd.f32 %v2726, %v3373
    %v3375 = vpop.f32.mrb[0].mxu0
    %v3376 = vadd.f32 %v2728, %v3375
    %v3377 = vpop.f32.mrb[0].mxu0
    %v3378 = vpop.f32.mrb[0].mxu0
    %3379 = vdwg.mxu0
    %3380 = vmatprep.subr.bf16.mxu0 %v3175
    %3381 = vmatpush1.bf16.msra.mxu0 %v3174
    %3382 = vmatprep.subr.bf16.mxu0 %v3183
    %3383 = vmatpush1.bf16.msra.mxu0 %v3182
    %3384 = vmatprep.subr.bf16.mxu0 %v3191
    %3385 = vmatpush1.bf16.msra.mxu0 %v3190
    %3386 = vmatprep.subr.bf16.mxu0 %v3199
    %3387 = vmatpush1.bf16.msra.mxu0 %v3198
    %3388 = vmatprep.subr.bf16.mxu0 %v3207
    %3389 = vmatpush1.bf16.msra.mxu0 %v3206
    %3390 = vmatprep.subr.bf16.mxu0 %v3215
    %3391 = vmatpush1.bf16.msra.mxu0 %v3214
    %3392 = vmatprep.subr.bf16.mxu0 %v3223
    %3393 = vmatpush1.bf16.msra.mxu0 %v3222
    %3394 = vmatprep.subr.bf16.mxu0 %v3231
    %3395 = vmatpush1.bf16.msra.mxu0 %v3230
    %3396 = vmatprep.subr.bf16.mxu0 0
    %3397 = vmatpush1.bf16.msra.mxu0 0
    %3398 = vmatprep.subr.bf16.mxu0 0
    %3399 = vmatpush1.bf16.msra.mxu0 0
    %3400 = vmatprep.subr.bf16.mxu0 0
    %3401 = vmatpush1.bf16.msra.mxu0 0
    %3402 = vmatprep.subr.bf16.mxu0 0
    %3403 = vmatpush1.bf16.msra.mxu0 0
    %3404 = vmatprep.subr.bf16.mxu0 0
    %3405 = vmatpush1.bf16.msra.mxu0 0
    %3406 = vmatprep.subr.bf16.mxu0 0
    %3407 = vmatpush1.bf16.msra.mxu0 0
    %3408 = vmatprep.subr.bf16.mxu0 0
    %3409 = vmatpush1.bf16.msra.mxu0 0
    %3410 = vmatprep.subr.bf16.mxu0 0
    %3411 = vmatpush1.bf16.msra.mxu0 0
    %3412 = vmatprep.mubr.bf16.mxu0 0
    %3413 = vmatmul.mubr.bf16.gmra.mrb[0].mxu0 %v105
    %v3414 = vpop.f32.mrb[0].mxu0
    %v3415 = vadd.f32 %v2849, %v3414
    %v3416 = vpop.f32.mrb[0].mxu0
    %v3417 = vadd.f32 %v2851, %v3416
    %v3418 = vpop.f32.mrb[0].mxu0
    %v3419 = vpop.f32.mrb[0].mxu0
    %3420 = vdwg.mxu0
    %3421 = vmatprep.subr.bf16.mxu0 %v3177
    %3422 = vmatpush1.bf16.msra.mxu0 %v3176
    %3423 = vmatprep.subr.bf16.mxu0 %v3185
    %3424 = vmatpush1.bf16.msra.mxu0 %v3184
    %3425 = vmatprep.subr.bf16.mxu0 %v3193
    %3426 = vmatpush1.bf16.msra.mxu0 %v3192
    %3427 = vmatprep.subr.bf16.mxu0 %v3201
    %3428 = vmatpush1.bf16.msra.mxu0 %v3200
    %3429 = vmatprep.subr.bf16.mxu0 %v3209
    %3430 = vmatpush1.bf16.msra.mxu0 %v3208
    %3431 = vmatprep.subr.bf16.mxu0 %v3217
    %3432 = vmatpush1.bf16.msra.mxu0 %v3216
    %3433 = vmatprep.subr.bf16.mxu0 %v3225
    %3434 = vmatpush1.bf16.msra.mxu0 %v3224
    %3435 = vmatprep.subr.bf16.mxu0 %v3233
    %3436 = vmatpush1.bf16.msra.mxu0 %v3232
    %3437 = vmatprep.subr.bf16.mxu0 0
    %3438 = vmatpush1.bf16.msra.mxu0 0
    %3439 = vmatprep.subr.bf16.mxu0 0
    %3440 = vmatpush1.bf16.msra.mxu0 0
    %3441 = vmatprep.subr.bf16.mxu0 0
    %3442 = vmatpush1.bf16.msra.mxu0 0
    %3443 = vmatprep.subr.bf16.mxu0 0
    %3444 = vmatpush1.bf16.msra.mxu0 0
    %3445 = vmatprep.subr.bf16.mxu0 0
    %3446 = vmatpush1.bf16.msra.mxu0 0
    %3447 = vmatprep.subr.bf16.mxu0 0
    %3448 = vmatpush1.bf16.msra.mxu0 0
    %3449 = vmatprep.subr.bf16.mxu0 0
    %3450 = vmatpush1.bf16.msra.mxu0 0
    %3451 = vmatprep.subr.bf16.mxu0 0
    %3452 = vmatpush1.bf16.msra.mxu0 0
    %3453 = vmatprep.mubr.bf16.mxu0 0
    %3454 = vmatmul.mubr.bf16.gmra.mrb[0].mxu0 %v105
    %v3455 = vpop.f32.mrb[0].mxu0
    %v3456 = vadd.f32 %v2972, %v3455
    %v3457 = vpop.f32.mrb[0].mxu0
    %v3458 = vadd.f32 %v2974, %v3457
    %v3459 = vpop.f32.mrb[0].mxu0
    %v3460 = vpop.f32.mrb[0].mxu0
    %3461 = vdwg.mxu0
    %v3462 = vld [vmem:[#allocation8] sm:$0xff]
    %v3464 = vlaneseq
    %v3465 = vshrl.u32 %v3464, 7
    %v3466 = vsub.s32 0, %v3465
    %v3467 = vrot.slane %v3462, %v3466
    %v3468 = vlaneseq
    %v3469 = vshrl.u32 %v3468, 7
    %v3470 = vsub.s32 1, %v3469
    %v3471 = vrot.slane %v3462, %v3470
    %v3472 = vlaneseq
    %v3473 = vshrl.u32 %v3472, 7
    %v3474 = vsub.s32 2, %v3473
    %v3475 = vrot.slane %v3462, %v3474
    %v3476 = vlaneseq
    %v3477 = vshrl.u32 %v3476, 7
    %v3478 = vsub.s32 3, %v3477
    %v3479 = vrot.slane %v3462, %v3478
    %v3480 = vlaneseq
    %v3481 = vshrl.u32 %v3480, 7
    %v3482 = vsub.s32 4, %v3481
    %v3483 = vrot.slane %v3462, %v3482
    %v3484 = vlaneseq
    %v3485 = vshrl.u32 %v3484, 7
    %v3486 = vsub.s32 5, %v3485
    %v3487 = vrot.slane %v3462, %v3486
    %v3488 = vlaneseq
    %v3489 = vshrl.u32 %v3488, 7
    %v3490 = vsub.s32 6, %v3489
    %v3491 = vrot.slane %v3462, %v3490
    %v3492 = vlaneseq
    %v3493 = vshrl.u32 %v3492, 7
    %v3494 = vsub.s32 7, %v3493
    %v3495 = vrot.slane %v3462, %v3494
    %v3504 = vadd.f32 %v3333, %v3467
    %v3505 = vadd.f32 %v3335, %v3471
    %v3506 = vadd.f32 %v3374, %v3475
    %v3507 = vadd.f32 %v3376, %v3479
    %v3508 = vadd.f32 %v3415, %v3483
    %v3509 = vadd.f32 %v3417, %v3487
    %v3510 = vadd.f32 %v3456, %v3491
    %v3511 = vadd.f32 %v3458, %v3495
    %v3512 = vmul.f32 %v3504, 0.01
    %v3513 = vmul.f32 %v3505, 0.01
    %v3514 = vmul.f32 %v3506, 0.01
    %v3515 = vmul.f32 %v3507, 0.01
    %v3516 = vmul.f32 %v3508, 0.01
    %v3517 = vmul.f32 %v3509, 0.01
    %v3518 = vmul.f32 %v3510, 0.01
    %v3519 = vmul.f32 %v3511, 0.01
    %v3520 = vmax.f32 %v3504, %v3512
    %v3521 = vmax.f32 %v3505, %v3513
    %v3522 = vmax.f32 %v3506, %v3514
    %v3523 = vmax.f32 %v3507, %v3515
    %v3524 = vmax.f32 %v3508, %v3516
    %v3525 = vmax.f32 %v3509, %v3517
    %v3526 = vmax.f32 %v3510, %v3518
    %v3527 = vmax.f32 %v3511, %v3519
    %v3528 = vpack.c.bf16 %v3520, %v3520
    %v3529 = vpack.c.bf16 %v3521, %v3521
    %v3530 = vpack.c.bf16 %v3522, %v3522
    %v3531 = vpack.c.bf16 %v3523, %v3523
    %v3532 = vpack.c.bf16 %v3524, %v3524
    %v3533 = vpack.c.bf16 %v3525, %v3525
    %v3534 = vpack.c.bf16 %v3526, %v3526
    %v3535 = vpack.c.bf16 %v3527, %v3527
    %v3536 = vld [vmem:[#allocation10] sm:$0xff]
    %v3537 = vld [vmem:[#allocation10 + $0x8] sm:$0xff]
    %v3538 = vld [vmem:[#allocation10 + $0x10] sm:$0xff]
    %v3539 = vld [vmem:[#allocation10 + $0x18] sm:$0xff]
    %v3540 = vld [vmem:[#allocation10 + $0x20] sm:$0xff]
    %v3541 = vld [vmem:[#allocation10 + $0x28] sm:$0xff]
    %v3542 = vld [vmem:[#allocation10 + $0x30] sm:$0xff]
    %v3543 = vld [vmem:[#allocation10 + $0x38] sm:$0xff]
    %v3544 = vld [vmem:[#allocation10 + $0x40] sm:$0xff]
    %v3545 = vld [vmem:[#allocation10 + $0x48] sm:$0xff]
    %v3546 = vld [vmem:[#allocation10 + $0x50] sm:$0xff]
    %v3547 = vld [vmem:[#allocation10 + $0x58] sm:$0xff]
    %v3548 = vld [vmem:[#allocation10 + $0x60] sm:$0xff]
    %v3549 = vld [vmem:[#allocation10 + $0x68] sm:$0xff]
    %v3550 = vld [vmem:[#allocation10 + $0x70] sm:$0xff]
    %v3551 = vld [vmem:[#allocation10 + $0x78] sm:$0xff]
    %v3552 = vld [vmem:[#allocation10 + $0x80] sm:$0xff]
    %v3553 = vld [vmem:[#allocation10 + $0x88] sm:$0xff]
    %v3554 = vld [vmem:[#allocation10 + $0x90] sm:$0xff]
    %v3555 = vld [vmem:[#allocation10 + $0x98] sm:$0xff]
    %v3556 = vld [vmem:[#allocation10 + $0xa0] sm:$0xff]
    %v3557 = vld [vmem:[#allocation10 + $0xa8] sm:$0xff]
    %v3558 = vld [vmem:[#allocation10 + $0xb0] sm:$0xff]
    %v3559 = vld [vmem:[#allocation10 + $0xb8] sm:$0xff]
    %v3560 = vld [vmem:[#allocation10 + $0xc0] sm:$0xff]
    %v3561 = vld [vmem:[#allocation10 + $0xc8] sm:$0xff]
    %v3562 = vld [vmem:[#allocation10 + $0xd0] sm:$0xff]
    %v3563 = vld [vmem:[#allocation10 + $0xd8] sm:$0xff]
    %v3564 = vld [vmem:[#allocation10 + $0xe0] sm:$0xff]
    %v3565 = vld [vmem:[#allocation10 + $0xe8] sm:$0xff]
    %v3566 = vld [vmem:[#allocation10 + $0xf0] sm:$0xff]
    %v3567 = vld [vmem:[#allocation10 + $0xf8] sm:$0xff]
    %v3568 = vld [vmem:[#allocation10 + $0x100] sm:$0xff]
    %v3569 = vld [vmem:[#allocation10 + $0x108] sm:$0xff]
    %v3570 = vld [vmem:[#allocation10 + $0x110] sm:$0xff]
    %v3571 = vld [vmem:[#allocation10 + $0x118] sm:$0xff]
    %v3572 = vld [vmem:[#allocation10 + $0x120] sm:$0xff]
    %v3573 = vld [vmem:[#allocation10 + $0x128] sm:$0xff]
    %v3574 = vld [vmem:[#allocation10 + $0x130] sm:$0xff]
    %v3575 = vld [vmem:[#allocation10 + $0x138] sm:$0xff]
    %v3576 = vld [vmem:[#allocation10 + $0x140] sm:$0xff]
    %v3577 = vld [vmem:[#allocation10 + $0x148] sm:$0xff]
    %v3578 = vld [vmem:[#allocation10 + $0x150] sm:$0xff]
    %v3579 = vld [vmem:[#allocation10 + $0x158] sm:$0xff]
    %v3580 = vld [vmem:[#allocation10 + $0x160] sm:$0xff]
    %v3581 = vld [vmem:[#allocation10 + $0x168] sm:$0xff]
    %v3582 = vld [vmem:[#allocation10 + $0x170] sm:$0xff]
    %v3583 = vld [vmem:[#allocation10 + $0x178] sm:$0xff]
    %v3584 = vld [vmem:[#allocation10 + $0x180] sm:$0xff]
    %v3585 = vld [vmem:[#allocation10 + $0x188] sm:$0xff]
    %v3586 = vld [vmem:[#allocation10 + $0x190] sm:$0xff]
    %v3587 = vld [vmem:[#allocation10 + $0x198] sm:$0xff]
    %v3588 = vld [vmem:[#allocation10 + $0x1a0] sm:$0xff]
    %v3589 = vld [vmem:[#allocation10 + $0x1a8] sm:$0xff]
    %v3590 = vld [vmem:[#allocation10 + $0x1b0] sm:$0xff]
    %v3591 = vld [vmem:[#allocation10 + $0x1b8] sm:$0xff]
    %v3592 = vld [vmem:[#allocation10 + $0x1c0] sm:$0xff]
    %v3593 = vld [vmem:[#allocation10 + $0x1c8] sm:$0xff]
    %v3594 = vld [vmem:[#allocation10 + $0x1d0] sm:$0xff]
    %v3595 = vld [vmem:[#allocation10 + $0x1d8] sm:$0xff]
    %v3596 = vld [vmem:[#allocation10 + $0x1e0] sm:$0xff]
    %v3597 = vld [vmem:[#allocation10 + $0x1e8] sm:$0xff]
    %v3598 = vld [vmem:[#allocation10 + $0x1f0] sm:$0xff]
    %v3599 = vld [vmem:[#allocation10 + $0x1f8] sm:$0xff]
    %v3600 = vld [vmem:[#allocation10 + $0x200] sm:$0xff]
    %v3601 = vld [vmem:[#allocation10 + $0x208] sm:$0xff]
    %v3602 = vld [vmem:[#allocation10 + $0x210] sm:$0xff]
    %v3603 = vld [vmem:[#allocation10 + $0x218] sm:$0xff]
    %v3604 = vld [vmem:[#allocation10 + $0x220] sm:$0xff]
    %v3605 = vld [vmem:[#allocation10 + $0x228] sm:$0xff]
    %v3606 = vld [vmem:[#allocation10 + $0x230] sm:$0xff]
    %v3607 = vld [vmem:[#allocation10 + $0x238] sm:$0xff]
    %v3608 = vld [vmem:[#allocation10 + $0x240] sm:$0xff]
    %v3609 = vld [vmem:[#allocation10 + $0x248] sm:$0xff]
    %v3610 = vld [vmem:[#allocation10 + $0x250] sm:$0xff]
    %v3611 = vld [vmem:[#allocation10 + $0x258] sm:$0xff]
    %v3612 = vld [vmem:[#allocation10 + $0x260] sm:$0xff]
    %v3613 = vld [vmem:[#allocation10 + $0x268] sm:$0xff]
    %v3614 = vld [vmem:[#allocation10 + $0x270] sm:$0xff]
    %v3615 = vld [vmem:[#allocation10 + $0x278] sm:$0xff]
    %v3616 = vld [vmem:[#allocation10 + $0x280] sm:$0xff]
    %v3617 = vld [vmem:[#allocation10 + $0x288] sm:$0xff]
    %v3618 = vld [vmem:[#allocation10 + $0x290] sm:$0xff]
    %v3619 = vld [vmem:[#allocation10 + $0x298] sm:$0xff]
    %v3620 = vld [vmem:[#allocation10 + $0x2a0] sm:$0xff]
    %v3621 = vld [vmem:[#allocation10 + $0x2a8] sm:$0xff]
    %v3622 = vld [vmem:[#allocation10 + $0x2b0] sm:$0xff]
    %v3623 = vld [vmem:[#allocation10 + $0x2b8] sm:$0xff]
    %v3624 = vld [vmem:[#allocation10 + $0x2c0] sm:$0xff]
    %v3625 = vld [vmem:[#allocation10 + $0x2c8] sm:$0xff]
    %v3626 = vld [vmem:[#allocation10 + $0x2d0] sm:$0xff]
    %v3627 = vld [vmem:[#allocation10 + $0x2d8] sm:$0xff]
    %v3628 = vld [vmem:[#allocation10 + $0x2e0] sm:$0xff]
    %v3629 = vld [vmem:[#allocation10 + $0x2e8] sm:$0xff]
    %v3630 = vld [vmem:[#allocation10 + $0x2f0] sm:$0xff]
    %v3631 = vld [vmem:[#allocation10 + $0x2f8] sm:$0xff]
    %v3632 = vld [vmem:[#allocation10 + $0x300] sm:$0xff]
    %v3633 = vld [vmem:[#allocation10 + $0x308] sm:$0xff]
    %v3634 = vld [vmem:[#allocation10 + $0x310] sm:$0xff]
    %v3635 = vld [vmem:[#allocation10 + $0x318] sm:$0xff]
    %v3636 = vld [vmem:[#allocation10 + $0x320] sm:$0xff]
    %v3637 = vld [vmem:[#allocation10 + $0x328] sm:$0xff]
    %v3638 = vld [vmem:[#allocation10 + $0x330] sm:$0xff]
    %v3639 = vld [vmem:[#allocation10 + $0x338] sm:$0xff]
    %v3640 = vld [vmem:[#allocation10 + $0x340] sm:$0xff]
    %v3641 = vld [vmem:[#allocation10 + $0x348] sm:$0xff]
    %v3642 = vld [vmem:[#allocation10 + $0x350] sm:$0xff]
    %v3643 = vld [vmem:[#allocation10 + $0x358] sm:$0xff]
    %v3644 = vld [vmem:[#allocation10 + $0x360] sm:$0xff]
    %v3645 = vld [vmem:[#allocation10 + $0x368] sm:$0xff]
    %v3646 = vld [vmem:[#allocation10 + $0x370] sm:$0xff]
    %v3647 = vld [vmem:[#allocation10 + $0x378] sm:$0xff]
    %v3648 = vld [vmem:[#allocation10 + $0x380] sm:$0xff]
    %v3649 = vld [vmem:[#allocation10 + $0x388] sm:$0xff]
    %v3650 = vld [vmem:[#allocation10 + $0x390] sm:$0xff]
    %v3651 = vld [vmem:[#allocation10 + $0x398] sm:$0xff]
    %v3652 = vld [vmem:[#allocation10 + $0x3a0] sm:$0xff]
    %v3653 = vld [vmem:[#allocation10 + $0x3a8] sm:$0xff]
    %v3654 = vld [vmem:[#allocation10 + $0x3b0] sm:$0xff]
    %v3655 = vld [vmem:[#allocation10 + $0x3b8] sm:$0xff]
    %v3656 = vld [vmem:[#allocation10 + $0x3c0] sm:$0xff]
    %v3657 = vld [vmem:[#allocation10 + $0x3c8] sm:$0xff]
    %v3658 = vld [vmem:[#allocation10 + $0x3d0] sm:$0xff]
    %v3659 = vld [vmem:[#allocation10 + $0x3d8] sm:$0xff]
    %v3660 = vld [vmem:[#allocation10 + $0x3e0] sm:$0xff]
    %v3661 = vld [vmem:[#allocation10 + $0x3e8] sm:$0xff]
    %v3662 = vld [vmem:[#allocation10 + $0x3f0] sm:$0xff]
    %v3663 = vld [vmem:[#allocation10 + $0x3f8] sm:$0xff]
    %v3664 = vld [vmem:[#allocation10 + $0x400] sm:$0xff]
    %v3665 = vld [vmem:[#allocation10 + $0x408] sm:$0xff]
    %v3666 = vld [vmem:[#allocation10 + $0x410] sm:$0xff]
    %v3667 = vld [vmem:[#allocation10 + $0x418] sm:$0xff]
    %v3668 = vld [vmem:[#allocation10 + $0x420] sm:$0xff]
    %v3669 = vld [vmem:[#allocation10 + $0x428] sm:$0xff]
    %v3670 = vld [vmem:[#allocation10 + $0x430] sm:$0xff]
    %v3671 = vld [vmem:[#allocation10 + $0x438] sm:$0xff]
    %v3672 = vld [vmem:[#allocation10 + $0x440] sm:$0xff]
    %v3673 = vld [vmem:[#allocation10 + $0x448] sm:$0xff]
    %v3674 = vld [vmem:[#allocation10 + $0x450] sm:$0xff]
    %v3675 = vld [vmem:[#allocation10 + $0x458] sm:$0xff]
    %v3676 = vld [vmem:[#allocation10 + $0x460] sm:$0xff]
    %v3677 = vld [vmem:[#allocation10 + $0x468] sm:$0xff]
    %v3678 = vld [vmem:[#allocation10 + $0x470] sm:$0xff]
    %v3679 = vld [vmem:[#allocation10 + $0x478] sm:$0xff]
    %v3680 = vld [vmem:[#allocation10 + $0x480] sm:$0xff]
    %v3681 = vld [vmem:[#allocation10 + $0x488] sm:$0xff]
    %v3682 = vld [vmem:[#allocation10 + $0x490] sm:$0xff]
    %v3683 = vld [vmem:[#allocation10 + $0x498] sm:$0xff]
    %v3684 = vld [vmem:[#allocation10 + $0x4a0] sm:$0xff]
    %v3685 = vld [vmem:[#allocation10 + $0x4a8] sm:$0xff]
    %v3686 = vld [vmem:[#allocation10 + $0x4b0] sm:$0xff]
    %v3687 = vld [vmem:[#allocation10 + $0x4b8] sm:$0xff]
    %v3688 = vld [vmem:[#allocation10 + $0x4c0] sm:$0xff]
    %v3689 = vld [vmem:[#allocation10 + $0x4c8] sm:$0xff]
    %v3690 = vld [vmem:[#allocation10 + $0x4d0] sm:$0xff]
    %v3691 = vld [vmem:[#allocation10 + $0x4d8] sm:$0xff]
    %v3692 = vld [vmem:[#allocation10 + $0x4e0] sm:$0xff]
    %v3693 = vld [vmem:[#allocation10 + $0x4e8] sm:$0xff]
    %v3694 = vld [vmem:[#allocation10 + $0x4f0] sm:$0xff]
    %v3695 = vld [vmem:[#allocation10 + $0x4f8] sm:$0xff]
    %v3696 = vld [vmem:[#allocation10 + $0x500] sm:$0xff]
    %v3697 = vld [vmem:[#allocation10 + $0x508] sm:$0xff]
    %v3698 = vld [vmem:[#allocation10 + $0x510] sm:$0xff]
    %v3699 = vld [vmem:[#allocation10 + $0x518] sm:$0xff]
    %v3700 = vld [vmem:[#allocation10 + $0x520] sm:$0xff]
    %v3701 = vld [vmem:[#allocation10 + $0x528] sm:$0xff]
    %v3702 = vld [vmem:[#allocation10 + $0x530] sm:$0xff]
    %v3703 = vld [vmem:[#allocation10 + $0x538] sm:$0xff]
    %v3704 = vld [vmem:[#allocation10 + $0x540] sm:$0xff]
    %v3705 = vld [vmem:[#allocation10 + $0x548] sm:$0xff]
    %v3706 = vld [vmem:[#allocation10 + $0x550] sm:$0xff]
    %v3707 = vld [vmem:[#allocation10 + $0x558] sm:$0xff]
    %v3708 = vld [vmem:[#allocation10 + $0x560] sm:$0xff]
    %v3709 = vld [vmem:[#allocation10 + $0x568] sm:$0xff]
    %v3710 = vld [vmem:[#allocation10 + $0x570] sm:$0xff]
    %v3711 = vld [vmem:[#allocation10 + $0x578] sm:$0xff]
    %v3712 = vld [vmem:[#allocation10 + $0x580] sm:$0xff]
    %v3713 = vld [vmem:[#allocation10 + $0x588] sm:$0xff]
    %v3714 = vld [vmem:[#allocation10 + $0x590] sm:$0xff]
    %v3715 = vld [vmem:[#allocation10 + $0x598] sm:$0xff]
    %v3716 = vld [vmem:[#allocation10 + $0x5a0] sm:$0xff]
    %v3717 = vld [vmem:[#allocation10 + $0x5a8] sm:$0xff]
    %v3718 = vld [vmem:[#allocation10 + $0x5b0] sm:$0xff]
    %v3719 = vld [vmem:[#allocation10 + $0x5b8] sm:$0xff]
    %v3720 = vld [vmem:[#allocation10 + $0x5c0] sm:$0xff]
    %v3721 = vld [vmem:[#allocation10 + $0x5c8] sm:$0xff]
    %v3722 = vld [vmem:[#allocation10 + $0x5d0] sm:$0xff]
    %v3723 = vld [vmem:[#allocation10 + $0x5d8] sm:$0xff]
    %v3724 = vld [vmem:[#allocation10 + $0x5e0] sm:$0xff]
    %v3725 = vld [vmem:[#allocation10 + $0x5e8] sm:$0xff]
    %v3726 = vld [vmem:[#allocation10 + $0x5f0] sm:$0xff]
    %v3727 = vld [vmem:[#allocation10 + $0x5f8] sm:$0xff]
    %v3728 = vld [vmem:[#allocation10 + $0x600] sm:$0xff]
    %v3729 = vld [vmem:[#allocation10 + $0x608] sm:$0xff]
    %v3730 = vld [vmem:[#allocation10 + $0x610] sm:$0xff]
    %v3731 = vld [vmem:[#allocation10 + $0x618] sm:$0xff]
    %v3732 = vld [vmem:[#allocation10 + $0x620] sm:$0xff]
    %v3733 = vld [vmem:[#allocation10 + $0x628] sm:$0xff]
    %v3734 = vld [vmem:[#allocation10 + $0x630] sm:$0xff]
    %v3735 = vld [vmem:[#allocation10 + $0x638] sm:$0xff]
    %v3736 = vld [vmem:[#allocation10 + $0x640] sm:$0xff]
    %v3737 = vld [vmem:[#allocation10 + $0x648] sm:$0xff]
    %v3738 = vld [vmem:[#allocation10 + $0x650] sm:$0xff]
    %v3739 = vld [vmem:[#allocation10 + $0x658] sm:$0xff]
    %v3740 = vld [vmem:[#allocation10 + $0x660] sm:$0xff]
    %v3741 = vld [vmem:[#allocation10 + $0x668] sm:$0xff]
    %v3742 = vld [vmem:[#allocation10 + $0x670] sm:$0xff]
    %v3743 = vld [vmem:[#allocation10 + $0x678] sm:$0xff]
    %v3744 = vld [vmem:[#allocation10 + $0x680] sm:$0xff]
    %v3745 = vld [vmem:[#allocation10 + $0x688] sm:$0xff]
    %v3746 = vld [vmem:[#allocation10 + $0x690] sm:$0xff]
    %v3747 = vld [vmem:[#allocation10 + $0x698] sm:$0xff]
    %v3748 = vld [vmem:[#allocation10 + $0x6a0] sm:$0xff]
    %v3749 = vld [vmem:[#allocation10 + $0x6a8] sm:$0xff]
    %v3750 = vld [vmem:[#allocation10 + $0x6b0] sm:$0xff]
    %v3751 = vld [vmem:[#allocation10 + $0x6b8] sm:$0xff]
    %v3752 = vld [vmem:[#allocation10 + $0x6c0] sm:$0xff]
    %v3753 = vld [vmem:[#allocation10 + $0x6c8] sm:$0xff]
    %v3754 = vld [vmem:[#allocation10 + $0x6d0] sm:$0xff]
    %v3755 = vld [vmem:[#allocation10 + $0x6d8] sm:$0xff]
    %v3756 = vld [vmem:[#allocation10 + $0x6e0] sm:$0xff]
    %v3757 = vld [vmem:[#allocation10 + $0x6e8] sm:$0xff]
    %v3758 = vld [vmem:[#allocation10 + $0x6f0] sm:$0xff]
    %v3759 = vld [vmem:[#allocation10 + $0x6f8] sm:$0xff]
    %v3760 = vld [vmem:[#allocation10 + $0x700] sm:$0xff]
    %v3761 = vld [vmem:[#allocation10 + $0x708] sm:$0xff]
    %v3762 = vld [vmem:[#allocation10 + $0x710] sm:$0xff]
    %v3763 = vld [vmem:[#allocation10 + $0x718] sm:$0xff]
    %v3764 = vld [vmem:[#allocation10 + $0x720] sm:$0xff]
    %v3765 = vld [vmem:[#allocation10 + $0x728] sm:$0xff]
    %v3766 = vld [vmem:[#allocation10 + $0x730] sm:$0xff]
    %v3767 = vld [vmem:[#allocation10 + $0x738] sm:$0xff]
    %v3768 = vld [vmem:[#allocation10 + $0x740] sm:$0xff]
    %v3769 = vld [vmem:[#allocation10 + $0x748] sm:$0xff]
    %v3770 = vld [vmem:[#allocation10 + $0x750] sm:$0xff]
    %v3771 = vld [vmem:[#allocation10 + $0x758] sm:$0xff]
    %v3772 = vld [vmem:[#allocation10 + $0x760] sm:$0xff]
    %v3773 = vld [vmem:[#allocation10 + $0x768] sm:$0xff]
    %v3774 = vld [vmem:[#allocation10 + $0x770] sm:$0xff]
    %v3775 = vld [vmem:[#allocation10 + $0x778] sm:$0xff]
    %v3776 = vld [vmem:[#allocation10 + $0x780] sm:$0xff]
    %v3777 = vld [vmem:[#allocation10 + $0x788] sm:$0xff]
    %v3778 = vld [vmem:[#allocation10 + $0x790] sm:$0xff]
    %v3779 = vld [vmem:[#allocation10 + $0x798] sm:$0xff]
    %v3780 = vld [vmem:[#allocation10 + $0x7a0] sm:$0xff]
    %v3781 = vld [vmem:[#allocation10 + $0x7a8] sm:$0xff]
    %v3782 = vld [vmem:[#allocation10 + $0x7b0] sm:$0xff]
    %v3783 = vld [vmem:[#allocation10 + $0x7b8] sm:$0xff]
    %v3784 = vld [vmem:[#allocation10 + $0x7c0] sm:$0xff]
    %v3785 = vld [vmem:[#allocation10 + $0x7c8] sm:$0xff]
    %v3786 = vld [vmem:[#allocation10 + $0x7d0] sm:$0xff]
    %v3787 = vld [vmem:[#allocation10 + $0x7d8] sm:$0xff]
    %v3788 = vld [vmem:[#allocation10 + $0x7e0] sm:$0xff]
    %v3789 = vld [vmem:[#allocation10 + $0x7e8] sm:$0xff]
    %v3790 = vld [vmem:[#allocation10 + $0x7f0] sm:$0xff]
    %v3791 = vld [vmem:[#allocation10 + $0x7f8] sm:$0xff]
    %v3792 = vld [vmem:[#allocation10 + $0x800] sm:$0xff]
    %v3793 = vld [vmem:[#allocation10 + $0x808] sm:$0xff]
    %v3794 = vld [vmem:[#allocation10 + $0x810] sm:$0xff]
    %v3795 = vld [vmem:[#allocation10 + $0x818] sm:$0xff]
    %v3796 = vld [vmem:[#allocation10 + $0x820] sm:$0xff]
    %v3797 = vld [vmem:[#allocation10 + $0x828] sm:$0xff]
    %v3798 = vld [vmem:[#allocation10 + $0x830] sm:$0xff]
    %v3799 = vld [vmem:[#allocation10 + $0x838] sm:$0xff]
    %v3800 = vld [vmem:[#allocation10 + $0x840] sm:$0xff]
    %v3801 = vld [vmem:[#allocation10 + $0x848] sm:$0xff]
    %v3802 = vld [vmem:[#allocation10 + $0x850] sm:$0xff]
    %v3803 = vld [vmem:[#allocation10 + $0x858] sm:$0xff]
    %v3804 = vld [vmem:[#allocation10 + $0x860] sm:$0xff]
    %v3805 = vld [vmem:[#allocation10 + $0x868] sm:$0xff]
    %v3806 = vld [vmem:[#allocation10 + $0x870] sm:$0xff]
    %v3807 = vld [vmem:[#allocation10 + $0x878] sm:$0xff]
    %v3808 = vld [vmem:[#allocation10 + $0x880] sm:$0xff]
    %v3809 = vld [vmem:[#allocation10 + $0x888] sm:$0xff]
    %v3810 = vld [vmem:[#allocation10 + $0x890] sm:$0xff]
    %v3811 = vld [vmem:[#allocation10 + $0x898] sm:$0xff]
    %v3812 = vld [vmem:[#allocation10 + $0x8a0] sm:$0xff]
    %v3813 = vld [vmem:[#allocation10 + $0x8a8] sm:$0xff]
    %v3814 = vld [vmem:[#allocation10 + $0x8b0] sm:$0xff]
    %v3815 = vld [vmem:[#allocation10 + $0x8b8] sm:$0xff]
    %v3816 = vld [vmem:[#allocation10 + $0x8c0] sm:$0xff]
    %v3817 = vld [vmem:[#allocation10 + $0x8c8] sm:$0xff]
    %v3818 = vld [vmem:[#allocation10 + $0x8d0] sm:$0xff]
    %v3819 = vld [vmem:[#allocation10 + $0x8d8] sm:$0xff]
    %v3820 = vld [vmem:[#allocation10 + $0x8e0] sm:$0xff]
    %v3821 = vld [vmem:[#allocation10 + $0x8e8] sm:$0xff]
    %v3822 = vld [vmem:[#allocation10 + $0x8f0] sm:$0xff]
    %v3823 = vld [vmem:[#allocation10 + $0x8f8] sm:$0xff]
    %v3824 = vld [vmem:[#allocation10 + $0x900] sm:$0xff]
    %v3825 = vld [vmem:[#allocation10 + $0x908] sm:$0xff]
    %v3826 = vld [vmem:[#allocation10 + $0x910] sm:$0xff]
    %v3827 = vld [vmem:[#allocation10 + $0x918] sm:$0xff]
    %v3828 = vld [vmem:[#allocation10 + $0x920] sm:$0xff]
    %v3829 = vld [vmem:[#allocation10 + $0x928] sm:$0xff]
    %v3830 = vld [vmem:[#allocation10 + $0x930] sm:$0xff]
    %v3831 = vld [vmem:[#allocation10 + $0x938] sm:$0xff]
    %v3832 = vld [vmem:[#allocation10 + $0x940] sm:$0xff]
    %v3833 = vld [vmem:[#allocation10 + $0x948] sm:$0xff]
    %v3834 = vld [vmem:[#allocation10 + $0x950] sm:$0xff]
    %v3835 = vld [vmem:[#allocation10 + $0x958] sm:$0xff]
    %v3836 = vld [vmem:[#allocation10 + $0x960] sm:$0xff]
    %v3837 = vld [vmem:[#allocation10 + $0x968] sm:$0xff]
    %v3838 = vld [vmem:[#allocation10 + $0x970] sm:$0xff]
    %v3839 = vld [vmem:[#allocation10 + $0x978] sm:$0xff]
    %v3840 = vld [vmem:[#allocation10 + $0x980] sm:$0xff]
    %v3841 = vld [vmem:[#allocation10 + $0x988] sm:$0xff]
    %v3842 = vld [vmem:[#allocation10 + $0x990] sm:$0xff]
    %v3843 = vld [vmem:[#allocation10 + $0x998] sm:$0xff]
    %v3844 = vld [vmem:[#allocation10 + $0x9a0] sm:$0xff]
    %v3845 = vld [vmem:[#allocation10 + $0x9a8] sm:$0xff]
    %v3846 = vld [vmem:[#allocation10 + $0x9b0] sm:$0xff]
    %v3847 = vld [vmem:[#allocation10 + $0x9b8] sm:$0xff]
    %v3848 = vld [vmem:[#allocation10 + $0x9c0] sm:$0xff]
    %v3849 = vld [vmem:[#allocation10 + $0x9c8] sm:$0xff]
    %v3850 = vld [vmem:[#allocation10 + $0x9d0] sm:$0xff]
    %v3851 = vld [vmem:[#allocation10 + $0x9d8] sm:$0xff]
    %v3852 = vld [vmem:[#allocation10 + $0x9e0] sm:$0xff]
    %v3853 = vld [vmem:[#allocation10 + $0x9e8] sm:$0xff]
    %v3854 = vld [vmem:[#allocation10 + $0x9f0] sm:$0xff]
    %v3855 = vld [vmem:[#allocation10 + $0x9f8] sm:$0xff]
    %v3856 = vld [vmem:[#allocation10 + $0xa00] sm:$0xff]
    %v3857 = vld [vmem:[#allocation10 + $0xa08] sm:$0xff]
    %v3858 = vld [vmem:[#allocation10 + $0xa10] sm:$0xff]
    %v3859 = vld [vmem:[#allocation10 + $0xa18] sm:$0xff]
    %v3860 = vld [vmem:[#allocation10 + $0xa20] sm:$0xff]
    %v3861 = vld [vmem:[#allocation10 + $0xa28] sm:$0xff]
    %v3862 = vld [vmem:[#allocation10 + $0xa30] sm:$0xff]
    %v3863 = vld [vmem:[#allocation10 + $0xa38] sm:$0xff]
    %v3864 = vld [vmem:[#allocation10 + $0xa40] sm:$0xff]
    %v3865 = vld [vmem:[#allocation10 + $0xa48] sm:$0xff]
    %v3866 = vld [vmem:[#allocation10 + $0xa50] sm:$0xff]
    %v3867 = vld [vmem:[#allocation10 + $0xa58] sm:$0xff]
    %v3868 = vld [vmem:[#allocation10 + $0xa60] sm:$0xff]
    %v3869 = vld [vmem:[#allocation10 + $0xa68] sm:$0xff]
    %v3870 = vld [vmem:[#allocation10 + $0xa70] sm:$0xff]
    %v3871 = vld [vmem:[#allocation10 + $0xa78] sm:$0xff]
    %v3872 = vld [vmem:[#allocation10 + $0xa80] sm:$0xff]
    %v3873 = vld [vmem:[#allocation10 + $0xa88] sm:$0xff]
    %v3874 = vld [vmem:[#allocation10 + $0xa90] sm:$0xff]
    %v3875 = vld [vmem:[#allocation10 + $0xa98] sm:$0xff]
    %v3876 = vld [vmem:[#allocation10 + $0xaa0] sm:$0xff]
    %v3877 = vld [vmem:[#allocation10 + $0xaa8] sm:$0xff]
    %v3878 = vld [vmem:[#allocation10 + $0xab0] sm:$0xff]
    %v3879 = vld [vmem:[#allocation10 + $0xab8] sm:$0xff]
    %v3880 = vld [vmem:[#allocation10 + $0xac0] sm:$0xff]
    %v3881 = vld [vmem:[#allocation10 + $0xac8] sm:$0xff]
    %v3882 = vld [vmem:[#allocation10 + $0xad0] sm:$0xff]
    %v3883 = vld [vmem:[#allocation10 + $0xad8] sm:$0xff]
    %v3884 = vld [vmem:[#allocation10 + $0xae0] sm:$0xff]
    %v3885 = vld [vmem:[#allocation10 + $0xae8] sm:$0xff]
    %v3886 = vld [vmem:[#allocation10 + $0xaf0] sm:$0xff]
    %v3887 = vld [vmem:[#allocation10 + $0xaf8] sm:$0xff]
    %v3888 = vld [vmem:[#allocation10 + $0xb00] sm:$0xff]
    %v3889 = vld [vmem:[#allocation10 + $0xb08] sm:$0xff]
    %v3890 = vld [vmem:[#allocation10 + $0xb10] sm:$0xff]
    %v3891 = vld [vmem:[#allocation10 + $0xb18] sm:$0xff]
    %v3892 = vld [vmem:[#allocation10 + $0xb20] sm:$0xff]
    %v3893 = vld [vmem:[#allocation10 + $0xb28] sm:$0xff]
    %v3894 = vld [vmem:[#allocation10 + $0xb30] sm:$0xff]
    %v3895 = vld [vmem:[#allocation10 + $0xb38] sm:$0xff]
    %v3896 = vld [vmem:[#allocation10 + $0xb40] sm:$0xff]
    %v3897 = vld [vmem:[#allocation10 + $0xb48] sm:$0xff]
    %v3898 = vld [vmem:[#allocation10 + $0xb50] sm:$0xff]
    %v3899 = vld [vmem:[#allocation10 + $0xb58] sm:$0xff]
    %v3900 = vld [vmem:[#allocation10 + $0xb60] sm:$0xff]
    %v3901 = vld [vmem:[#allocation10 + $0xb68] sm:$0xff]
    %v3902 = vld [vmem:[#allocation10 + $0xb70] sm:$0xff]
    %v3903 = vld [vmem:[#allocation10 + $0xb78] sm:$0xff]
    %v3904 = vld [vmem:[#allocation10 + $0xb80] sm:$0xff]
    %v3905 = vld [vmem:[#allocation10 + $0xb88] sm:$0xff]
    %v3906 = vld [vmem:[#allocation10 + $0xb90] sm:$0xff]
    %v3907 = vld [vmem:[#allocation10 + $0xb98] sm:$0xff]
    %v3908 = vld [vmem:[#allocation10 + $0xba0] sm:$0xff]
    %v3909 = vld [vmem:[#allocation10 + $0xba8] sm:$0xff]
    %v3910 = vld [vmem:[#allocation10 + $0xbb0] sm:$0xff]
    %v3911 = vld [vmem:[#allocation10 + $0xbb8] sm:$0xff]
    %v3912 = vld [vmem:[#allocation10 + $0xbc0] sm:$0xff]
    %v3913 = vld [vmem:[#allocation10 + $0xbc8] sm:$0xff]
    %v3914 = vld [vmem:[#allocation10 + $0xbd0] sm:$0xff]
    %v3915 = vld [vmem:[#allocation10 + $0xbd8] sm:$0xff]
    %v3916 = vld [vmem:[#allocation10 + $0xbe0] sm:$0xff]
    %v3917 = vld [vmem:[#allocation10 + $0xbe8] sm:$0xff]
    %v3918 = vld [vmem:[#allocation10 + $0xbf0] sm:$0xff]
    %v3919 = vld [vmem:[#allocation10 + $0xbf8] sm:$0xff]
    %v3920 = vld [vmem:[#allocation11] sm:$0x3f]
    %v3922 = vlaneseq
    %v3923 = vshrl.u32 %v3922, 7
    %v3924 = vsub.s32 0, %v3923
    %v3925 = vrot.slane %v3920, %v3924
    %v3926 = vlaneseq
    %v3927 = vshrl.u32 %v3926, 7
    %v3928 = vsub.s32 1, %v3927
    %v3929 = vrot.slane %v3920, %v3928
    %v3930 = vlaneseq
    %v3931 = vshrl.u32 %v3930, 7
    %v3932 = vsub.s32 2, %v3931
    %v3933 = vrot.slane %v3920, %v3932
    %v3934 = vlaneseq
    %v3935 = vshrl.u32 %v3934, 7
    %v3936 = vsub.s32 3, %v3935
    %v3937 = vrot.slane %v3920, %v3936
    %v3938 = vlaneseq
    %v3939 = vshrl.u32 %v3938, 7
    %v3940 = vsub.s32 4, %v3939
    %v3941 = vrot.slane %v3920, %v3940
    %v3942 = vlaneseq
    %v3943 = vshrl.u32 %v3942, 7
    %v3944 = vsub.s32 5, %v3943
    %v3945 = vrot.slane %v3920, %v3944
    %v4336 = vunpack.c.l.b16 %v3536
    %v4337 = vunpack.c.h.b16 %v3536
    %v4338 = vunpack.c.l.b16 %v3537
    %v4339 = vunpack.c.h.b16 %v3537
    %v4340 = vunpack.c.l.b16 %v3538
    %v4341 = vunpack.c.h.b16 %v3538
    %v4342 = vunpack.c.l.b16 %v3539
    %v4343 = vunpack.c.h.b16 %v3539
    %v4344 = vunpack.c.l.b16 %v3540
    %v4345 = vunpack.c.h.b16 %v3540
    %v4346 = vunpack.c.l.b16 %v3541
    %v4347 = vunpack.c.h.b16 %v3541
    %v4348 = vunpack.c.l.b16 %v3542
    %v4349 = vunpack.c.h.b16 %v3542
    %v4350 = vunpack.c.l.b16 %v3543
    %v4351 = vunpack.c.h.b16 %v3543
    %v4352 = vunpack.c.l.b16 %v3544
    %v4353 = vunpack.c.h.b16 %v3544
    %v4354 = vunpack.c.l.b16 %v3545
    %v4355 = vunpack.c.h.b16 %v3545
    %v4356 = vunpack.c.l.b16 %v3546
    %v4357 = vunpack.c.h.b16 %v3546
    %v4358 = vunpack.c.l.b16 %v3547
    %v4359 = vunpack.c.h.b16 %v3547
    %v4360 = vunpack.c.l.b16 %v3548
    %v4361 = vunpack.c.h.b16 %v3548
    %v4362 = vunpack.c.l.b16 %v3549
    %v4363 = vunpack.c.h.b16 %v3549
    %v4364 = vunpack.c.l.b16 %v3550
    %v4365 = vunpack.c.h.b16 %v3550
    %v4366 = vunpack.c.l.b16 %v3551
    %v4367 = vunpack.c.h.b16 %v3551
    %v4368 = vunpack.c.l.b16 %v3552
    %v4369 = vunpack.c.h.b16 %v3552
    %v4370 = vunpack.c.l.b16 %v3553
    %v4371 = vunpack.c.h.b16 %v3553
    %v4372 = vunpack.c.l.b16 %v3554
    %v4373 = vunpack.c.h.b16 %v3554
    %v4374 = vunpack.c.l.b16 %v3555
    %v4375 = vunpack.c.h.b16 %v3555
    %v4376 = vunpack.c.l.b16 %v3556
    %v4377 = vunpack.c.h.b16 %v3556
    %v4378 = vunpack.c.l.b16 %v3557
    %v4379 = vunpack.c.h.b16 %v3557
    %v4380 = vunpack.c.l.b16 %v3558
    %v4381 = vunpack.c.h.b16 %v3558
    %v4382 = vunpack.c.l.b16 %v3559
    %v4383 = vunpack.c.h.b16 %v3559
    %v4384 = vunpack.c.l.b16 %v3560
    %v4385 = vunpack.c.h.b16 %v3560
    %v4386 = vunpack.c.l.b16 %v3561
    %v4387 = vunpack.c.h.b16 %v3561
    %v4388 = vunpack.c.l.b16 %v3562
    %v4389 = vunpack.c.h.b16 %v3562
    %v4390 = vunpack.c.l.b16 %v3563
    %v4391 = vunpack.c.h.b16 %v3563
    %v4392 = vunpack.c.l.b16 %v3564
    %v4393 = vunpack.c.h.b16 %v3564
    %v4394 = vunpack.c.l.b16 %v3565
    %v4395 = vunpack.c.h.b16 %v3565
    %v4396 = vunpack.c.l.b16 %v3566
    %v4397 = vunpack.c.h.b16 %v3566
    %v4398 = vunpack.c.l.b16 %v3567
    %v4399 = vunpack.c.h.b16 %v3567
    %v4400 = vunpack.c.l.b16 %v3568
    %v4401 = vunpack.c.h.b16 %v3568
    %v4402 = vunpack.c.l.b16 %v3569
    %v4403 = vunpack.c.h.b16 %v3569
    %v4404 = vunpack.c.l.b16 %v3570
    %v4405 = vunpack.c.h.b16 %v3570
    %v4406 = vunpack.c.l.b16 %v3571
    %v4407 = vunpack.c.h.b16 %v3571
    %v4408 = vunpack.c.l.b16 %v3572
    %v4409 = vunpack.c.h.b16 %v3572
    %v4410 = vunpack.c.l.b16 %v3573
    %v4411 = vunpack.c.h.b16 %v3573
    %v4412 = vunpack.c.l.b16 %v3574
    %v4413 = vunpack.c.h.b16 %v3574
    %v4414 = vunpack.c.l.b16 %v3575
    %v4415 = vunpack.c.h.b16 %v3575
    %v4416 = vunpack.c.l.b16 %v3576
    %v4417 = vunpack.c.h.b16 %v3576
    %v4418 = vunpack.c.l.b16 %v3577
    %v4419 = vunpack.c.h.b16 %v3577
    %v4420 = vunpack.c.l.b16 %v3578
    %v4421 = vunpack.c.h.b16 %v3578
    %v4422 = vunpack.c.l.b16 %v3579
    %v4423 = vunpack.c.h.b16 %v3579
    %v4424 = vunpack.c.l.b16 %v3580
    %v4425 = vunpack.c.h.b16 %v3580
    %v4426 = vunpack.c.l.b16 %v3581
    %v4427 = vunpack.c.h.b16 %v3581
    %v4428 = vunpack.c.l.b16 %v3582
    %v4429 = vunpack.c.h.b16 %v3582
    %v4430 = vunpack.c.l.b16 %v3583
    %v4431 = vunpack.c.h.b16 %v3583
    %v4432 = vunpack.c.l.b16 %v3584
    %v4433 = vunpack.c.h.b16 %v3584
    %v4434 = vunpack.c.l.b16 %v3585
    %v4435 = vunpack.c.h.b16 %v3585
    %v4436 = vunpack.c.l.b16 %v3586
    %v4437 = vunpack.c.h.b16 %v3586
    %v4438 = vunpack.c.l.b16 %v3587
    %v4439 = vunpack.c.h.b16 %v3587
    %v4440 = vunpack.c.l.b16 %v3588
    %v4441 = vunpack.c.h.b16 %v3588
    %v4442 = vunpack.c.l.b16 %v3589
    %v4443 = vunpack.c.h.b16 %v3589
    %v4444 = vunpack.c.l.b16 %v3590
    %v4445 = vunpack.c.h.b16 %v3590
    %v4446 = vunpack.c.l.b16 %v3591
    %v4447 = vunpack.c.h.b16 %v3591
    %v4448 = vunpack.c.l.b16 %v3592
    %v4449 = vunpack.c.h.b16 %v3592
    %v4450 = vunpack.c.l.b16 %v3593
    %v4451 = vunpack.c.h.b16 %v3593
    %v4452 = vunpack.c.l.b16 %v3594
    %v4453 = vunpack.c.h.b16 %v3594
    %v4454 = vunpack.c.l.b16 %v3595
    %v4455 = vunpack.c.h.b16 %v3595
    %v4456 = vunpack.c.l.b16 %v3596
    %v4457 = vunpack.c.h.b16 %v3596
    %v4458 = vunpack.c.l.b16 %v3597
    %v4459 = vunpack.c.h.b16 %v3597
    %v4460 = vunpack.c.l.b16 %v3598
    %v4461 = vunpack.c.h.b16 %v3598
    %v4462 = vunpack.c.l.b16 %v3599
    %v4463 = vunpack.c.h.b16 %v3599
    %v4464 = vunpack.c.l.b16 %v3600
    %v4465 = vunpack.c.h.b16 %v3600
    %v4466 = vunpack.c.l.b16 %v3601
    %v4467 = vunpack.c.h.b16 %v3601
    %v4468 = vunpack.c.l.b16 %v3602
    %v4469 = vunpack.c.h.b16 %v3602
    %v4470 = vunpack.c.l.b16 %v3603
    %v4471 = vunpack.c.h.b16 %v3603
    %v4472 = vunpack.c.l.b16 %v3604
    %v4473 = vunpack.c.h.b16 %v3604
    %v4474 = vunpack.c.l.b16 %v3605
    %v4475 = vunpack.c.h.b16 %v3605
    %v4476 = vunpack.c.l.b16 %v3606
    %v4477 = vunpack.c.h.b16 %v3606
    %v4478 = vunpack.c.l.b16 %v3607
    %v4479 = vunpack.c.h.b16 %v3607
    %v4480 = vunpack.c.l.b16 %v3608
    %v4481 = vunpack.c.h.b16 %v3608
    %v4482 = vunpack.c.l.b16 %v3609
    %v4483 = vunpack.c.h.b16 %v3609
    %v4484 = vunpack.c.l.b16 %v3610
    %v4485 = vunpack.c.h.b16 %v3610
    %v4486 = vunpack.c.l.b16 %v3611
    %v4487 = vunpack.c.h.b16 %v3611
    %v4488 = vunpack.c.l.b16 %v3612
    %v4489 = vunpack.c.h.b16 %v3612
    %v4490 = vunpack.c.l.b16 %v3613
    %v4491 = vunpack.c.h.b16 %v3613
    %v4492 = vunpack.c.l.b16 %v3614
    %v4493 = vunpack.c.h.b16 %v3614
    %v4494 = vunpack.c.l.b16 %v3615
    %v4495 = vunpack.c.h.b16 %v3615
    %v4496 = vunpack.c.l.b16 %v3616
    %v4497 = vunpack.c.h.b16 %v3616
    %v4498 = vunpack.c.l.b16 %v3617
    %v4499 = vunpack.c.h.b16 %v3617
    %v4500 = vunpack.c.l.b16 %v3618
    %v4501 = vunpack.c.h.b16 %v3618
    %v4502 = vunpack.c.l.b16 %v3619
    %v4503 = vunpack.c.h.b16 %v3619
    %v4504 = vunpack.c.l.b16 %v3620
    %v4505 = vunpack.c.h.b16 %v3620
    %v4506 = vunpack.c.l.b16 %v3621
    %v4507 = vunpack.c.h.b16 %v3621
    %v4508 = vunpack.c.l.b16 %v3622
    %v4509 = vunpack.c.h.b16 %v3622
    %v4510 = vunpack.c.l.b16 %v3623
    %v4511 = vunpack.c.h.b16 %v3623
    %v4512 = vunpack.c.l.b16 %v3624
    %v4513 = vunpack.c.h.b16 %v3624
    %v4514 = vunpack.c.l.b16 %v3625
    %v4515 = vunpack.c.h.b16 %v3625
    %v4516 = vunpack.c.l.b16 %v3626
    %v4517 = vunpack.c.h.b16 %v3626
    %v4518 = vunpack.c.l.b16 %v3627
    %v4519 = vunpack.c.h.b16 %v3627
    %v4520 = vunpack.c.l.b16 %v3628
    %v4521 = vunpack.c.h.b16 %v3628
    %v4522 = vunpack.c.l.b16 %v3629
    %v4523 = vunpack.c.h.b16 %v3629
    %v4524 = vunpack.c.l.b16 %v3630
    %v4525 = vunpack.c.h.b16 %v3630
    %v4526 = vunpack.c.l.b16 %v3631
    %v4527 = vunpack.c.h.b16 %v3631
    %v4528 = vunpack.c.l.b16 %v3632
    %v4529 = vunpack.c.h.b16 %v3632
    %v4530 = vunpack.c.l.b16 %v3633
    %v4531 = vunpack.c.h.b16 %v3633
    %v4532 = vunpack.c.l.b16 %v3634
    %v4533 = vunpack.c.h.b16 %v3634
    %v4534 = vunpack.c.l.b16 %v3635
    %v4535 = vunpack.c.h.b16 %v3635
    %v4536 = vunpack.c.l.b16 %v3636
    %v4537 = vunpack.c.h.b16 %v3636
    %v4538 = vunpack.c.l.b16 %v3637
    %v4539 = vunpack.c.h.b16 %v3637
    %v4540 = vunpack.c.l.b16 %v3638
    %v4541 = vunpack.c.h.b16 %v3638
    %v4542 = vunpack.c.l.b16 %v3639
    %v4543 = vunpack.c.h.b16 %v3639
    %v4544 = vunpack.c.l.b16 %v3640
    %v4545 = vunpack.c.h.b16 %v3640
    %v4546 = vunpack.c.l.b16 %v3641
    %v4547 = vunpack.c.h.b16 %v3641
    %v4548 = vunpack.c.l.b16 %v3642
    %v4549 = vunpack.c.h.b16 %v3642
    %v4550 = vunpack.c.l.b16 %v3643
    %v4551 = vunpack.c.h.b16 %v3643
    %v4552 = vunpack.c.l.b16 %v3644
    %v4553 = vunpack.c.h.b16 %v3644
    %v4554 = vunpack.c.l.b16 %v3645
    %v4555 = vunpack.c.h.b16 %v3645
    %v4556 = vunpack.c.l.b16 %v3646
    %v4557 = vunpack.c.h.b16 %v3646
    %v4558 = vunpack.c.l.b16 %v3647
    %v4559 = vunpack.c.h.b16 %v3647
    %v4560 = vunpack.c.l.b16 %v3648
    %v4561 = vunpack.c.h.b16 %v3648
    %v4562 = vunpack.c.l.b16 %v3649
    %v4563 = vunpack.c.h.b16 %v3649
    %v4564 = vunpack.c.l.b16 %v3650
    %v4565 = vunpack.c.h.b16 %v3650
    %v4566 = vunpack.c.l.b16 %v3651
    %v4567 = vunpack.c.h.b16 %v3651
    %v4568 = vunpack.c.l.b16 %v3652
    %v4569 = vunpack.c.h.b16 %v3652
    %v4570 = vunpack.c.l.b16 %v3653
    %v4571 = vunpack.c.h.b16 %v3653
    %v4572 = vunpack.c.l.b16 %v3654
    %v4573 = vunpack.c.h.b16 %v3654
    %v4574 = vunpack.c.l.b16 %v3655
    %v4575 = vunpack.c.h.b16 %v3655
    %v4576 = vunpack.c.l.b16 %v3656
    %v4577 = vunpack.c.h.b16 %v3656
    %v4578 = vunpack.c.l.b16 %v3657
    %v4579 = vunpack.c.h.b16 %v3657
    %v4580 = vunpack.c.l.b16 %v3658
    %v4581 = vunpack.c.h.b16 %v3658
    %v4582 = vunpack.c.l.b16 %v3659
    %v4583 = vunpack.c.h.b16 %v3659
    %v4584 = vunpack.c.l.b16 %v3660
    %v4585 = vunpack.c.h.b16 %v3660
    %v4586 = vunpack.c.l.b16 %v3661
    %v4587 = vunpack.c.h.b16 %v3661
    %v4588 = vunpack.c.l.b16 %v3662
    %v4589 = vunpack.c.h.b16 %v3662
    %v4590 = vunpack.c.l.b16 %v3663
    %v4591 = vunpack.c.h.b16 %v3663
    %v4592 = vunpack.c.l.b16 %v3664
    %v4593 = vunpack.c.h.b16 %v3664
    %v4594 = vunpack.c.l.b16 %v3665
    %v4595 = vunpack.c.h.b16 %v3665
    %v4596 = vunpack.c.l.b16 %v3666
    %v4597 = vunpack.c.h.b16 %v3666
    %v4598 = vunpack.c.l.b16 %v3667
    %v4599 = vunpack.c.h.b16 %v3667
    %v4600 = vunpack.c.l.b16 %v3668
    %v4601 = vunpack.c.h.b16 %v3668
    %v4602 = vunpack.c.l.b16 %v3669
    %v4603 = vunpack.c.h.b16 %v3669
    %v4604 = vunpack.c.l.b16 %v3670
    %v4605 = vunpack.c.h.b16 %v3670
    %v4606 = vunpack.c.l.b16 %v3671
    %v4607 = vunpack.c.h.b16 %v3671
    %v4608 = vunpack.c.l.b16 %v3672
    %v4609 = vunpack.c.h.b16 %v3672
    %v4610 = vunpack.c.l.b16 %v3673
    %v4611 = vunpack.c.h.b16 %v3673
    %v4612 = vunpack.c.l.b16 %v3674
    %v4613 = vunpack.c.h.b16 %v3674
    %v4614 = vunpack.c.l.b16 %v3675
    %v4615 = vunpack.c.h.b16 %v3675
    %v4616 = vunpack.c.l.b16 %v3676
    %v4617 = vunpack.c.h.b16 %v3676
    %v4618 = vunpack.c.l.b16 %v3677
    %v4619 = vunpack.c.h.b16 %v3677
    %v4620 = vunpack.c.l.b16 %v3678
    %v4621 = vunpack.c.h.b16 %v3678
    %v4622 = vunpack.c.l.b16 %v3679
    %v4623 = vunpack.c.h.b16 %v3679
    %v4624 = vunpack.c.l.b16 %v3680
    %v4625 = vunpack.c.h.b16 %v3680
    %v4626 = vunpack.c.l.b16 %v3681
    %v4627 = vunpack.c.h.b16 %v3681
    %v4628 = vunpack.c.l.b16 %v3682
    %v4629 = vunpack.c.h.b16 %v3682
    %v4630 = vunpack.c.l.b16 %v3683
    %v4631 = vunpack.c.h.b16 %v3683
    %v4632 = vunpack.c.l.b16 %v3684
    %v4633 = vunpack.c.h.b16 %v3684
    %v4634 = vunpack.c.l.b16 %v3685
    %v4635 = vunpack.c.h.b16 %v3685
    %v4636 = vunpack.c.l.b16 %v3686
    %v4637 = vunpack.c.h.b16 %v3686
    %v4638 = vunpack.c.l.b16 %v3687
    %v4639 = vunpack.c.h.b16 %v3687
    %v4640 = vunpack.c.l.b16 %v3688
    %v4641 = vunpack.c.h.b16 %v3688
    %v4642 = vunpack.c.l.b16 %v3689
    %v4643 = vunpack.c.h.b16 %v3689
    %v4644 = vunpack.c.l.b16 %v3690
    %v4645 = vunpack.c.h.b16 %v3690
    %v4646 = vunpack.c.l.b16 %v3691
    %v4647 = vunpack.c.h.b16 %v3691
    %v4648 = vunpack.c.l.b16 %v3692
    %v4649 = vunpack.c.h.b16 %v3692
    %v4650 = vunpack.c.l.b16 %v3693
    %v4651 = vunpack.c.h.b16 %v3693
    %v4652 = vunpack.c.l.b16 %v3694
    %v4653 = vunpack.c.h.b16 %v3694
    %v4654 = vunpack.c.l.b16 %v3695
    %v4655 = vunpack.c.h.b16 %v3695
    %v4656 = vunpack.c.l.b16 %v3696
    %v4657 = vunpack.c.h.b16 %v3696
    %v4658 = vunpack.c.l.b16 %v3697
    %v4659 = vunpack.c.h.b16 %v3697
    %v4660 = vunpack.c.l.b16 %v3698
    %v4661 = vunpack.c.h.b16 %v3698
    %v4662 = vunpack.c.l.b16 %v3699
    %v4663 = vunpack.c.h.b16 %v3699
    %v4664 = vunpack.c.l.b16 %v3700
    %v4665 = vunpack.c.h.b16 %v3700
    %v4666 = vunpack.c.l.b16 %v3701
    %v4667 = vunpack.c.h.b16 %v3701
    %v4668 = vunpack.c.l.b16 %v3702
    %v4669 = vunpack.c.h.b16 %v3702
    %v4670 = vunpack.c.l.b16 %v3703
    %v4671 = vunpack.c.h.b16 %v3703
    %v4672 = vunpack.c.l.b16 %v3704
    %v4673 = vunpack.c.h.b16 %v3704
    %v4674 = vunpack.c.l.b16 %v3705
    %v4675 = vunpack.c.h.b16 %v3705
    %v4676 = vunpack.c.l.b16 %v3706
    %v4677 = vunpack.c.h.b16 %v3706
    %v4678 = vunpack.c.l.b16 %v3707
    %v4679 = vunpack.c.h.b16 %v3707
    %v4680 = vunpack.c.l.b16 %v3708
    %v4681 = vunpack.c.h.b16 %v3708
    %v4682 = vunpack.c.l.b16 %v3709
    %v4683 = vunpack.c.h.b16 %v3709
    %v4684 = vunpack.c.l.b16 %v3710
    %v4685 = vunpack.c.h.b16 %v3710
    %v4686 = vunpack.c.l.b16 %v3711
    %v4687 = vunpack.c.h.b16 %v3711
    %v4688 = vunpack.c.l.b16 %v3712
    %v4689 = vunpack.c.h.b16 %v3712
    %v4690 = vunpack.c.l.b16 %v3713
    %v4691 = vunpack.c.h.b16 %v3713
    %v4692 = vunpack.c.l.b16 %v3714
    %v4693 = vunpack.c.h.b16 %v3714
    %v4694 = vunpack.c.l.b16 %v3715
    %v4695 = vunpack.c.h.b16 %v3715
    %v4696 = vunpack.c.l.b16 %v3716
    %v4697 = vunpack.c.h.b16 %v3716
    %v4698 = vunpack.c.l.b16 %v3717
    %v4699 = vunpack.c.h.b16 %v3717
    %v4700 = vunpack.c.l.b16 %v3718
    %v4701 = vunpack.c.h.b16 %v3718
    %v4702 = vunpack.c.l.b16 %v3719
    %v4703 = vunpack.c.h.b16 %v3719
    %v4704 = vunpack.c.l.b16 %v3720
    %v4705 = vunpack.c.h.b16 %v3720
    %v4706 = vunpack.c.l.b16 %v3721
    %v4707 = vunpack.c.h.b16 %v3721
    %v4708 = vunpack.c.l.b16 %v3722
    %v4709 = vunpack.c.h.b16 %v3722
    %v4710 = vunpack.c.l.b16 %v3723
    %v4711 = vunpack.c.h.b16 %v3723
    %v4712 = vunpack.c.l.b16 %v3724
    %v4713 = vunpack.c.h.b16 %v3724
    %v4714 = vunpack.c.l.b16 %v3725
    %v4715 = vunpack.c.h.b16 %v3725
    %v4716 = vunpack.c.l.b16 %v3726
    %v4717 = vunpack.c.h.b16 %v3726
    %v4718 = vunpack.c.l.b16 %v3727
    %v4719 = vunpack.c.h.b16 %v3727
    %v4720 = vunpack.c.l.b16 %v3728
    %v4721 = vunpack.c.h.b16 %v3728
    %v4722 = vunpack.c.l.b16 %v3729
    %v4723 = vunpack.c.h.b16 %v3729
    %v4724 = vunpack.c.l.b16 %v3730
    %v4725 = vunpack.c.h.b16 %v3730
    %v4726 = vunpack.c.l.b16 %v3731
    %v4727 = vunpack.c.h.b16 %v3731
    %v4728 = vunpack.c.l.b16 %v3732
    %v4729 = vunpack.c.h.b16 %v3732
    %v4730 = vunpack.c.l.b16 %v3733
    %v4731 = vunpack.c.h.b16 %v3733
    %v4732 = vunpack.c.l.b16 %v3734
    %v4733 = vunpack.c.h.b16 %v3734
    %v4734 = vunpack.c.l.b16 %v3735
    %v4735 = vunpack.c.h.b16 %v3735
    %v4736 = vunpack.c.l.b16 %v3736
    %v4737 = vunpack.c.h.b16 %v3736
    %v4738 = vunpack.c.l.b16 %v3737
    %v4739 = vunpack.c.h.b16 %v3737
    %v4740 = vunpack.c.l.b16 %v3738
    %v4741 = vunpack.c.h.b16 %v3738
    %v4742 = vunpack.c.l.b16 %v3739
    %v4743 = vunpack.c.h.b16 %v3739
    %v4744 = vunpack.c.l.b16 %v3740
    %v4745 = vunpack.c.h.b16 %v3740
    %v4746 = vunpack.c.l.b16 %v3741
    %v4747 = vunpack.c.h.b16 %v3741
    %v4748 = vunpack.c.l.b16 %v3742
    %v4749 = vunpack.c.h.b16 %v3742
    %v4750 = vunpack.c.l.b16 %v3743
    %v4751 = vunpack.c.h.b16 %v3743
    %v4752 = vunpack.c.l.b16 %v3744
    %v4753 = vunpack.c.h.b16 %v3744
    %v4754 = vunpack.c.l.b16 %v3745
    %v4755 = vunpack.c.h.b16 %v3745
    %v4756 = vunpack.c.l.b16 %v3746
    %v4757 = vunpack.c.h.b16 %v3746
    %v4758 = vunpack.c.l.b16 %v3747
    %v4759 = vunpack.c.h.b16 %v3747
    %v4760 = vunpack.c.l.b16 %v3748
    %v4761 = vunpack.c.h.b16 %v3748
    %v4762 = vunpack.c.l.b16 %v3749
    %v4763 = vunpack.c.h.b16 %v3749
    %v4764 = vunpack.c.l.b16 %v3750
    %v4765 = vunpack.c.h.b16 %v3750
    %v4766 = vunpack.c.l.b16 %v3751
    %v4767 = vunpack.c.h.b16 %v3751
    %v4768 = vunpack.c.l.b16 %v3752
    %v4769 = vunpack.c.h.b16 %v3752
    %v4770 = vunpack.c.l.b16 %v3753
    %v4771 = vunpack.c.h.b16 %v3753
    %v4772 = vunpack.c.l.b16 %v3754
    %v4773 = vunpack.c.h.b16 %v3754
    %v4774 = vunpack.c.l.b16 %v3755
    %v4775 = vunpack.c.h.b16 %v3755
    %v4776 = vunpack.c.l.b16 %v3756
    %v4777 = vunpack.c.h.b16 %v3756
    %v4778 = vunpack.c.l.b16 %v3757
    %v4779 = vunpack.c.h.b16 %v3757
    %v4780 = vunpack.c.l.b16 %v3758
    %v4781 = vunpack.c.h.b16 %v3758
    %v4782 = vunpack.c.l.b16 %v3759
    %v4783 = vunpack.c.h.b16 %v3759
    %v4784 = vunpack.c.l.b16 %v3760
    %v4785 = vunpack.c.h.b16 %v3760
    %v4786 = vunpack.c.l.b16 %v3761
    %v4787 = vunpack.c.h.b16 %v3761
    %v4788 = vunpack.c.l.b16 %v3762
    %v4789 = vunpack.c.h.b16 %v3762
    %v4790 = vunpack.c.l.b16 %v3763
    %v4791 = vunpack.c.h.b16 %v3763
    %v4792 = vunpack.c.l.b16 %v3764
    %v4793 = vunpack.c.h.b16 %v3764
    %v4794 = vunpack.c.l.b16 %v3765
    %v4795 = vunpack.c.h.b16 %v3765
    %v4796 = vunpack.c.l.b16 %v3766
    %v4797 = vunpack.c.h.b16 %v3766
    %v4798 = vunpack.c.l.b16 %v3767
    %v4799 = vunpack.c.h.b16 %v3767
    %v4800 = vunpack.c.l.b16 %v3768
    %v4801 = vunpack.c.h.b16 %v3768
    %v4802 = vunpack.c.l.b16 %v3769
    %v4803 = vunpack.c.h.b16 %v3769
    %v4804 = vunpack.c.l.b16 %v3770
    %v4805 = vunpack.c.h.b16 %v3770
    %v4806 = vunpack.c.l.b16 %v3771
    %v4807 = vunpack.c.h.b16 %v3771
    %v4808 = vunpack.c.l.b16 %v3772
    %v4809 = vunpack.c.h.b16 %v3772
    %v4810 = vunpack.c.l.b16 %v3773
    %v4811 = vunpack.c.h.b16 %v3773
    %v4812 = vunpack.c.l.b16 %v3774
    %v4813 = vunpack.c.h.b16 %v3774
    %v4814 = vunpack.c.l.b16 %v3775
    %v4815 = vunpack.c.h.b16 %v3775
    %v4816 = vunpack.c.l.b16 %v3776
    %v4817 = vunpack.c.h.b16 %v3776
    %v4818 = vunpack.c.l.b16 %v3777
    %v4819 = vunpack.c.h.b16 %v3777
    %v4820 = vunpack.c.l.b16 %v3778
    %v4821 = vunpack.c.h.b16 %v3778
    %v4822 = vunpack.c.l.b16 %v3779
    %v4823 = vunpack.c.h.b16 %v3779
    %v4824 = vunpack.c.l.b16 %v3780
    %v4825 = vunpack.c.h.b16 %v3780
    %v4826 = vunpack.c.l.b16 %v3781
    %v4827 = vunpack.c.h.b16 %v3781
    %v4828 = vunpack.c.l.b16 %v3782
    %v4829 = vunpack.c.h.b16 %v3782
    %v4830 = vunpack.c.l.b16 %v3783
    %v4831 = vunpack.c.h.b16 %v3783
    %v4832 = vunpack.c.l.b16 %v3784
    %v4833 = vunpack.c.h.b16 %v3784
    %v4834 = vunpack.c.l.b16 %v3785
    %v4835 = vunpack.c.h.b16 %v3785
    %v4836 = vunpack.c.l.b16 %v3786
    %v4837 = vunpack.c.h.b16 %v3786
    %v4838 = vunpack.c.l.b16 %v3787
    %v4839 = vunpack.c.h.b16 %v3787
    %v4840 = vunpack.c.l.b16 %v3788
    %v4841 = vunpack.c.h.b16 %v3788
    %v4842 = vunpack.c.l.b16 %v3789
    %v4843 = vunpack.c.h.b16 %v3789
    %v4844 = vunpack.c.l.b16 %v3790
    %v4845 = vunpack.c.h.b16 %v3790
    %v4846 = vunpack.c.l.b16 %v3791
    %v4847 = vunpack.c.h.b16 %v3791
    %v4848 = vunpack.c.l.b16 %v3792
    %v4849 = vunpack.c.h.b16 %v3792
    %v4850 = vunpack.c.l.b16 %v3793
    %v4851 = vunpack.c.h.b16 %v3793
    %v4852 = vunpack.c.l.b16 %v3794
    %v4853 = vunpack.c.h.b16 %v3794
    %v4854 = vunpack.c.l.b16 %v3795
    %v4855 = vunpack.c.h.b16 %v3795
    %v4856 = vunpack.c.l.b16 %v3796
    %v4857 = vunpack.c.h.b16 %v3796
    %v4858 = vunpack.c.l.b16 %v3797
    %v4859 = vunpack.c.h.b16 %v3797
    %v4860 = vunpack.c.l.b16 %v3798
    %v4861 = vunpack.c.h.b16 %v3798
    %v4862 = vunpack.c.l.b16 %v3799
    %v4863 = vunpack.c.h.b16 %v3799
    %v4864 = vunpack.c.l.b16 %v3800
    %v4865 = vunpack.c.h.b16 %v3800
    %v4866 = vunpack.c.l.b16 %v3801
    %v4867 = vunpack.c.h.b16 %v3801
    %v4868 = vunpack.c.l.b16 %v3802
    %v4869 = vunpack.c.h.b16 %v3802
    %v4870 = vunpack.c.l.b16 %v3803
    %v4871 = vunpack.c.h.b16 %v3803
    %v4872 = vunpack.c.l.b16 %v3804
    %v4873 = vunpack.c.h.b16 %v3804
    %v4874 = vunpack.c.l.b16 %v3805
    %v4875 = vunpack.c.h.b16 %v3805
    %v4876 = vunpack.c.l.b16 %v3806
    %v4877 = vunpack.c.h.b16 %v3806
    %v4878 = vunpack.c.l.b16 %v3807
    %v4879 = vunpack.c.h.b16 %v3807
    %v4880 = vunpack.c.l.b16 %v3808
    %v4881 = vunpack.c.h.b16 %v3808
    %v4882 = vunpack.c.l.b16 %v3809
    %v4883 = vunpack.c.h.b16 %v3809
    %v4884 = vunpack.c.l.b16 %v3810
    %v4885 = vunpack.c.h.b16 %v3810
    %v4886 = vunpack.c.l.b16 %v3811
    %v4887 = vunpack.c.h.b16 %v3811
    %v4888 = vunpack.c.l.b16 %v3812
    %v4889 = vunpack.c.h.b16 %v3812
    %v4890 = vunpack.c.l.b16 %v3813
    %v4891 = vunpack.c.h.b16 %v3813
    %v4892 = vunpack.c.l.b16 %v3814
    %v4893 = vunpack.c.h.b16 %v3814
    %v4894 = vunpack.c.l.b16 %v3815
    %v4895 = vunpack.c.h.b16 %v3815
    %v4896 = vunpack.c.l.b16 %v3816
    %v4897 = vunpack.c.h.b16 %v3816
    %v4898 = vunpack.c.l.b16 %v3817
    %v4899 = vunpack.c.h.b16 %v3817
    %v4900 = vunpack.c.l.b16 %v3818
    %v4901 = vunpack.c.h.b16 %v3818
    %v4902 = vunpack.c.l.b16 %v3819
    %v4903 = vunpack.c.h.b16 %v3819
    %v4904 = vunpack.c.l.b16 %v3820
    %v4905 = vunpack.c.h.b16 %v3820
    %v4906 = vunpack.c.l.b16 %v3821
    %v4907 = vunpack.c.h.b16 %v3821
    %v4908 = vunpack.c.l.b16 %v3822
    %v4909 = vunpack.c.h.b16 %v3822
    %v4910 = vunpack.c.l.b16 %v3823
    %v4911 = vunpack.c.h.b16 %v3823
    %v4912 = vunpack.c.l.b16 %v3824
    %v4913 = vunpack.c.h.b16 %v3824
    %v4914 = vunpack.c.l.b16 %v3825
    %v4915 = vunpack.c.h.b16 %v3825
    %v4916 = vunpack.c.l.b16 %v3826
    %v4917 = vunpack.c.h.b16 %v3826
    %v4918 = vunpack.c.l.b16 %v3827
    %v4919 = vunpack.c.h.b16 %v3827
    %v4920 = vunpack.c.l.b16 %v3828
    %v4921 = vunpack.c.h.b16 %v3828
    %v4922 = vunpack.c.l.b16 %v3829
    %v4923 = vunpack.c.h.b16 %v3829
    %v4924 = vunpack.c.l.b16 %v3830
    %v4925 = vunpack.c.h.b16 %v3830
    %v4926 = vunpack.c.l.b16 %v3831
    %v4927 = vunpack.c.h.b16 %v3831
    %v4928 = vunpack.c.l.b16 %v3832
    %v4929 = vunpack.c.h.b16 %v3832
    %v4930 = vunpack.c.l.b16 %v3833
    %v4931 = vunpack.c.h.b16 %v3833
    %v4932 = vunpack.c.l.b16 %v3834
    %v4933 = vunpack.c.h.b16 %v3834
    %v4934 = vunpack.c.l.b16 %v3835
    %v4935 = vunpack.c.h.b16 %v3835
    %v4936 = vunpack.c.l.b16 %v3836
    %v4937 = vunpack.c.h.b16 %v3836
    %v4938 = vunpack.c.l.b16 %v3837
    %v4939 = vunpack.c.h.b16 %v3837
    %v4940 = vunpack.c.l.b16 %v3838
    %v4941 = vunpack.c.h.b16 %v3838
    %v4942 = vunpack.c.l.b16 %v3839
    %v4943 = vunpack.c.h.b16 %v3839
    %v4944 = vunpack.c.l.b16 %v3840
    %v4945 = vunpack.c.h.b16 %v3840
    %v4946 = vunpack.c.l.b16 %v3841
    %v4947 = vunpack.c.h.b16 %v3841
    %v4948 = vunpack.c.l.b16 %v3842
    %v4949 = vunpack.c.h.b16 %v3842
    %v4950 = vunpack.c.l.b16 %v3843
    %v4951 = vunpack.c.h.b16 %v3843
    %v4952 = vunpack.c.l.b16 %v3844
    %v4953 = vunpack.c.h.b16 %v3844
    %v4954 = vunpack.c.l.b16 %v3845
    %v4955 = vunpack.c.h.b16 %v3845
    %v4956 = vunpack.c.l.b16 %v3846
    %v4957 = vunpack.c.h.b16 %v3846
    %v4958 = vunpack.c.l.b16 %v3847
    %v4959 = vunpack.c.h.b16 %v3847
    %v4960 = vunpack.c.l.b16 %v3848
    %v4961 = vunpack.c.h.b16 %v3848
    %v4962 = vunpack.c.l.b16 %v3849
    %v4963 = vunpack.c.h.b16 %v3849
    %v4964 = vunpack.c.l.b16 %v3850
    %v4965 = vunpack.c.h.b16 %v3850
    %v4966 = vunpack.c.l.b16 %v3851
    %v4967 = vunpack.c.h.b16 %v3851
    %v4968 = vunpack.c.l.b16 %v3852
    %v4969 = vunpack.c.h.b16 %v3852
    %v4970 = vunpack.c.l.b16 %v3853
    %v4971 = vunpack.c.h.b16 %v3853
    %v4972 = vunpack.c.l.b16 %v3854
    %v4973 = vunpack.c.h.b16 %v3854
    %v4974 = vunpack.c.l.b16 %v3855
    %v4975 = vunpack.c.h.b16 %v3855
    %v4976 = vunpack.c.l.b16 %v3856
    %v4977 = vunpack.c.h.b16 %v3856
    %v4978 = vunpack.c.l.b16 %v3857
    %v4979 = vunpack.c.h.b16 %v3857
    %v4980 = vunpack.c.l.b16 %v3858
    %v4981 = vunpack.c.h.b16 %v3858
    %v4982 = vunpack.c.l.b16 %v3859
    %v4983 = vunpack.c.h.b16 %v3859
    %v4984 = vunpack.c.l.b16 %v3860
    %v4985 = vunpack.c.h.b16 %v3860
    %v4986 = vunpack.c.l.b16 %v3861
    %v4987 = vunpack.c.h.b16 %v3861
    %v4988 = vunpack.c.l.b16 %v3862
    %v4989 = vunpack.c.h.b16 %v3862
    %v4990 = vunpack.c.l.b16 %v3863
    %v4991 = vunpack.c.h.b16 %v3863
    %v4992 = vunpack.c.l.b16 %v3864
    %v4993 = vunpack.c.h.b16 %v3864
    %v4994 = vunpack.c.l.b16 %v3865
    %v4995 = vunpack.c.h.b16 %v3865
    %v4996 = vunpack.c.l.b16 %v3866
    %v4997 = vunpack.c.h.b16 %v3866
    %v4998 = vunpack.c.l.b16 %v3867
    %v4999 = vunpack.c.h.b16 %v3867
    %v5000 = vunpack.c.l.b16 %v3868
    %v5001 = vunpack.c.h.b16 %v3868
    %v5002 = vunpack.c.l.b16 %v3869
    %v5003 = vunpack.c.h.b16 %v3869
    %v5004 = vunpack.c.l.b16 %v3870
    %v5005 = vunpack.c.h.b16 %v3870
    %v5006 = vunpack.c.l.b16 %v3871
    %v5007 = vunpack.c.h.b16 %v3871
    %v5008 = vunpack.c.l.b16 %v3872
    %v5009 = vunpack.c.h.b16 %v3872
    %v5010 = vunpack.c.l.b16 %v3873
    %v5011 = vunpack.c.h.b16 %v3873
    %v5012 = vunpack.c.l.b16 %v3874
    %v5013 = vunpack.c.h.b16 %v3874
    %v5014 = vunpack.c.l.b16 %v3875
    %v5015 = vunpack.c.h.b16 %v3875
    %v5016 = vunpack.c.l.b16 %v3876
    %v5017 = vunpack.c.h.b16 %v3876
    %v5018 = vunpack.c.l.b16 %v3877
    %v5019 = vunpack.c.h.b16 %v3877
    %v5020 = vunpack.c.l.b16 %v3878
    %v5021 = vunpack.c.h.b16 %v3878
    %v5022 = vunpack.c.l.b16 %v3879
    %v5023 = vunpack.c.h.b16 %v3879
    %v5024 = vunpack.c.l.b16 %v3880
    %v5025 = vunpack.c.h.b16 %v3880
    %v5026 = vunpack.c.l.b16 %v3881
    %v5027 = vunpack.c.h.b16 %v3881
    %v5028 = vunpack.c.l.b16 %v3882
    %v5029 = vunpack.c.h.b16 %v3882
    %v5030 = vunpack.c.l.b16 %v3883
    %v5031 = vunpack.c.h.b16 %v3883
    %v5032 = vunpack.c.l.b16 %v3884
    %v5033 = vunpack.c.h.b16 %v3884
    %v5034 = vunpack.c.l.b16 %v3885
    %v5035 = vunpack.c.h.b16 %v3885
    %v5036 = vunpack.c.l.b16 %v3886
    %v5037 = vunpack.c.h.b16 %v3886
    %v5038 = vunpack.c.l.b16 %v3887
    %v5039 = vunpack.c.h.b16 %v3887
    %v5040 = vunpack.c.l.b16 %v3888
    %v5041 = vunpack.c.h.b16 %v3888
    %v5042 = vunpack.c.l.b16 %v3889
    %v5043 = vunpack.c.h.b16 %v3889
    %v5044 = vunpack.c.l.b16 %v3890
    %v5045 = vunpack.c.h.b16 %v3890
    %v5046 = vunpack.c.l.b16 %v3891
    %v5047 = vunpack.c.h.b16 %v3891
    %v5048 = vunpack.c.l.b16 %v3892
    %v5049 = vunpack.c.h.b16 %v3892
    %v5050 = vunpack.c.l.b16 %v3893
    %v5051 = vunpack.c.h.b16 %v3893
    %v5052 = vunpack.c.l.b16 %v3894
    %v5053 = vunpack.c.h.b16 %v3894
    %v5054 = vunpack.c.l.b16 %v3895
    %v5055 = vunpack.c.h.b16 %v3895
    %v5056 = vunpack.c.l.b16 %v3896
    %v5057 = vunpack.c.h.b16 %v3896
    %v5058 = vunpack.c.l.b16 %v3897
    %v5059 = vunpack.c.h.b16 %v3897
    %v5060 = vunpack.c.l.b16 %v3898
    %v5061 = vunpack.c.h.b16 %v3898
    %v5062 = vunpack.c.l.b16 %v3899
    %v5063 = vunpack.c.h.b16 %v3899
    %v5064 = vunpack.c.l.b16 %v3900
    %v5065 = vunpack.c.h.b16 %v3900
    %v5066 = vunpack.c.l.b16 %v3901
    %v5067 = vunpack.c.h.b16 %v3901
    %v5068 = vunpack.c.l.b16 %v3902
    %v5069 = vunpack.c.h.b16 %v3902
    %v5070 = vunpack.c.l.b16 %v3903
    %v5071 = vunpack.c.h.b16 %v3903
    %v5072 = vunpack.c.l.b16 %v3904
    %v5073 = vunpack.c.h.b16 %v3904
    %v5074 = vunpack.c.l.b16 %v3905
    %v5075 = vunpack.c.h.b16 %v3905
    %v5076 = vunpack.c.l.b16 %v3906
    %v5077 = vunpack.c.h.b16 %v3906
    %v5078 = vunpack.c.l.b16 %v3907
    %v5079 = vunpack.c.h.b16 %v3907
    %v5080 = vunpack.c.l.b16 %v3908
    %v5081 = vunpack.c.h.b16 %v3908
    %v5082 = vunpack.c.l.b16 %v3909
    %v5083 = vunpack.c.h.b16 %v3909
    %v5084 = vunpack.c.l.b16 %v3910
    %v5085 = vunpack.c.h.b16 %v3910
    %v5086 = vunpack.c.l.b16 %v3911
    %v5087 = vunpack.c.h.b16 %v3911
    %v5088 = vunpack.c.l.b16 %v3912
    %v5089 = vunpack.c.h.b16 %v3912
    %v5090 = vunpack.c.l.b16 %v3913
    %v5091 = vunpack.c.h.b16 %v3913
    %v5092 = vunpack.c.l.b16 %v3914
    %v5093 = vunpack.c.h.b16 %v3914
    %v5094 = vunpack.c.l.b16 %v3915
    %v5095 = vunpack.c.h.b16 %v3915
    %v5096 = vunpack.c.l.b16 %v3916
    %v5097 = vunpack.c.h.b16 %v3916
    %v5098 = vunpack.c.l.b16 %v3917
    %v5099 = vunpack.c.h.b16 %v3917
    %v5100 = vunpack.c.l.b16 %v3918
    %v5101 = vunpack.c.h.b16 %v3918
    %v5102 = vunpack.c.l.b16 %v3919
    %v5103 = vunpack.c.h.b16 %v3919
    %v5104 = vpack.c.b16 %v4342, %v4336
    %v5105 = vpack.c.b16 %v4343, %v4337
    %v5106 = vpack.c.b16 %v4344, %v4338
    %v5107 = vpack.c.b16 %v4345, %v4339
    %v5108 = vpack.c.b16 %v4346, %v4340
    %v5109 = vpack.c.b16 %v4347, %v4341
    %v5110 = vpack.c.b16 %v4354, %v4348
    %v5111 = vpack.c.b16 %v4355, %v4349
    %v5112 = vpack.c.b16 %v4356, %v4350
    %v5113 = vpack.c.b16 %v4357, %v4351
    %v5114 = vpack.c.b16 %v4358, %v4352
    %v5115 = vpack.c.b16 %v4359, %v4353
    %v5116 = vpack.c.b16 %v4366, %v4360
    %v5117 = vpack.c.b16 %v4367, %v4361
    %v5118 = vpack.c.b16 %v4368, %v4362
    %v5119 = vpack.c.b16 %v4369, %v4363
    %v5120 = vpack.c.b16 %v4370, %v4364
    %v5121 = vpack.c.b16 %v4371, %v4365
    %v5122 = vpack.c.b16 %v4378, %v4372
    %v5123 = vpack.c.b16 %v4379, %v4373
    %v5124 = vpack.c.b16 %v4380, %v4374
    %v5125 = vpack.c.b16 %v4381, %v4375
    %v5126 = vpack.c.b16 %v4382, %v4376
    %v5127 = vpack.c.b16 %v4383, %v4377
    %v5128 = vpack.c.b16 %v4390, %v4384
    %v5129 = vpack.c.b16 %v4391, %v4385
    %v5130 = vpack.c.b16 %v4392, %v4386
    %v5131 = vpack.c.b16 %v4393, %v4387
    %v5132 = vpack.c.b16 %v4394, %v4388
    %v5133 = vpack.c.b16 %v4395, %v4389
    %v5134 = vpack.c.b16 %v4402, %v4396
    %v5135 = vpack.c.b16 %v4403, %v4397
    %v5136 = vpack.c.b16 %v4404, %v4398
    %v5137 = vpack.c.b16 %v4405, %v4399
    %v5138 = vpack.c.b16 %v4406, %v4400
    %v5139 = vpack.c.b16 %v4407, %v4401
    %v5140 = vpack.c.b16 %v4414, %v4408
    %v5141 = vpack.c.b16 %v4415, %v4409
    %v5142 = vpack.c.b16 %v4416, %v4410
    %v5143 = vpack.c.b16 %v4417, %v4411
    %v5144 = vpack.c.b16 %v4418, %v4412
    %v5145 = vpack.c.b16 %v4419, %v4413
    %v5146 = vpack.c.b16 %v4426, %v4420
    %v5147 = vpack.c.b16 %v4427, %v4421
    %v5148 = vpack.c.b16 %v4428, %v4422
    %v5149 = vpack.c.b16 %v4429, %v4423
    %v5150 = vpack.c.b16 %v4430, %v4424
    %v5151 = vpack.c.b16 %v4431, %v4425
    %v5152 = vpack.c.b16 %v4438, %v4432
    %v5153 = vpack.c.b16 %v4439, %v4433
    %v5154 = vpack.c.b16 %v4440, %v4434
    %v5155 = vpack.c.b16 %v4441, %v4435
    %v5156 = vpack.c.b16 %v4442, %v4436
    %v5157 = vpack.c.b16 %v4443, %v4437
    %v5158 = vpack.c.b16 %v4450, %v4444
    %v5159 = vpack.c.b16 %v4451, %v4445
    %v5160 = vpack.c.b16 %v4452, %v4446
    %v5161 = vpack.c.b16 %v4453, %v4447
    %v5162 = vpack.c.b16 %v4454, %v4448
    %v5163 = vpack.c.b16 %v4455, %v4449
    %v5164 = vpack.c.b16 %v4462, %v4456
    %v5165 = vpack.c.b16 %v4463, %v4457
    %v5166 = vpack.c.b16 %v4464, %v4458
    %v5167 = vpack.c.b16 %v4465, %v4459
    %v5168 = vpack.c.b16 %v4466, %v4460
    %v5169 = vpack.c.b16 %v4467, %v4461
    %v5170 = vpack.c.b16 %v4474, %v4468
    %v5171 = vpack.c.b16 %v4475, %v4469
    %v5172 = vpack.c.b16 %v4476, %v4470
    %v5173 = vpack.c.b16 %v4477, %v4471
    %v5174 = vpack.c.b16 %v4478, %v4472
    %v5175 = vpack.c.b16 %v4479, %v4473
    %v5176 = vpack.c.b16 %v4486, %v4480
    %v5177 = vpack.c.b16 %v4487, %v4481
    %v5178 = vpack.c.b16 %v4488, %v4482
    %v5179 = vpack.c.b16 %v4489, %v4483
    %v5180 = vpack.c.b16 %v4490, %v4484
    %v5181 = vpack.c.b16 %v4491, %v4485
    %v5182 = vpack.c.b16 %v4498, %v4492
    %v5183 = vpack.c.b16 %v4499, %v4493
    %v5184 = vpack.c.b16 %v4500, %v4494
    %v5185 = vpack.c.b16 %v4501, %v4495
    %v5186 = vpack.c.b16 %v4502, %v4496
    %v5187 = vpack.c.b16 %v4503, %v4497
    %v5188 = vpack.c.b16 %v4510, %v4504
    %v5189 = vpack.c.b16 %v4511, %v4505
    %v5190 = vpack.c.b16 %v4512, %v4506
    %v5191 = vpack.c.b16 %v4513, %v4507
    %v5192 = vpack.c.b16 %v4514, %v4508
    %v5193 = vpack.c.b16 %v4515, %v4509
    %v5194 = vpack.c.b16 %v4522, %v4516
    %v5195 = vpack.c.b16 %v4523, %v4517
    %v5196 = vpack.c.b16 %v4524, %v4518
    %v5197 = vpack.c.b16 %v4525, %v4519
    %v5198 = vpack.c.b16 %v4526, %v4520
    %v5199 = vpack.c.b16 %v4527, %v4521
    %v5200 = vpack.c.b16 %v4534, %v4528
    %v5201 = vpack.c.b16 %v4535, %v4529
    %v5202 = vpack.c.b16 %v4536, %v4530
    %v5203 = vpack.c.b16 %v4537, %v4531
    %v5204 = vpack.c.b16 %v4538, %v4532
    %v5205 = vpack.c.b16 %v4539, %v4533
    %v5206 = vpack.c.b16 %v4546, %v4540
    %v5207 = vpack.c.b16 %v4547, %v4541
    %v5208 = vpack.c.b16 %v4548, %v4542
    %v5209 = vpack.c.b16 %v4549, %v4543
    %v5210 = vpack.c.b16 %v4550, %v4544
    %v5211 = vpack.c.b16 %v4551, %v4545
    %v5212 = vpack.c.b16 %v4558, %v4552
    %v5213 = vpack.c.b16 %v4559, %v4553
    %v5214 = vpack.c.b16 %v4560, %v4554
    %v5215 = vpack.c.b16 %v4561, %v4555
    %v5216 = vpack.c.b16 %v4562, %v4556
    %v5217 = vpack.c.b16 %v4563, %v4557
    %v5218 = vpack.c.b16 %v4570, %v4564
    %v5219 = vpack.c.b16 %v4571, %v4565
    %v5220 = vpack.c.b16 %v4572, %v4566
    %v5221 = vpack.c.b16 %v4573, %v4567
    %v5222 = vpack.c.b16 %v4574, %v4568
    %v5223 = vpack.c.b16 %v4575, %v4569
    %v5224 = vpack.c.b16 %v4582, %v4576
    %v5225 = vpack.c.b16 %v4583, %v4577
    %v5226 = vpack.c.b16 %v4584, %v4578
    %v5227 = vpack.c.b16 %v4585, %v4579
    %v5228 = vpack.c.b16 %v4586, %v4580
    %v5229 = vpack.c.b16 %v4587, %v4581
    %v5230 = vpack.c.b16 %v4594, %v4588
    %v5231 = vpack.c.b16 %v4595, %v4589
    %v5232 = vpack.c.b16 %v4596, %v4590
    %v5233 = vpack.c.b16 %v4597, %v4591
    %v5234 = vpack.c.b16 %v4598, %v4592
    %v5235 = vpack.c.b16 %v4599, %v4593
    %v5236 = vpack.c.b16 %v4606, %v4600
    %v5237 = vpack.c.b16 %v4607, %v4601
    %v5238 = vpack.c.b16 %v4608, %v4602
    %v5239 = vpack.c.b16 %v4609, %v4603
    %v5240 = vpack.c.b16 %v4610, %v4604
    %v5241 = vpack.c.b16 %v4611, %v4605
    %v5242 = vpack.c.b16 %v4618, %v4612
    %v5243 = vpack.c.b16 %v4619, %v4613
    %v5244 = vpack.c.b16 %v4620, %v4614
    %v5245 = vpack.c.b16 %v4621, %v4615
    %v5246 = vpack.c.b16 %v4622, %v4616
    %v5247 = vpack.c.b16 %v4623, %v4617
    %v5248 = vpack.c.b16 %v4630, %v4624
    %v5249 = vpack.c.b16 %v4631, %v4625
    %v5250 = vpack.c.b16 %v4632, %v4626
    %v5251 = vpack.c.b16 %v4633, %v4627
    %v5252 = vpack.c.b16 %v4634, %v4628
    %v5253 = vpack.c.b16 %v4635, %v4629
    %v5254 = vpack.c.b16 %v4642, %v4636
    %v5255 = vpack.c.b16 %v4643, %v4637
    %v5256 = vpack.c.b16 %v4644, %v4638
    %v5257 = vpack.c.b16 %v4645, %v4639
    %v5258 = vpack.c.b16 %v4646, %v4640
    %v5259 = vpack.c.b16 %v4647, %v4641
    %v5260 = vpack.c.b16 %v4654, %v4648
    %v5261 = vpack.c.b16 %v4655, %v4649
    %v5262 = vpack.c.b16 %v4656, %v4650
    %v5263 = vpack.c.b16 %v4657, %v4651
    %v5264 = vpack.c.b16 %v4658, %v4652
    %v5265 = vpack.c.b16 %v4659, %v4653
    %v5266 = vpack.c.b16 %v4666, %v4660
    %v5267 = vpack.c.b16 %v4667, %v4661
    %v5268 = vpack.c.b16 %v4668, %v4662
    %v5269 = vpack.c.b16 %v4669, %v4663
    %v5270 = vpack.c.b16 %v4670, %v4664
    %v5271 = vpack.c.b16 %v4671, %v4665
    %v5272 = vpack.c.b16 %v4678, %v4672
    %v5273 = vpack.c.b16 %v4679, %v4673
    %v5274 = vpack.c.b16 %v4680, %v4674
    %v5275 = vpack.c.b16 %v4681, %v4675
    %v5276 = vpack.c.b16 %v4682, %v4676
    %v5277 = vpack.c.b16 %v4683, %v4677
    %v5278 = vpack.c.b16 %v4690, %v4684
    %v5279 = vpack.c.b16 %v4691, %v4685
    %v5280 = vpack.c.b16 %v4692, %v4686
    %v5281 = vpack.c.b16 %v4693, %v4687
    %v5282 = vpack.c.b16 %v4694, %v4688
    %v5283 = vpack.c.b16 %v4695, %v4689
    %v5284 = vpack.c.b16 %v4702, %v4696
    %v5285 = vpack.c.b16 %v4703, %v4697
    %v5286 = vpack.c.b16 %v4704, %v4698
    %v5287 = vpack.c.b16 %v4705, %v4699
    %v5288 = vpack.c.b16 %v4706, %v4700
    %v5289 = vpack.c.b16 %v4707, %v4701
    %v5290 = vpack.c.b16 %v4714, %v4708
    %v5291 = vpack.c.b16 %v4715, %v4709
    %v5292 = vpack.c.b16 %v4716, %v4710
    %v5293 = vpack.c.b16 %v4717, %v4711
    %v5294 = vpack.c.b16 %v4718, %v4712
    %v5295 = vpack.c.b16 %v4719, %v4713
    %v5296 = vpack.c.b16 %v4726, %v4720
    %v5297 = vpack.c.b16 %v4727, %v4721
    %v5298 = vpack.c.b16 %v4728, %v4722
    %v5299 = vpack.c.b16 %v4729, %v4723
    %v5300 = vpack.c.b16 %v4730, %v4724
    %v5301 = vpack.c.b16 %v4731, %v4725
    %v5302 = vpack.c.b16 %v4738, %v4732
    %v5303 = vpack.c.b16 %v4739, %v4733
    %v5304 = vpack.c.b16 %v4740, %v4734
    %v5305 = vpack.c.b16 %v4741, %v4735
    %v5306 = vpack.c.b16 %v4742, %v4736
    %v5307 = vpack.c.b16 %v4743, %v4737
    %v5308 = vpack.c.b16 %v4750, %v4744
    %v5309 = vpack.c.b16 %v4751, %v4745
    %v5310 = vpack.c.b16 %v4752, %v4746
    %v5311 = vpack.c.b16 %v4753, %v4747
    %v5312 = vpack.c.b16 %v4754, %v4748
    %v5313 = vpack.c.b16 %v4755, %v4749
    %v5314 = vpack.c.b16 %v4762, %v4756
    %v5315 = vpack.c.b16 %v4763, %v4757
    %v5316 = vpack.c.b16 %v4764, %v4758
    %v5317 = vpack.c.b16 %v4765, %v4759
    %v5318 = vpack.c.b16 %v4766, %v4760
    %v5319 = vpack.c.b16 %v4767, %v4761
    %v5320 = vpack.c.b16 %v4774, %v4768
    %v5321 = vpack.c.b16 %v4775, %v4769
    %v5322 = vpack.c.b16 %v4776, %v4770
    %v5323 = vpack.c.b16 %v4777, %v4771
    %v5324 = vpack.c.b16 %v4778, %v4772
    %v5325 = vpack.c.b16 %v4779, %v4773
    %v5326 = vpack.c.b16 %v4786, %v4780
    %v5327 = vpack.c.b16 %v4787, %v4781
    %v5328 = vpack.c.b16 %v4788, %v4782
    %v5329 = vpack.c.b16 %v4789, %v4783
    %v5330 = vpack.c.b16 %v4790, %v4784
    %v5331 = vpack.c.b16 %v4791, %v4785
    %v5332 = vpack.c.b16 %v4798, %v4792
    %v5333 = vpack.c.b16 %v4799, %v4793
    %v5334 = vpack.c.b16 %v4800, %v4794
    %v5335 = vpack.c.b16 %v4801, %v4795
    %v5336 = vpack.c.b16 %v4802, %v4796
    %v5337 = vpack.c.b16 %v4803, %v4797
    %v5338 = vpack.c.b16 %v4810, %v4804
    %v5339 = vpack.c.b16 %v4811, %v4805
    %v5340 = vpack.c.b16 %v4812, %v4806
    %v5341 = vpack.c.b16 %v4813, %v4807
    %v5342 = vpack.c.b16 %v4814, %v4808
    %v5343 = vpack.c.b16 %v4815, %v4809
    %v5344 = vpack.c.b16 %v4822, %v4816
    %v5345 = vpack.c.b16 %v4823, %v4817
    %v5346 = vpack.c.b16 %v4824, %v4818
    %v5347 = vpack.c.b16 %v4825, %v4819
    %v5348 = vpack.c.b16 %v4826, %v4820
    %v5349 = vpack.c.b16 %v4827, %v4821
    %v5350 = vpack.c.b16 %v4834, %v4828
    %v5351 = vpack.c.b16 %v4835, %v4829
    %v5352 = vpack.c.b16 %v4836, %v4830
    %v5353 = vpack.c.b16 %v4837, %v4831
    %v5354 = vpack.c.b16 %v4838, %v4832
    %v5355 = vpack.c.b16 %v4839, %v4833
    %v5356 = vpack.c.b16 %v4846, %v4840
    %v5357 = vpack.c.b16 %v4847, %v4841
    %v5358 = vpack.c.b16 %v4848, %v4842
    %v5359 = vpack.c.b16 %v4849, %v4843
    %v5360 = vpack.c.b16 %v4850, %v4844
    %v5361 = vpack.c.b16 %v4851, %v4845
    %v5362 = vpack.c.b16 %v4858, %v4852
    %v5363 = vpack.c.b16 %v4859, %v4853
    %v5364 = vpack.c.b16 %v4860, %v4854
    %v5365 = vpack.c.b16 %v4861, %v4855
    %v5366 = vpack.c.b16 %v4862, %v4856
    %v5367 = vpack.c.b16 %v4863, %v4857
    %v5368 = vpack.c.b16 %v4870, %v4864
    %v5369 = vpack.c.b16 %v4871, %v4865
    %v5370 = vpack.c.b16 %v4872, %v4866
    %v5371 = vpack.c.b16 %v4873, %v4867
    %v5372 = vpack.c.b16 %v4874, %v4868
    %v5373 = vpack.c.b16 %v4875, %v4869
    %v5374 = vpack.c.b16 %v4882, %v4876
    %v5375 = vpack.c.b16 %v4883, %v4877
    %v5376 = vpack.c.b16 %v4884, %v4878
    %v5377 = vpack.c.b16 %v4885, %v4879
    %v5378 = vpack.c.b16 %v4886, %v4880
    %v5379 = vpack.c.b16 %v4887, %v4881
    %v5380 = vpack.c.b16 %v4894, %v4888
    %v5381 = vpack.c.b16 %v4895, %v4889
    %v5382 = vpack.c.b16 %v4896, %v4890
    %v5383 = vpack.c.b16 %v4897, %v4891
    %v5384 = vpack.c.b16 %v4898, %v4892
    %v5385 = vpack.c.b16 %v4899, %v4893
    %v5386 = vpack.c.b16 %v4906, %v4900
    %v5387 = vpack.c.b16 %v4907, %v4901
    %v5388 = vpack.c.b16 %v4908, %v4902
    %v5389 = vpack.c.b16 %v4909, %v4903
    %v5390 = vpack.c.b16 %v4910, %v4904
    %v5391 = vpack.c.b16 %v4911, %v4905
    %v5392 = vpack.c.b16 %v4918, %v4912
    %v5393 = vpack.c.b16 %v4919, %v4913
    %v5394 = vpack.c.b16 %v4920, %v4914
    %v5395 = vpack.c.b16 %v4921, %v4915
    %v5396 = vpack.c.b16 %v4922, %v4916
    %v5397 = vpack.c.b16 %v4923, %v4917
    %v5398 = vpack.c.b16 %v4930, %v4924
    %v5399 = vpack.c.b16 %v4931, %v4925
    %v5400 = vpack.c.b16 %v4932, %v4926
    %v5401 = vpack.c.b16 %v4933, %v4927
    %v5402 = vpack.c.b16 %v4934, %v4928
    %v5403 = vpack.c.b16 %v4935, %v4929
    %v5404 = vpack.c.b16 %v4942, %v4936
    %v5405 = vpack.c.b16 %v4943, %v4937
    %v5406 = vpack.c.b16 %v4944, %v4938
    %v5407 = vpack.c.b16 %v4945, %v4939
    %v5408 = vpack.c.b16 %v4946, %v4940
    %v5409 = vpack.c.b16 %v4947, %v4941
    %v5410 = vpack.c.b16 %v4954, %v4948
    %v5411 = vpack.c.b16 %v4955, %v4949
    %v5412 = vpack.c.b16 %v4956, %v4950
    %v5413 = vpack.c.b16 %v4957, %v4951
    %v5414 = vpack.c.b16 %v4958, %v4952
    %v5415 = vpack.c.b16 %v4959, %v4953
    %v5416 = vpack.c.b16 %v4966, %v4960
    %v5417 = vpack.c.b16 %v4967, %v4961
    %v5418 = vpack.c.b16 %v4968, %v4962
    %v5419 = vpack.c.b16 %v4969, %v4963
    %v5420 = vpack.c.b16 %v4970, %v4964
    %v5421 = vpack.c.b16 %v4971, %v4965
    %v5422 = vpack.c.b16 %v4978, %v4972
    %v5423 = vpack.c.b16 %v4979, %v4973
    %v5424 = vpack.c.b16 %v4980, %v4974
    %v5425 = vpack.c.b16 %v4981, %v4975
    %v5426 = vpack.c.b16 %v4982, %v4976
    %v5427 = vpack.c.b16 %v4983, %v4977
    %v5428 = vpack.c.b16 %v4990, %v4984
    %v5429 = vpack.c.b16 %v4991, %v4985
    %v5430 = vpack.c.b16 %v4992, %v4986
    %v5431 = vpack.c.b16 %v4993, %v4987
    %v5432 = vpack.c.b16 %v4994, %v4988
    %v5433 = vpack.c.b16 %v4995, %v4989
    %v5434 = vpack.c.b16 %v5002, %v4996
    %v5435 = vpack.c.b16 %v5003, %v4997
    %v5436 = vpack.c.b16 %v5004, %v4998
    %v5437 = vpack.c.b16 %v5005, %v4999
    %v5438 = vpack.c.b16 %v5006, %v5000
    %v5439 = vpack.c.b16 %v5007, %v5001
    %v5440 = vpack.c.b16 %v5014, %v5008
    %v5441 = vpack.c.b16 %v5015, %v5009
    %v5442 = vpack.c.b16 %v5016, %v5010
    %v5443 = vpack.c.b16 %v5017, %v5011
    %v5444 = vpack.c.b16 %v5018, %v5012
    %v5445 = vpack.c.b16 %v5019, %v5013
    %v5446 = vpack.c.b16 %v5026, %v5020
    %v5447 = vpack.c.b16 %v5027, %v5021
    %v5448 = vpack.c.b16 %v5028, %v5022
    %v5449 = vpack.c.b16 %v5029, %v5023
    %v5450 = vpack.c.b16 %v5030, %v5024
    %v5451 = vpack.c.b16 %v5031, %v5025
    %v5452 = vpack.c.b16 %v5038, %v5032
    %v5453 = vpack.c.b16 %v5039, %v5033
    %v5454 = vpack.c.b16 %v5040, %v5034
    %v5455 = vpack.c.b16 %v5041, %v5035
    %v5456 = vpack.c.b16 %v5042, %v5036
    %v5457 = vpack.c.b16 %v5043, %v5037
    %v5458 = vpack.c.b16 %v5050, %v5044
    %v5459 = vpack.c.b16 %v5051, %v5045
    %v5460 = vpack.c.b16 %v5052, %v5046
    %v5461 = vpack.c.b16 %v5053, %v5047
    %v5462 = vpack.c.b16 %v5054, %v5048
    %v5463 = vpack.c.b16 %v5055, %v5049
    %v5464 = vpack.c.b16 %v5062, %v5056
    %v5465 = vpack.c.b16 %v5063, %v5057
    %v5466 = vpack.c.b16 %v5064, %v5058
    %v5467 = vpack.c.b16 %v5065, %v5059
    %v5468 = vpack.c.b16 %v5066, %v5060
    %v5469 = vpack.c.b16 %v5067, %v5061
    %v5470 = vpack.c.b16 %v5074, %v5068
    %v5471 = vpack.c.b16 %v5075, %v5069
    %v5472 = vpack.c.b16 %v5076, %v5070
    %v5473 = vpack.c.b16 %v5077, %v5071
    %v5474 = vpack.c.b16 %v5078, %v5072
    %v5475 = vpack.c.b16 %v5079, %v5073
    %v5476 = vpack.c.b16 %v5086, %v5080
    %v5477 = vpack.c.b16 %v5087, %v5081
    %v5478 = vpack.c.b16 %v5088, %v5082
    %v5479 = vpack.c.b16 %v5089, %v5083
    %v5480 = vpack.c.b16 %v5090, %v5084
    %v5481 = vpack.c.b16 %v5091, %v5085
    %v5482 = vpack.c.b16 %v5098, %v5092
    %v5483 = vpack.c.b16 %v5099, %v5093
    %v5484 = vpack.c.b16 %v5100, %v5094
    %v5485 = vpack.c.b16 %v5101, %v5095
    %v5486 = vpack.c.b16 %v5102, %v5096
    %v5487 = vpack.c.b16 %v5103, %v5097
    %5872 = vmatprep.subr.bf16.mxu0 %v5105
    %5873 = vmatpush1.bf16.msra.mxu0 %v5104
    %5874 = vmatprep.subr.bf16.mxu0 %v5111
    %5875 = vmatpush1.bf16.msra.mxu0 %v5110
    %5876 = vmatprep.subr.bf16.mxu0 %v5117
    %5877 = vmatpush1.bf16.msra.mxu0 %v5116
    %5878 = vmatprep.subr.bf16.mxu0 %v5123
    %5879 = vmatpush1.bf16.msra.mxu0 %v5122
    %5880 = vmatprep.subr.bf16.mxu0 %v5129
    %5881 = vmatpush1.bf16.msra.mxu0 %v5128
    %5882 = vmatprep.subr.bf16.mxu0 %v5135
    %5883 = vmatpush1.bf16.msra.mxu0 %v5134
    %5884 = vmatprep.subr.bf16.mxu0 %v5141
    %5885 = vmatpush1.bf16.msra.mxu0 %v5140
    %5886 = vmatprep.subr.bf16.mxu0 %v5147
    %5887 = vmatpush1.bf16.msra.mxu0 %v5146
    %5888 = vmatprep.subr.bf16.mxu0 %v5153
    %5889 = vmatpush1.bf16.msra.mxu0 %v5152
    %5890 = vmatprep.subr.bf16.mxu0 %v5159
    %5891 = vmatpush1.bf16.msra.mxu0 %v5158
    %5892 = vmatprep.subr.bf16.mxu0 %v5165
    %5893 = vmatpush1.bf16.msra.mxu0 %v5164
    %5894 = vmatprep.subr.bf16.mxu0 %v5171
    %5895 = vmatpush1.bf16.msra.mxu0 %v5170
    %5896 = vmatprep.subr.bf16.mxu0 %v5177
    %5897 = vmatpush1.bf16.msra.mxu0 %v5176
    %5898 = vmatprep.subr.bf16.mxu0 %v5183
    %5899 = vmatpush1.bf16.msra.mxu0 %v5182
    %5900 = vmatprep.subr.bf16.mxu0 %v5189
    %5901 = vmatpush1.bf16.msra.mxu0 %v5188
    %5902 = vmatprep.subr.bf16.mxu0 %v5195
    %5903 = vmatpush1.bf16.msra.mxu0 %v5194
    %5904 = vmatprep.mubr.bf16.mxu0 %v3529
    %5905 = vmatmul.mubr.bf16.gmra.mrb[0].mxu0 %v3528
    %v5906 = vpop.f32.mrb[0].mxu0
    %v5907 = vadd.f32 %v3925, %v5906
    %v5908 = vpop.f32.mrb[0].mxu0
    %v5909 = vadd.f32 %v3929, %v5908
    %v5910 = vpop.f32.mrb[0].mxu0
    %v5911 = vpop.f32.mrb[0].mxu0
    %5912 = vdwg.mxu0
    %5913 = vmatprep.subr.bf16.mxu0 %v5201
    %5914 = vmatpush1.bf16.msra.mxu0 %v5200
    %5915 = vmatprep.subr.bf16.mxu0 %v5207
    %5916 = vmatpush1.bf16.msra.mxu0 %v5206
    %5917 = vmatprep.subr.bf16.mxu0 %v5213
    %5918 = vmatpush1.bf16.msra.mxu0 %v5212
    %5919 = vmatprep.subr.bf16.mxu0 %v5219
    %5920 = vmatpush1.bf16.msra.mxu0 %v5218
    %5921 = vmatprep.subr.bf16.mxu0 %v5225
    %5922 = vmatpush1.bf16.msra.mxu0 %v5224
    %5923 = vmatprep.subr.bf16.mxu0 %v5231
    %5924 = vmatpush1.bf16.msra.mxu0 %v5230
    %5925 = vmatprep.subr.bf16.mxu0 %v5237
    %5926 = vmatpush1.bf16.msra.mxu0 %v5236
    %5927 = vmatprep.subr.bf16.mxu0 %v5243
    %5928 = vmatpush1.bf16.msra.mxu0 %v5242
    %5929 = vmatprep.subr.bf16.mxu0 %v5249
    %5930 = vmatpush1.bf16.msra.mxu0 %v5248
    %5931 = vmatprep.subr.bf16.mxu0 %v5255
    %5932 = vmatpush1.bf16.msra.mxu0 %v5254
    %5933 = vmatprep.subr.bf16.mxu0 %v5261
    %5934 = vmatpush1.bf16.msra.mxu0 %v5260
    %5935 = vmatprep.subr.bf16.mxu0 %v5267
    %5936 = vmatpush1.bf16.msra.mxu0 %v5266
    %5937 = vmatprep.subr.bf16.mxu0 %v5273
    %5938 = vmatpush1.bf16.msra.mxu0 %v5272
    %5939 = vmatprep.subr.bf16.mxu0 %v5279
    %5940 = vmatpush1.bf16.msra.mxu0 %v5278
    %5941 = vmatprep.subr.bf16.mxu0 %v5285
    %5942 = vmatpush1.bf16.msra.mxu0 %v5284
    %5943 = vmatprep.subr.bf16.mxu0 %v5291
    %5944 = vmatpush1.bf16.msra.mxu0 %v5290
    %5945 = vmatprep.mubr.bf16.mxu0 %v3531
    %5946 = vmatmul.mubr.bf16.gmra.mrb[0].mxu0 %v3530
    %v5947 = vpop.f32.mrb[0].mxu0
    %v5948 = vadd.f32 %v5907, %v5947
    %v5949 = vpop.f32.mrb[0].mxu0
    %v5950 = vadd.f32 %v5909, %v5949
    %v5951 = vpop.f32.mrb[0].mxu0
    %v5952 = vpop.f32.mrb[0].mxu0
    %5953 = vdwg.mxu0
    %5954 = vmatprep.subr.bf16.mxu0 %v5297
    %5955 = vmatpush1.bf16.msra.mxu0 %v5296
    %5956 = vmatprep.subr.bf16.mxu0 %v5303
    %5957 = vmatpush1.bf16.msra.mxu0 %v5302
    %5958 = vmatprep.subr.bf16.mxu0 %v5309
    %5959 = vmatpush1.bf16.msra.mxu0 %v5308
    %5960 = vmatprep.subr.bf16.mxu0 %v5315
    %5961 = vmatpush1.bf16.msra.mxu0 %v5314
    %5962 = vmatprep.subr.bf16.mxu0 %v5321
    %5963 = vmatpush1.bf16.msra.mxu0 %v5320
    %5964 = vmatprep.subr.bf16.mxu0 %v5327
    %5965 = vmatpush1.bf16.msra.mxu0 %v5326
    %5966 = vmatprep.subr.bf16.mxu0 %v5333
    %5967 = vmatpush1.bf16.msra.mxu0 %v5332
    %5968 = vmatprep.subr.bf16.mxu0 %v5339
    %5969 = vmatpush1.bf16.msra.mxu0 %v5338
    %5970 = vmatprep.subr.bf16.mxu0 %v5345
    %5971 = vmatpush1.bf16.msra.mxu0 %v5344
    %5972 = vmatprep.subr.bf16.mxu0 %v5351
    %5973 = vmatpush1.bf16.msra.mxu0 %v5350
    %5974 = vmatprep.subr.bf16.mxu0 %v5357
    %5975 = vmatpush1.bf16.msra.mxu0 %v5356
    %5976 = vmatprep.subr.bf16.mxu0 %v5363
    %5977 = vmatpush1.bf16.msra.mxu0 %v5362
    %5978 = vmatprep.subr.bf16.mxu0 %v5369
    %5979 = vmatpush1.bf16.msra.mxu0 %v5368
    %5980 = vmatprep.subr.bf16.mxu0 %v5375
    %5981 = vmatpush1.bf16.msra.mxu0 %v5374
    %5982 = vmatprep.subr.bf16.mxu0 %v5381
    %5983 = vmatpush1.bf16.msra.mxu0 %v5380
    %5984 = vmatprep.subr.bf16.mxu0 %v5387
    %5985 = vmatpush1.bf16.msra.mxu0 %v5386
    %5986 = vmatprep.mubr.bf16.mxu0 %v3533
    %5987 = vmatmul.mubr.bf16.gmra.mrb[0].mxu0 %v3532
    %v5988 = vpop.f32.mrb[0].mxu0
    %v5989 = vadd.f32 %v5948, %v5988
    %v5990 = vpop.f32.mrb[0].mxu0
    %v5991 = vadd.f32 %v5950, %v5990
    %v5992 = vpop.f32.mrb[0].mxu0
    %v5993 = vpop.f32.mrb[0].mxu0
    %5994 = vdwg.mxu0
    %5995 = vmatprep.subr.bf16.mxu0 %v5393
    %5996 = vmatpush1.bf16.msra.mxu0 %v5392
    %5997 = vmatprep.subr.bf16.mxu0 %v5399
    %5998 = vmatpush1.bf16.msra.mxu0 %v5398
    %5999 = vmatprep.subr.bf16.mxu0 %v5405
    %6000 = vmatpush1.bf16.msra.mxu0 %v5404
    %6001 = vmatprep.subr.bf16.mxu0 %v5411
    %6002 = vmatpush1.bf16.msra.mxu0 %v5410
    %6003 = vmatprep.subr.bf16.mxu0 %v5417
    %6004 = vmatpush1.bf16.msra.mxu0 %v5416
    %6005 = vmatprep.subr.bf16.mxu0 %v5423
    %6006 = vmatpush1.bf16.msra.mxu0 %v5422
    %6007 = vmatprep.subr.bf16.mxu0 %v5429
    %6008 = vmatpush1.bf16.msra.mxu0 %v5428
    %6009 = vmatprep.subr.bf16.mxu0 %v5435
    %6010 = vmatpush1.bf16.msra.mxu0 %v5434
    %6011 = vmatprep.subr.bf16.mxu0 %v5441
    %6012 = vmatpush1.bf16.msra.mxu0 %v5440
    %6013 = vmatprep.subr.bf16.mxu0 %v5447
    %6014 = vmatpush1.bf16.msra.mxu0 %v5446
    %6015 = vmatprep.subr.bf16.mxu0 %v5453
    %6016 = vmatpush1.bf16.msra.mxu0 %v5452
    %6017 = vmatprep.subr.bf16.mxu0 %v5459
    %6018 = vmatpush1.bf16.msra.mxu0 %v5458
    %6019 = vmatprep.subr.bf16.mxu0 %v5465
    %6020 = vmatpush1.bf16.msra.mxu0 %v5464
    %6021 = vmatprep.subr.bf16.mxu0 %v5471
    %6022 = vmatpush1.bf16.msra.mxu0 %v5470
    %6023 = vmatprep.subr.bf16.mxu0 %v5477
    %6024 = vmatpush1.bf16.msra.mxu0 %v5476
    %6025 = vmatprep.subr.bf16.mxu0 %v5483
    %6026 = vmatpush1.bf16.msra.mxu0 %v5482
    %6027 = vmatprep.mubr.bf16.mxu0 %v3535
    %6028 = vmatmul.mubr.bf16.gmra.mrb[0].mxu0 %v3534
    %v6029 = vpop.f32.mrb[0].mxu0
    %v6030 = vadd.f32 %v5989, %v6029
    %v6031 = vpop.f32.mrb[0].mxu0
    %v6032 = vadd.f32 %v5991, %v6031
    %v6033 = vpop.f32.mrb[0].mxu0
    %v6034 = vpop.f32.mrb[0].mxu0
    %6035 = vdwg.mxu0
    %6036 = vmatprep.subr.bf16.mxu0 %v5107
    %6037 = vmatpush1.bf16.msra.mxu0 %v5106
    %6038 = vmatprep.subr.bf16.mxu0 %v5113
    %6039 = vmatpush1.bf16.msra.mxu0 %v5112
    %6040 = vmatprep.subr.bf16.mxu0 %v5119
    %6041 = vmatpush1.bf16.msra.mxu0 %v5118
    %6042 = vmatprep.subr.bf16.mxu0 %v5125
    %6043 = vmatpush1.bf16.msra.mxu0 %v5124
    %6044 = vmatprep.subr.bf16.mxu0 %v5131
    %6045 = vmatpush1.bf16.msra.mxu0 %v5130
    %6046 = vmatprep.subr.bf16.mxu0 %v5137
    %6047 = vmatpush1.bf16.msra.mxu0 %v5136
    %6048 = vmatprep.subr.bf16.mxu0 %v5143
    %6049 = vmatpush1.bf16.msra.mxu0 %v5142
    %6050 = vmatprep.subr.bf16.mxu0 %v5149
    %6051 = vmatpush1.bf16.msra.mxu0 %v5148
    %6052 = vmatprep.subr.bf16.mxu0 %v5155
    %6053 = vmatpush1.bf16.msra.mxu0 %v5154
    %6054 = vmatprep.subr.bf16.mxu0 %v5161
    %6055 = vmatpush1.bf16.msra.mxu0 %v5160
    %6056 = vmatprep.subr.bf16.mxu0 %v5167
    %6057 = vmatpush1.bf16.msra.mxu0 %v5166
    %6058 = vmatprep.subr.bf16.mxu0 %v5173
    %6059 = vmatpush1.bf16.msra.mxu0 %v5172
    %6060 = vmatprep.subr.bf16.mxu0 %v5179
    %6061 = vmatpush1.bf16.msra.mxu0 %v5178
    %6062 = vmatprep.subr.bf16.mxu0 %v5185
    %6063 = vmatpush1.bf16.msra.mxu0 %v5184
    %6064 = vmatprep.subr.bf16.mxu0 %v5191
    %6065 = vmatpush1.bf16.msra.mxu0 %v5190
    %6066 = vmatprep.subr.bf16.mxu0 %v5197
    %6067 = vmatpush1.bf16.msra.mxu0 %v5196
    %6068 = vmatprep.mubr.bf16.mxu0 %v3529
    %6069 = vmatmul.mubr.bf16.gmra.mrb[0].mxu0 %v3528
    %v6070 = vpop.f32.mrb[0].mxu0
    %v6071 = vadd.f32 %v3933, %v6070
    %v6072 = vpop.f32.mrb[0].mxu0
    %v6073 = vadd.f32 %v3937, %v6072
    %v6074 = vpop.f32.mrb[0].mxu0
    %v6075 = vpop.f32.mrb[0].mxu0
    %6076 = vdwg.mxu0
    %6077 = vmatprep.subr.bf16.mxu0 %v5203
    %6078 = vmatpush1.bf16.msra.mxu0 %v5202
    %6079 = vmatprep.subr.bf16.mxu0 %v5209
    %6080 = vmatpush1.bf16.msra.mxu0 %v5208
    %6081 = vmatprep.subr.bf16.mxu0 %v5215
    %6082 = vmatpush1.bf16.msra.mxu0 %v5214
    %6083 = vmatprep.subr.bf16.mxu0 %v5221
    %6084 = vmatpush1.bf16.msra.mxu0 %v5220
    %6085 = vmatprep.subr.bf16.mxu0 %v5227
    %6086 = vmatpush1.bf16.msra.mxu0 %v5226
    %6087 = vmatprep.subr.bf16.mxu0 %v5233
    %6088 = vmatpush1.bf16.msra.mxu0 %v5232
    %6089 = vmatprep.subr.bf16.mxu0 %v5239
    %6090 = vmatpush1.bf16.msra.mxu0 %v5238
    %6091 = vmatprep.subr.bf16.mxu0 %v5245
    %6092 = vmatpush1.bf16.msra.mxu0 %v5244
    %6093 = vmatprep.subr.bf16.mxu0 %v5251
    %6094 = vmatpush1.bf16.msra.mxu0 %v5250
    %6095 = vmatprep.subr.bf16.mxu0 %v5257
    %6096 = vmatpush1.bf16.msra.mxu0 %v5256
    %6097 = vmatprep.subr.bf16.mxu0 %v5263
    %6098 = vmatpush1.bf16.msra.mxu0 %v5262
    %6099 = vmatprep.subr.bf16.mxu0 %v5269
    %6100 = vmatpush1.bf16.msra.mxu0 %v5268
    %6101 = vmatprep.subr.bf16.mxu0 %v5275
    %6102 = vmatpush1.bf16.msra.mxu0 %v5274
    %6103 = vmatprep.subr.bf16.mxu0 %v5281
    %6104 = vmatpush1.bf16.msra.mxu0 %v5280
    %6105 = vmatprep.subr.bf16.mxu0 %v5287
    %6106 = vmatpush1.bf16.msra.mxu0 %v5286
    %6107 = vmatprep.subr.bf16.mxu0 %v5293
    %6108 = vmatpush1.bf16.msra.mxu0 %v5292
    %6109 = vmatprep.mubr.bf16.mxu0 %v3531
    %6110 = vmatmul.mubr.bf16.gmra.mrb[0].mxu0 %v3530
    %v6111 = vpop.f32.mrb[0].mxu0
    %v6112 = vadd.f32 %v6071, %v6111
    %v6113 = vpop.f32.mrb[0].mxu0
    %v6114 = vadd.f32 %v6073, %v6113
    %v6115 = vpop.f32.mrb[0].mxu0
    %v6116 = vpop.f32.mrb[0].mxu0
    %6117 = vdwg.mxu0
    %6118 = vmatprep.subr.bf16.mxu0 %v5299
    %6119 = vmatpush1.bf16.msra.mxu0 %v5298
    %6120 = vmatprep.subr.bf16.mxu0 %v5305
    %6121 = vmatpush1.bf16.msra.mxu0 %v5304
    %6122 = vmatprep.subr.bf16.mxu0 %v5311
    %6123 = vmatpush1.bf16.msra.mxu0 %v5310
    %6124 = vmatprep.subr.bf16.mxu0 %v5317
    %6125 = vmatpush1.bf16.msra.mxu0 %v5316
    %6126 = vmatprep.subr.bf16.mxu0 %v5323
    %6127 = vmatpush1.bf16.msra.mxu0 %v5322
    %6128 = vmatprep.subr.bf16.mxu0 %v5329
    %6129 = vmatpush1.bf16.msra.mxu0 %v5328
    %6130 = vmatprep.subr.bf16.mxu0 %v5335
    %6131 = vmatpush1.bf16.msra.mxu0 %v5334
    %6132 = vmatprep.subr.bf16.mxu0 %v5341
    %6133 = vmatpush1.bf16.msra.mxu0 %v5340
    %6134 = vmatprep.subr.bf16.mxu0 %v5347
    %6135 = vmatpush1.bf16.msra.mxu0 %v5346
    %6136 = vmatprep.subr.bf16.mxu0 %v5353
    %6137 = vmatpush1.bf16.msra.mxu0 %v5352
    %6138 = vmatprep.subr.bf16.mxu0 %v5359
    %6139 = vmatpush1.bf16.msra.mxu0 %v5358
    %6140 = vmatprep.subr.bf16.mxu0 %v5365
    %6141 = vmatpush1.bf16.msra.mxu0 %v5364
    %6142 = vmatprep.subr.bf16.mxu0 %v5371
    %6143 = vmatpush1.bf16.msra.mxu0 %v5370
    %6144 = vmatprep.subr.bf16.mxu0 %v5377
    %6145 = vmatpush1.bf16.msra.mxu0 %v5376
    %6146 = vmatprep.subr.bf16.mxu0 %v5383
    %6147 = vmatpush1.bf16.msra.mxu0 %v5382
    %6148 = vmatprep.subr.bf16.mxu0 %v5389
    %6149 = vmatpush1.bf16.msra.mxu0 %v5388
    %6150 = vmatprep.mubr.bf16.mxu0 %v3533
    %6151 = vmatmul.mubr.bf16.gmra.mrb[0].mxu0 %v3532
    %v6152 = vpop.f32.mrb[0].mxu0
    %v6153 = vadd.f32 %v6112, %v6152
    %v6154 = vpop.f32.mrb[0].mxu0
    %v6155 = vadd.f32 %v6114, %v6154
    %v6156 = vpop.f32.mrb[0].mxu0
    %v6157 = vpop.f32.mrb[0].mxu0
    %6158 = vdwg.mxu0
    %6159 = vmatprep.subr.bf16.mxu0 %v5395
    %6160 = vmatpush1.bf16.msra.mxu0 %v5394
    %6161 = vmatprep.subr.bf16.mxu0 %v5401
    %6162 = vmatpush1.bf16.msra.mxu0 %v5400
    %6163 = vmatprep.subr.bf16.mxu0 %v5407
    %6164 = vmatpush1.bf16.msra.mxu0 %v5406
    %6165 = vmatprep.subr.bf16.mxu0 %v5413
    %6166 = vmatpush1.bf16.msra.mxu0 %v5412
    %6167 = vmatprep.subr.bf16.mxu0 %v5419
    %6168 = vmatpush1.bf16.msra.mxu0 %v5418
    %6169 = vmatprep.subr.bf16.mxu0 %v5425
    %6170 = vmatpush1.bf16.msra.mxu0 %v5424
    %6171 = vmatprep.subr.bf16.mxu0 %v5431
    %6172 = vmatpush1.bf16.msra.mxu0 %v5430
    %6173 = vmatprep.subr.bf16.mxu0 %v5437
    %6174 = vmatpush1.bf16.msra.mxu0 %v5436
    %6175 = vmatprep.subr.bf16.mxu0 %v5443
    %6176 = vmatpush1.bf16.msra.mxu0 %v5442
    %6177 = vmatprep.subr.bf16.mxu0 %v5449
    %6178 = vmatpush1.bf16.msra.mxu0 %v5448
    %6179 = vmatprep.subr.bf16.mxu0 %v5455
    %6180 = vmatpush1.bf16.msra.mxu0 %v5454
    %6181 = vmatprep.subr.bf16.mxu0 %v5461
    %6182 = vmatpush1.bf16.msra.mxu0 %v5460
    %6183 = vmatprep.subr.bf16.mxu0 %v5467
    %6184 = vmatpush1.bf16.msra.mxu0 %v5466
    %6185 = vmatprep.subr.bf16.mxu0 %v5473
    %6186 = vmatpush1.bf16.msra.mxu0 %v5472
    %6187 = vmatprep.subr.bf16.mxu0 %v5479
    %6188 = vmatpush1.bf16.msra.mxu0 %v5478
    %6189 = vmatprep.subr.bf16.mxu0 %v5485
    %6190 = vmatpush1.bf16.msra.mxu0 %v5484
    %6191 = vmatprep.mubr.bf16.mxu0 %v3535
    %6192 = vmatmul.mubr.bf16.gmra.mrb[0].mxu0 %v3534
    %v6193 = vpop.f32.mrb[0].mxu0
    %v6194 = vadd.f32 %v6153, %v6193
    %v6195 = vpop.f32.mrb[0].mxu0
    %v6196 = vadd.f32 %v6155, %v6195
    %v6197 = vpop.f32.mrb[0].mxu0
    %v6198 = vpop.f32.mrb[0].mxu0
    %6199 = vdwg.mxu0
    %6200 = vmatprep.subr.bf16.mxu0 %v5109
    %6201 = vmatpush1.bf16.msra.mxu0 %v5108
    %6202 = vmatprep.subr.bf16.mxu0 %v5115
    %6203 = vmatpush1.bf16.msra.mxu0 %v5114
    %6204 = vmatprep.subr.bf16.mxu0 %v5121
    %6205 = vmatpush1.bf16.msra.mxu0 %v5120
    %6206 = vmatprep.subr.bf16.mxu0 %v5127
    %6207 = vmatpush1.bf16.msra.mxu0 %v5126
    %6208 = vmatprep.subr.bf16.mxu0 %v5133
    %6209 = vmatpush1.bf16.msra.mxu0 %v5132
    %6210 = vmatprep.subr.bf16.mxu0 %v5139
    %6211 = vmatpush1.bf16.msra.mxu0 %v5138
    %6212 = vmatprep.subr.bf16.mxu0 %v5145
    %6213 = vmatpush1.bf16.msra.mxu0 %v5144
    %6214 = vmatprep.subr.bf16.mxu0 %v5151
    %6215 = vmatpush1.bf16.msra.mxu0 %v5150
    %6216 = vmatprep.subr.bf16.mxu0 %v5157
    %6217 = vmatpush1.bf16.msra.mxu0 %v5156
    %6218 = vmatprep.subr.bf16.mxu0 %v5163
    %6219 = vmatpush1.bf16.msra.mxu0 %v5162
    %6220 = vmatprep.subr.bf16.mxu0 %v5169
    %6221 = vmatpush1.bf16.msra.mxu0 %v5168
    %6222 = vmatprep.subr.bf16.mxu0 %v5175
    %6223 = vmatpush1.bf16.msra.mxu0 %v5174
    %6224 = vmatprep.subr.bf16.mxu0 %v5181
    %6225 = vmatpush1.bf16.msra.mxu0 %v5180
    %6226 = vmatprep.subr.bf16.mxu0 %v5187
    %6227 = vmatpush1.bf16.msra.mxu0 %v5186
    %6228 = vmatprep.subr.bf16.mxu0 %v5193
    %6229 = vmatpush1.bf16.msra.mxu0 %v5192
    %6230 = vmatprep.subr.bf16.mxu0 %v5199
    %6231 = vmatpush1.bf16.msra.mxu0 %v5198
    %6232 = vmatprep.mubr.bf16.mxu0 %v3529
    %6233 = vmatmul.mubr.bf16.gmra.mrb[0].mxu0 %v3528
    %v6234 = vpop.f32.mrb[0].mxu0
    %v6235 = vadd.f32 %v3941, %v6234
    %v6236 = vpop.f32.mrb[0].mxu0
    %v6237 = vadd.f32 %v3945, %v6236
    %v6238 = vpop.f32.mrb[0].mxu0
    %v6239 = vpop.f32.mrb[0].mxu0
    %6240 = vdwg.mxu0
    %6241 = vmatprep.subr.bf16.mxu0 %v5205
    %6242 = vmatpush1.bf16.msra.mxu0 %v5204
    %6243 = vmatprep.subr.bf16.mxu0 %v5211
    %6244 = vmatpush1.bf16.msra.mxu0 %v5210
    %6245 = vmatprep.subr.bf16.mxu0 %v5217
    %6246 = vmatpush1.bf16.msra.mxu0 %v5216
    %6247 = vmatprep.subr.bf16.mxu0 %v5223
    %6248 = vmatpush1.bf16.msra.mxu0 %v5222
    %6249 = vmatprep.subr.bf16.mxu0 %v5229
    %6250 = vmatpush1.bf16.msra.mxu0 %v5228
    %6251 = vmatprep.subr.bf16.mxu0 %v5235
    %6252 = vmatpush1.bf16.msra.mxu0 %v5234
    %6253 = vmatprep.subr.bf16.mxu0 %v5241
    %6254 = vmatpush1.bf16.msra.mxu0 %v5240
    %6255 = vmatprep.subr.bf16.mxu0 %v5247
    %6256 = vmatpush1.bf16.msra.mxu0 %v5246
    %6257 = vmatprep.subr.bf16.mxu0 %v5253
    %6258 = vmatpush1.bf16.msra.mxu0 %v5252
    %6259 = vmatprep.subr.bf16.mxu0 %v5259
    %6260 = vmatpush1.bf16.msra.mxu0 %v5258
    %6261 = vmatprep.subr.bf16.mxu0 %v5265
    %6262 = vmatpush1.bf16.msra.mxu0 %v5264
    %6263 = vmatprep.subr.bf16.mxu0 %v5271
    %6264 = vmatpush1.bf16.msra.mxu0 %v5270
    %6265 = vmatprep.subr.bf16.mxu0 %v5277
    %6266 = vmatpush1.bf16.msra.mxu0 %v5276
    %6267 = vmatprep.subr.bf16.mxu0 %v5283
    %6268 = vmatpush1.bf16.msra.mxu0 %v5282
    %6269 = vmatprep.subr.bf16.mxu0 %v5289
    %6270 = vmatpush1.bf16.msra.mxu0 %v5288
    %6271 = vmatprep.subr.bf16.mxu0 %v5295
    %6272 = vmatpush1.bf16.msra.mxu0 %v5294
    %6273 = vmatprep.mubr.bf16.mxu0 %v3531
    %6274 = vmatmul.mubr.bf16.gmra.mrb[0].mxu0 %v3530
    %v6275 = vpop.f32.mrb[0].mxu0
    %v6276 = vadd.f32 %v6235, %v6275
    %v6277 = vpop.f32.mrb[0].mxu0
    %v6278 = vadd.f32 %v6237, %v6277
    %v6279 = vpop.f32.mrb[0].mxu0
    %v6280 = vpop.f32.mrb[0].mxu0
    %6281 = vdwg.mxu0
    %6282 = vmatprep.subr.bf16.mxu0 %v5301
    %6283 = vmatpush1.bf16.msra.mxu0 %v5300
    %6284 = vmatprep.subr.bf16.mxu0 %v5307
    %6285 = vmatpush1.bf16.msra.mxu0 %v5306
    %6286 = vmatprep.subr.bf16.mxu0 %v5313
    %6287 = vmatpush1.bf16.msra.mxu0 %v5312
    %6288 = vmatprep.subr.bf16.mxu0 %v5319
    %6289 = vmatpush1.bf16.msra.mxu0 %v5318
    %6290 = vmatprep.subr.bf16.mxu0 %v5325
    %6291 = vmatpush1.bf16.msra.mxu0 %v5324
    %6292 = vmatprep.subr.bf16.mxu0 %v5331
    %6293 = vmatpush1.bf16.msra.mxu0 %v5330
    %6294 = vmatprep.subr.bf16.mxu0 %v5337
    %6295 = vmatpush1.bf16.msra.mxu0 %v5336
    %6296 = vmatprep.subr.bf16.mxu0 %v5343
    %6297 = vmatpush1.bf16.msra.mxu0 %v5342
    %6298 = vmatprep.subr.bf16.mxu0 %v5349
    %6299 = vmatpush1.bf16.msra.mxu0 %v5348
    %6300 = vmatprep.subr.bf16.mxu0 %v5355
    %6301 = vmatpush1.bf16.msra.mxu0 %v5354
    %6302 = vmatprep.subr.bf16.mxu0 %v5361
    %6303 = vmatpush1.bf16.msra.mxu0 %v5360
    %6304 = vmatprep.subr.bf16.mxu0 %v5367
    %6305 = vmatpush1.bf16.msra.mxu0 %v5366
    %6306 = vmatprep.subr.bf16.mxu0 %v5373
    %6307 = vmatpush1.bf16.msra.mxu0 %v5372
    %6308 = vmatprep.subr.bf16.mxu0 %v5379
    %6309 = vmatpush1.bf16.msra.mxu0 %v5378
    %6310 = vmatprep.subr.bf16.mxu0 %v5385
    %6311 = vmatpush1.bf16.msra.mxu0 %v5384
    %6312 = vmatprep.subr.bf16.mxu0 %v5391
    %6313 = vmatpush1.bf16.msra.mxu0 %v5390
    %6314 = vmatprep.mubr.bf16.mxu0 %v3533
    %6315 = vmatmul.mubr.bf16.gmra.mrb[0].mxu0 %v3532
    %v6316 = vpop.f32.mrb[0].mxu0
    %v6317 = vadd.f32 %v6276, %v6316
    %v6318 = vpop.f32.mrb[0].mxu0
    %v6319 = vadd.f32 %v6278, %v6318
    %v6320 = vpop.f32.mrb[0].mxu0
    %v6321 = vpop.f32.mrb[0].mxu0
    %6322 = vdwg.mxu0
    %6323 = vmatprep.subr.bf16.mxu0 %v5397
    %6324 = vmatpush1.bf16.msra.mxu0 %v5396
    %6325 = vmatprep.subr.bf16.mxu0 %v5403
    %6326 = vmatpush1.bf16.msra.mxu0 %v5402
    %6327 = vmatprep.subr.bf16.mxu0 %v5409
    %6328 = vmatpush1.bf16.msra.mxu0 %v5408
    %6329 = vmatprep.subr.bf16.mxu0 %v5415
    %6330 = vmatpush1.bf16.msra.mxu0 %v5414
    %6331 = vmatprep.subr.bf16.mxu0 %v5421
    %6332 = vmatpush1.bf16.msra.mxu0 %v5420
    %6333 = vmatprep.subr.bf16.mxu0 %v5427
    %6334 = vmatpush1.bf16.msra.mxu0 %v5426
    %6335 = vmatprep.subr.bf16.mxu0 %v5433
    %6336 = vmatpush1.bf16.msra.mxu0 %v5432
    %6337 = vmatprep.subr.bf16.mxu0 %v5439
    %6338 = vmatpush1.bf16.msra.mxu0 %v5438
    %6339 = vmatprep.subr.bf16.mxu0 %v5445
    %6340 = vmatpush1.bf16.msra.mxu0 %v5444
    %6341 = vmatprep.subr.bf16.mxu0 %v5451
    %6342 = vmatpush1.bf16.msra.mxu0 %v5450
    %6343 = vmatprep.subr.bf16.mxu0 %v5457
    %6344 = vmatpush1.bf16.msra.mxu0 %v5456
    %6345 = vmatprep.subr.bf16.mxu0 %v5463
    %6346 = vmatpush1.bf16.msra.mxu0 %v5462
    %6347 = vmatprep.subr.bf16.mxu0 %v5469
    %6348 = vmatpush1.bf16.msra.mxu0 %v5468
    %6349 = vmatprep.subr.bf16.mxu0 %v5475
    %6350 = vmatpush1.bf16.msra.mxu0 %v5474
    %6351 = vmatprep.subr.bf16.mxu0 %v5481
    %6352 = vmatpush1.bf16.msra.mxu0 %v5480
    %6353 = vmatprep.subr.bf16.mxu0 %v5487
    %6354 = vmatpush1.bf16.msra.mxu0 %v5486
    %6355 = vmatprep.mubr.bf16.mxu0 %v3535
    %6356 = vmatmul.mubr.bf16.gmra.mrb[0].mxu0 %v3534
    %v6357 = vpop.f32.mrb[0].mxu0
    %v6358 = vadd.f32 %v6317, %v6357
    %v6359 = vpop.f32.mrb[0].mxu0
    %v6360 = vadd.f32 %v6319, %v6359
    %v6361 = vpop.f32.mrb[0].mxu0
    %v6362 = vpop.f32.mrb[0].mxu0
    %6363 = vdwg.mxu0
    %v6364 = vtanh.pop %v6030
    %v6365 = vtanh.pop %v6032
    %v6366 = vtanh.pop %v6194
    %v6367 = vtanh.pop %v6196
    %v6368 = vtanh.pop %v6358
    %v6369 = vtanh.pop %v6360
    %6370 = vst [vmem:[#allocation13] sm:$0xff] %v6364
    %6371 = vst [vmem:[#allocation13 + $0x8] sm:$0xff] %v6365
    %6372 = vst [vmem:[#allocation13 + $0x10] sm:$0xff] %v6366
    %6373 = vst [vmem:[#allocation13 + $0x18] sm:$0xff] %v6367
    %6374 = vst [vmem:[#allocation13 + $0x20] sm:$0xff] %v6368
    %6375 = vst [vmem:[#allocation13 + $0x28] sm:$0xff] %v6369
    // Predicated region
    $region54: #{netg_forward.1} parent=1 // pred_check
      _
    $region55: #{netg_forward.1} parent=1 // pred_check_branch
      %6377 = sbr.rel (0) target = $region57
    $region56: #{netg_forward.1} parent=1 // pred_region
      %s6379 = ssub.s32 768, 768
      %6380 = vsyncadd [#allocation4], %s6379
      %s6382 = sshll.u32 [#allocation13], 4
      %s6383 = int_to_ptr.vmem [resolvable:$true] %s6382
      %6385 = dma.vmem_to_hbm [thread:$0]  %s6383, 768, %s7, [#allocation4]
    $region57: #{netg_forward.1} parent=1 // pred_fallthru
      _
    // Predicated region
    $region58: #{netg_forward.1} parent=1 // pred_check
      _
    $region59: #{netg_forward.1} parent=1 // pred_check_branch
      %6387 = sbr.rel (0) target = $region61
    $region60: #{netg_forward.1} parent=1 // pred_region
      %6388 = dma.done [#allocation4], 768
    $region61: #{netg_forward.1} parent=1 // pred_fallthru
      _
    %6389 = vsyncpa [#allocation3], 1
    %6390 = vsyncpa [#allocation6], 1
    %6391 = vsyncpa [#allocation9], 1
    %6392 = vsyncpa [#allocation12], 1
    %6393 = vsyncpa [#allocation4], 1

</llo_original>
